<compile_context>
chip_gen: v7x
topology: tpu7x:2x2x1
jax: 0.10.0
libtpu: 0.0.40
codegen_flags: <defaults>
</compile_context>

<pallas_src>
import math
from functools import partial

import jax
import jax.numpy as jnp
from jax import lax
from jax.experimental import pallas as pl
from jax.experimental.pallas import tpu as pltpu


# ---------------------------------------------------------------------------
# Helpers
# ---------------------------------------------------------------------------
def _round_up(x: int, m: int) -> int:
    return ((x + m - 1) // m) * m


def _pick_tile(dim: int, target: int, align: int) -> int:
    """Largest aligned divisor of `dim` that is <= target; full dim otherwise.

    The wrapper pads the token dim so this never degenerates to tiny tiles on
    the row axis; model dims (E, 3E, ff) are typically 128-aligned already.
    The full-extent fallback is always legal per the (8,128) BlockSpec rule.
    """
    if dim <= target:
        return dim
    t = (target // align) * align
    while t >= align:
        if dim % t == 0:
            return t
        t -= align
    return dim


def _gelu_exact(x):
    return 0.5 * x * (1.0 + lax.erf(x * (1.0 / math.sqrt(2.0))))


# ---------------------------------------------------------------------------
# Fused linear:  o = act(x @ w + b) [+ add],  optional fused LayerNorm output
#   grid = (M/tm, N/tn, K/tk); single-K variant skips the accumulator entirely.
# ---------------------------------------------------------------------------
def _make_linear_kernel(multi_k, has_add, has_ln, activation, eps):
    def kernel(*refs):
        i = 0
        x_ref = refs[i]; i += 1
        w_ref = refs[i]; i += 1
        b_ref = refs[i]; i += 1
        add_ref = None
        if has_add:
            add_ref = refs[i]; i += 1
        if has_ln:
            g_ref = refs[i]; i += 1
            bt_ref = refs[i]; i += 1
        o_ref = refs[i]; i += 1
        if has_ln:
            ln_ref = refs[i]; i += 1
        acc_ref = refs[i] if multi_k else None

        def epilogue(acc):
            out = acc + b_ref[...].astype(jnp.float32)
            if has_add:
                out = out + add_ref[...].astype(jnp.float32)
            if activation == "gelu":            # exact (erf) GELU == nn.GELU()
                out = _gelu_exact(out)
            o_ref[...] = out.astype(o_ref.dtype)
            if has_ln:                           # LN over the full row (tn == N)
                mean = jnp.mean(out, axis=-1, keepdims=True)
                xc = out - mean
                var = jnp.mean(xc * xc, axis=-1, keepdims=True)
                y = (xc * lax.rsqrt(var + eps)
                     * g_ref[...].astype(jnp.float32)
                     + bt_ref[...].astype(jnp.float32))
                ln_ref[...] = y.astype(ln_ref.dtype)

        def mm():  # bf16 operands, f32 accumulate (MXU-native on v5e/v6e/v7x)
            return jnp.dot(x_ref[...].astype(jnp.bfloat16),
                           w_ref[...].astype(jnp.bfloat16),
                           preferred_element_type=jnp.float32)

        if multi_k:
            k = pl.program_id(2)

            @pl.when(k == 0)
            def _():
                acc_ref[...] = jnp.zeros_like(acc_ref)

            acc_ref[...] += mm()

            @pl.when(k == pl.num_programs(2) - 1)
            def _():
                epilogue(acc_ref[...])
        else:
            epilogue(mm())

    return kernel


def linear(x, w, b, *, add=None, ln=None, activation=None,
           out_dtype=None, ln_dtype=jnp.bfloat16, eps=1e-5,
           tm_target=256, tn_target=512, tk_target=1024):
    """x:[M,K] @ w:[K,N] + b:[N]  (+ add:[M,N]), optional GELU / fused LN.

    Returns out[M,N] (or (out, ln_out) when ln=(gamma, beta) is given).
    """
    M, K = x.shape
    K2, N = w.shape
    assert K == K2
    if out_dtype is None:
        out_dtype = x.dtype
    has_add = add is not None
    has_ln = ln is not None

    tm = _pick_tile(M, tm_target, 8)
    tn = N if has_ln else _pick_tile(N, tn_target, 128)  # LN needs the full row
    tk = _pick_tile(K, tk_target, 128)
    nk = K // tk
    multi_k = nk > 1
    grid = (M // tm, N // tn, nk)

    in_specs = [
        pl.BlockSpec((tm, tk), lambda i, j, k: (i, k)),
        pl.BlockSpec((tk, tn), lambda i, j, k: (k, j)),
        pl.BlockSpec((1, tn), lambda i, j, k: (0, j)),
    ]
    args = [x, w, b.reshape(1, N)]
    if has_add:
        in_specs.append(pl.BlockSpec((tm, tn), lambda i, j, k: (i, j)))
        args.append(add)
    if has_ln:
        g, bt = ln
        in_specs.append(pl.BlockSpec((1, tn), lambda i, j, k: (0, j)))
        in_specs.append(pl.BlockSpec((1, tn), lambda i, j, k: (0, j)))
        args.extend([g.reshape(1, N), bt.reshape(1, N)])

    if has_ln:
        out_shape = (jax.ShapeDtypeStruct((M, N), out_dtype),
                     jax.ShapeDtypeStruct((M, N), ln_dtype))
        out_specs = (pl.BlockSpec((tm, tn), lambda i, j, k: (i, j)),
                     pl.BlockSpec((tm, tn), lambda i, j, k: (i, j)))
    else:
        out_shape = jax.ShapeDtypeStruct((M, N), out_dtype)
        out_specs = pl.BlockSpec((tm, tn), lambda i, j, k: (i, j))

    scratch = [pltpu.VMEM((tm, tn), jnp.float32)] if multi_k else []

    return pl.pallas_call(
        _make_linear_kernel(multi_k, has_add, has_ln, activation, eps),
        out_shape=out_shape,
        grid_spec=pltpu.PrefetchScalarGridSpec(
            num_scalar_prefetch=0,
            grid=grid,
            in_specs=in_specs,
            out_specs=out_specs,
            scratch_shapes=scratch,
        ),
        compiler_params=pltpu.CompilerParams(
            dimension_semantics=("parallel", "parallel", "arbitrary")),
    )(*args)


# ---------------------------------------------------------------------------
# Patch embedding: Conv2d(kernel=stride=patch) as a matmul over im2col'd
# patches, writing directly into the padded [B, S_pad, E] token layout:
#   row 0          = cls + pos[0]          (precomputed [1,E] input)
#   rows 1..NP     = patches @ w + b + pos[1:]
#   rows NP+1..S_pad-1 = 0   (padding tokens, masked out in attention)
# ---------------------------------------------------------------------------
def _make_patch_embed_kernel(NP, S_pad, multi_k):
    def kernel(p_ref, w_ref, b_ref, pos_ref, cls_ref, o_ref, *maybe_acc):
        acc_ref = maybe_acc[0] if multi_k else None

        def epilogue(acc):
            tok = (acc + b_ref[...].astype(jnp.float32)
                   + pos_ref[...].astype(jnp.float32))
            o_ref[0, pl.ds(0, 1), :] = cls_ref[...].astype(o_ref.dtype)
            o_ref[0, pl.ds(1, NP), :] = tok.astype(o_ref.dtype)
            if S_pad > NP + 1:
                pad = S_pad - NP - 1
                o_ref[0, pl.ds(NP + 1, pad), :] = jnp.zeros(
                    (pad, o_ref.shape[2]), o_ref.dtype)

        def mm():
            return jnp.dot(p_ref[0].astype(jnp.bfloat16),
                           w_ref[...].astype(jnp.bfloat16),
                           preferred_element_type=jnp.float32)

        if multi_k:
            k = pl.program_id(2)

            @pl.when(k == 0)
            def _():
                acc_ref[...] = jnp.zeros_like(acc_ref)

            acc_ref[...] += mm()

            @pl.when(k == pl.num_programs(2) - 1)
            def _():
                epilogue(acc_ref[...])
        else:
            epilogue(mm())

    return kernel


def patch_embed(patches, w, b, pos_patch, cls_pos, s_pad, *,
                tn_target=512, tk_target=1024):
    """patches:[B,NP,K] @ w:[K,E] (+b +pos[1:]), cls_pos:[1,E] -> [B,S_pad,E]."""
    B, NP, K = patches.shape
    E = w.shape[1]
    tn = _pick_tile(E, tn_target, 128)
    tk = _pick_tile(K, tk_target, 128)
    nk = K // tk
    multi_k = nk > 1
    grid = (B, E // tn, nk)
    scratch = [pltpu.VMEM((NP, tn), jnp.float32)] if multi_k else []

    return pl.pallas_call(
        _make_patch_embed_kernel(NP, s_pad, multi_k),
        out_shape=jax.ShapeDtypeStruct((B, s_pad, E), jnp.float32),
        grid_spec=pltpu.PrefetchScalarGridSpec(
            num_scalar_prefetch=0,
            grid=grid,
            in_specs=[
                pl.BlockSpec((1, NP, tk), lambda bb, j, k: (bb, 0, k)),
                pl.BlockSpec((tk, tn), lambda bb, j, k: (k, j)),
                pl.BlockSpec((1, tn), lambda bb, j, k: (0, j)),
                pl.BlockSpec((NP, tn), lambda bb, j, k: (0, j)),
                pl.BlockSpec((1, tn), lambda bb, j, k: (0, j)),
            ],
            out_specs=pl.BlockSpec((1, s_pad, tn), lambda bb, j, k: (bb, 0, j)),
            scratch_shapes=scratch,
        ),
        compiler_params=pltpu.CompilerParams(
            dimension_semantics=("parallel", "parallel", "arbitrary")),
    )(patches, w, b.reshape(1, E), pos_patch, cls_pos)


# ---------------------------------------------------------------------------
# Stand-alone LayerNorm (only used for the very first ln1 and the final
# cls-row norm; all other LNs are fused into matmul epilogues).
# ---------------------------------------------------------------------------
def _layernorm_kernel(x_ref, g_ref, b_ref, o_ref, *, eps):
    x = x_ref[...].astype(jnp.float32)
    mean = jnp.mean(x, axis=-1, keepdims=True)
    xc = x - mean
    var = jnp.mean(xc * xc, axis=-1, keepdims=True)
    y = (xc * lax.rsqrt(var + eps) * g_ref[...].astype(jnp.float32)
         + b_ref[...].astype(jnp.float32))
    o_ref[...] = y.astype(o_ref.dtype)


def layernorm(x, gamma, beta, *, eps=1e-5, out_dtype=None, tm_target=512):
    M, E = x.shape
    if out_dtype is None:
        out_dtype = x.dtype
    tm = _pick_tile(M, tm_target, 8)
    return pl.pallas_call(
        partial(_layernorm_kernel, eps=eps),
        out_shape=jax.ShapeDtypeStruct((M, E), out_dtype),
        grid_spec=pltpu.PrefetchScalarGridSpec(
            num_scalar_prefetch=0,
            grid=(M // tm,),
            in_specs=[
                pl.BlockSpec((tm, E), lambda i: (i, 0)),
                pl.BlockSpec((1, E), lambda i: (0, 0)),
                pl.BlockSpec((1, E), lambda i: (0, 0)),
            ],
            out_specs=pl.BlockSpec((tm, E), lambda i: (i, 0)),
        ),
        compiler_params=pltpu.CompilerParams(
            dimension_semantics=("parallel",)),
    )(x, gamma.reshape(1, E), beta.reshape(1, E))


# ---------------------------------------------------------------------------
# Attention: one grid step per batch, heads sliced from the fused QKV block
# by lane offset (no XLA head-split/merge transposes).  Padded key positions
# (>= seq_len) are masked; weights are materialized (module returns them).
# ---------------------------------------------------------------------------
def _make_attention_kernel(H, E, Dh, scale, seq_len, s_pad):
    def kernel(qkv_ref, o_ref, w_ref):
        if s_pad > seq_len:
            key_mask = lax.broadcasted_iota(jnp.int32, (1, s_pad), 1) < seq_len
        outs = []
        for h in range(H):                       # static unroll over heads
            q = qkv_ref[0, :, h * Dh:(h + 1) * Dh]
            k = qkv_ref[0, :, E + h * Dh:E + (h + 1) * Dh]
            v = qkv_ref[0, :, 2 * E + h * Dh:2 * E + (h + 1) * Dh]
            s = lax.dot_general(q, k, (((1,), (1,)), ((), ())),
                                preferred_element_type=jnp.float32) * scale
            if s_pad > seq_len:
                s = jnp.where(key_mask, s, -1e30)
            m = jnp.max(s, axis=-1, keepdims=True)
            p = jnp.exp(s - m)
            denom = jnp.sum(p, axis=-1, keepdims=True)
            p = p * pl.reciprocal(denom, approx=True)   # divide -> EUP slot
            w_ref[0, h] = p.astype(w_ref.dtype)
            outs.append(lax.dot_general(p.astype(jnp.bfloat16), v,
                                        (((1,), (0,)), ((), ())),
                                        preferred_element_type=jnp.float32))
        # single lane-dense store of the merged [S_pad, E] context
        o_ref[0] = jnp.concatenate(outs, axis=-1).astype(o_ref.dtype)

    return kernel


def attention(qkv, *, num_heads, scale, seq_len):
    """qkv:[B, S_pad, 3E] -> (context [B,S_pad,E] bf16, weights [B,H,S_pad,S_pad] bf16)."""
    B, s_pad, three_e = qkv.shape
    E = three_e // 3
    Dh = E // num_heads
    # TODO(synk): for B==1 on v7x, split heads into 128-lane groups on a second
    # parallel grid axis so both TensorCores get work.
    return pl.pallas_call(
        _make_attention_kernel(num_heads, E, Dh, scale, seq_len, s_pad),
        out_shape=(jax.ShapeDtypeStruct((B, s_pad, E), jnp.bfloat16),
                   jax.ShapeDtypeStruct((B, num_heads, s_pad, s_pad),
                                        jnp.bfloat16)),
        grid_spec=pltpu.PrefetchScalarGridSpec(
            num_scalar_prefetch=0,
            grid=(B,),
            in_specs=[pl.BlockSpec((1, s_pad, three_e), lambda b: (b, 0, 0))],
            out_specs=(pl.BlockSpec((1, s_pad, E), lambda b: (b, 0, 0)),
                       pl.BlockSpec((1, num_heads, s_pad, s_pad),
                                    lambda b: (b, 0, 0, 0))),
        ),
        compiler_params=pltpu.CompilerParams(
            dimension_semantics=("parallel",)),
    )(qkv)


# ---------------------------------------------------------------------------
# Full ImageTransformer forward (matches the PyTorch module, dropout = 0).
# Returns (logits, final hidden state [B,S,E], list of attention weights).
# ---------------------------------------------------------------------------
def image_transformer_forward(params, x, *, patch_size, num_heads):
    B, C, Him, Wim = x.shape
    p = patch_size
    nph, npw = Him // p, Wim // p
    NP = nph * npw
    E = params["pos"].shape[-1]
    S = NP + 1
    S_pad = _round_up(S, 8)          # aligned token count (masked in attention)
    Dh = E // num_heads
    scale = Dh ** -0.5

    # im2col for the stride=kernel conv (pure layout glue, done once in XLA)
    patches = x.reshape(B, C, nph, p, npw, p)
    patches = patches.transpose(0, 2, 4, 1, 3, 5).reshape(B, NP, C * p * p)

    pos = params["pos"][0]                                   # [S, E]
    cls_pos = (params["cls"][0, 0] + pos[0]).reshape(1, E)   # cls token + pos[0]
    emb = patch_embed(patches, params["patch_w"], params["patch_b"],
                      pos[1:], cls_pos, S_pad)               # [B, S_pad, E] f32

    xf = emb.reshape(B * S_pad, E)   # f32 residual stream, lane-dense rows

    layers = params["layers"]
    n_layers = len(layers)
    attn_weights = []

    # layer 0's ln1 is stand-alone; every other ln is fused into an epilogue.
    h_norm = layernorm(xf, layers[0]["ln1_g"], layers[0]["ln1_b"],
                       out_dtype=jnp.bfloat16)

    for li, lp in enumerate(layers):
        # ---- self-attention block ----
        qkv = linear(h_norm, lp["wqkv"], lp["bqkv"],
                     out_dtype=jnp.bfloat16)                  # fused Q/K/V
        ctx, aw = attention(qkv.reshape(B, S_pad, 3 * E),
                            num_heads=num_heads, scale=scale, seq_len=S)
        attn_weights.append(aw[:, :, :S, :S].astype(jnp.float32))
        # out-projection + residual + ln2 fused into one epilogue
        xf, h_norm = linear(ctx.reshape(B * S_pad, E), lp["wo"], lp["bo"],
                            add=xf, ln=(lp["ln2_g"], lp["ln2_b"]),
                            out_dtype=jnp.float32)

        # ---- MLP block ----
        h_mid = linear(h_norm, lp["w1"], lp["b1"], activation="gelu",
                       out_dtype=jnp.bfloat16)                # fused GELU
        if li + 1 < n_layers:
            nxt = layers[li + 1]   # fuse the NEXT layer's ln1 into fc2
            xf, h_norm = linear(h_mid, lp["w2"], lp["b2"], add=xf,
                                ln=(nxt["ln1_g"], nxt["ln1_b"]),
                                out_dtype=jnp.float32)
        else:
            xf = linear(h_mid, lp["w2"], lp["b2"], add=xf,
                        out_dtype=jnp.float32)

    x_out = xf.reshape(B, S_pad, E)
    x_cls = x_out[:, 0, :]                                    # [B, E]
    x_cls_n = layernorm(x_cls, params["lnf_g"], params["lnf_b"],
                        out_dtype=jnp.float32)
    logits = linear(x_cls_n, params["head_w"], params["head_b"],
                    out_dtype=jnp.float32)
    return logits, x_out[:, :S, :], attn_weights


# ---------------------------------------------------------------------------
# Parameter init (deterministic; weights stored bf16 for the MXU path,
# biases / LN params / cls / pos stay f32; Q/K/V weights stored fused [E,3E]).
# ---------------------------------------------------------------------------
def init_params(key, *, img_size, patch_size, in_channels, embed_dim,
                num_heads, ff_dim, num_layers, num_classes):
    NP = (img_size // patch_size) ** 2
    S = NP + 1
    Kp = in_channels * patch_size * patch_size
    keys = iter(jax.random.split(key, 8 + 4 * num_layers))

    def nrm_w(shape):   # weight matrices -> bf16
        w = 0.02 * jax.random.normal(next(keys), shape, dtype=jnp.float32)
        return w.astype(jnp.bfloat16)

    def nrm_f(shape):   # embedding params stay f32
        return 0.02 * jax.random.normal(next(keys), shape, dtype=jnp.float32)

    def zeros(n):
        return jnp.zeros((n,), jnp.float32)

    params = {
        "patch_w": nrm_w((Kp, embed_dim)),   # Conv2d weight as [C*p*p, E]
        "patch_b": zeros(embed_dim),
        "cls": nrm_f((1, 1, embed_dim)),
        "pos": nrm_f((1, S, embed_dim)),
        "lnf_g": jnp.ones((embed_dim,), jnp.float32),
        "lnf_b": zeros(embed_dim),
        "head_w": nrm_w((embed_dim, num_classes)),
        "head_b": zeros(num_classes),
        "layers": [],
    }
    for _ in range(num_layers):
        params["layers"].append({
            "ln1_g": jnp.ones((embed_dim,), jnp.float32), "ln1_b": zeros(embed_dim),
            "wqkv": nrm_w((embed_dim, 3 * embed_dim)), "bqkv": zeros(3 * embed_dim),
            "wo": nrm_w((embed_dim, embed_dim)), "bo": zeros(embed_dim),
            "ln2_g": jnp.ones((embed_dim,), jnp.float32), "ln2_b": zeros(embed_dim),
            "w1": nrm_w((embed_dim, ff_dim)), "b1": zeros(ff_dim),
            "w2": nrm_w((ff_dim, embed_dim)), "b2": zeros(embed_dim),
        })
    return params


# ---------------------------------------------------------------------------
# Plain-JAX reference (f32 math, bf16-stored weights upcast) for correctness.
# ---------------------------------------------------------------------------
def _ref_layernorm(x, g, b, eps=1e-5):
    m = jnp.mean(x, -1, keepdims=True)
    v = jnp.mean((x - m) ** 2, -1, keepdims=True)
    return (x - m) / jnp.sqrt(v + eps) * g + b


def _ref_forward(params, x, *, patch_size, num_heads):
    f32 = lambda t: t.astype(jnp.float32)
    B, C, Him, Wim = x.shape
    p = patch_size
    nph, npw = Him // p, Wim // p
    NP = nph * npw
    E = params["pos"].shape[-1]
    S = NP + 1
    Dh = E // num_heads
    scale = Dh ** -0.5
    patches = x.reshape(B, C, nph, p, npw, p).transpose(0, 2, 4, 1, 3, 5)
    patches = patches.reshape(B, NP, C * p * p)
    tok = patches @ f32(params["patch_w"]) + params["patch_b"]
    cls = jnp.broadcast_to(params["cls"], (B, 1, E))
    xt = jnp.concatenate([cls, tok], axis=1) + params["pos"]
    attn_list = []
    for lp in params["layers"]:
        h = _ref_layernorm(xt, lp["ln1_g"], lp["ln1_b"])
        qkv = h @ f32(lp["wqkv"]) + lp["bqkv"]
        q, k, v = jnp.split(qkv, 3, axis=-1)
        q = q.reshape(B, S, num_heads, Dh).transpose(0, 2, 1, 3)
        k = k.reshape(B, S, num_heads, Dh).transpose(0, 2, 1, 3)
        v = v.reshape(B, S, num_heads, Dh).transpose(0, 2, 1, 3)
        s = jnp.einsum("bhqd,bhkd->bhqk", q, k) * scale
        w = jax.nn.softmax(s, axis=-1)
        attn_list.append(w)
        o = jnp.einsum("bhqk,bhkd->bhqd", w, v)
        o = o.transpose(0, 2, 1, 3).reshape(B, S, E)
        xt = xt + (o @ f32(lp["wo"]) + lp["bo"])
        h = _ref_layernorm(xt, lp["ln2_g"], lp["ln2_b"])
        h = h @ f32(lp["w1"]) + lp["b1"]
        h = 0.5 * h * (1.0 + lax.erf(h * (1.0 / math.sqrt(2.0))))
        xt = xt + (h @ f32(lp["w2"]) + lp["b2"])
    x_cls = _ref_layernorm(xt[:, 0], params["lnf_g"], params["lnf_b"])
    logits = x_cls @ f32(params["head_w"]) + params["head_b"]
    return logits, xt, attn_list


if __name__ == "__main__":
    # Small shapes consistent with the module's forward:
    # images [B, C, H, W]; num_patches=(16/4)^2=16 -> seq=17; embed=32.
    IMG, PATCH, C = 16, 4, 4
    EMBED, HEADS, FF, LAYERS, CLASSES = 32, 4, 64, 2, 2
    B = 2
    S = (IMG // PATCH) ** 2 + 1

    key = jax.random.PRNGKey(0)
    kx, kp = jax.random.split(key)
    x = jax.random.normal(kx, (B, C, IMG, IMG), dtype=jnp.float32)
    params = init_params(kp, img_size=IMG, patch_size=PATCH, in_channels=C,
                         embed_dim=EMBED, num_heads=HEADS, ff_dim=FF,
                         num_layers=LAYERS, num_classes=CLASSES)

    fwd = jax.jit(partial(image_transformer_forward,
                          patch_size=PATCH, num_heads=HEADS))
    logits, hidden, attn_w = fwd(params, x)
    logits = jax.block_until_ready(logits)
    hidden = jax.block_until_ready(hidden)

    # Reference check (dropout p=0.0 -> identity; bf16 matmul operands vs f32
    # reference, so tolerances are slightly looser than pure-f32).
    ref_logits, ref_hidden, _ = _ref_forward(params, x, patch_size=PATCH,
                                             num_heads=HEADS)

    assert logits.shape == (B, CLASSES)
    assert hidden.shape == (B, S, EMBED)
    assert len(attn_w) == LAYERS and attn_w[0].shape == (B, HEADS, S, S)
    assert jnp.allclose(logits, ref_logits, atol=3e-2, rtol=3e-2), "logits mismatch"
    assert jnp.allclose(hidden, ref_hidden, atol=3e-2, rtol=3e-2), "hidden mismatch"

    # Extra check: exercise the multi-K accumulation + fused residual/LN path
    # (the tiny model dims above all hit the single-K fast path).
    k1, k2, k3, k4 = jax.random.split(jax.random.PRNGKey(1), 4)
    xa = jax.random.normal(k1, (16, 256), jnp.float32)
    wa = (0.05 * jax.random.normal(k2, (256, 128), jnp.float32)).astype(jnp.bfloat16)
    ba = 0.1 * jax.random.normal(k3, (128,), jnp.float32)
    adda = jax.random.normal(k4, (16, 128), jnp.float32)
    ga = jnp.ones((128,), jnp.float32)
    bba = jnp.zeros((128,), jnp.float32)
    outa, lna = linear(xa, wa, ba, add=adda, ln=(ga, bba),
                       out_dtype=jnp.float32, tk_target=128)
    outa = jax.block_until_ready(outa)
    ref_o = xa @ wa.astype(jnp.float32) + ba + adda
    ref_ln = _ref_layernorm(ref_o, ga, bba)
    assert jnp.allclose(outa, ref_o, atol=3e-2, rtol=3e-2), "multi-K out mismatch"
    assert jnp.allclose(lna.astype(jnp.float32), ref_ln,
                        atol=5e-2, rtol=5e-2), "multi-K fused-LN mismatch"

    print("KERNEL_OK")
</pallas_src>

<mosaic_0001>
module attributes {stable_mosaic.version = 11 : i64} {
  func.func @_layernorm_kernel(%arg0: i32, %arg1: memref<48x32xf32, #tpu.memory_space<vmem>>, %arg2: memref<1x32xf32, #tpu.memory_space<vmem>>, %arg3: memref<1x32xf32, #tpu.memory_space<vmem>>, %arg4: memref<48x32xbf16, #tpu.memory_space<vmem>>) attributes {dimension_semantics = [#tpu.dimension_semantics<parallel>], iteration_bounds = array<i64: 1>, scalar_prefetch = 0 : i64, scratch_operands = 0 : i64, tpu.core_type = #tpu.core_type<tc>, window_params = [{transform_indices = @transform_0, window_bounds = array<i64: 48, 32>}, {pipeline_mode = #tpu.pipeline_mode<synchronous>, transform_indices = @transform_1, window_bounds = array<i64: 1, 32>}, {pipeline_mode = #tpu.pipeline_mode<synchronous>, transform_indices = @transform_2, window_bounds = array<i64: 1, 32>}, {transform_indices = @transform_3, window_bounds = array<i64: 48, 32>}]} {
    %c0 = arith.constant 0 : index
    %c0_0 = arith.constant 0 : index
    %0 = vector.load %arg1[%c0, %c0_0] : memref<48x32xf32, #tpu.memory_space<vmem>>, vector<48x32xf32>
    %cst = arith.constant dense<0.000000e+00> : vector<48xf32>
    %1 = vector.multi_reduction <add>, %0, %cst [1] : vector<48x32xf32> to vector<48xf32>
    %2 = vector.shape_cast %1 : vector<48xf32> to vector<48x1xf32>
    %cst_1 = arith.constant 3.200000e+01 : f32
    %3 = vector.broadcast %cst_1 : f32 to vector<48x1xf32>
    %4 = arith.divf %2, %3 : vector<48x1xf32>
    %5 = vector.broadcast %4 : vector<48x1xf32> to vector<48x32xf32>
    %6 = arith.subf %0, %5 : vector<48x32xf32>
    %7 = arith.mulf %6, %6 : vector<48x32xf32>
    %cst_2 = arith.constant dense<0.000000e+00> : vector<48xf32>
    %8 = vector.multi_reduction <add>, %7, %cst_2 [1] : vector<48x32xf32> to vector<48xf32>
    %9 = vector.shape_cast %8 : vector<48xf32> to vector<48x1xf32>
    %cst_3 = arith.constant 3.200000e+01 : f32
    %10 = vector.broadcast %cst_3 : f32 to vector<48x1xf32>
    %11 = arith.divf %9, %10 : vector<48x1xf32>
    %cst_4 = arith.constant 9.99999974E-6 : f32
    %12 = vector.broadcast %cst_4 : f32 to vector<48x1xf32>
    %13 = arith.addf %11, %12 : vector<48x1xf32>
    %14 = math.rsqrt %13 : vector<48x1xf32>
    %15 = vector.broadcast %14 : vector<48x1xf32> to vector<48x32xf32>
    %16 = arith.mulf %6, %15 : vector<48x32xf32>
    %c0_5 = arith.constant 0 : index
    %c0_6 = arith.constant 0 : index
    %17 = vector.load %arg2[%c0_5, %c0_6] : memref<1x32xf32, #tpu.memory_space<vmem>>, vector<1x32xf32>
    %18 = vector.broadcast %17 : vector<1x32xf32> to vector<48x32xf32>
    %19 = arith.mulf %16, %18 : vector<48x32xf32>
    %c0_7 = arith.constant 0 : index
    %c0_8 = arith.constant 0 : index
    %20 = vector.load %arg3[%c0_7, %c0_8] : memref<1x32xf32, #tpu.memory_space<vmem>>, vector<1x32xf32>
    %21 = vector.broadcast %20 : vector<1x32xf32> to vector<48x32xf32>
    %22 = arith.addf %19, %21 : vector<48x32xf32>
    %23 = arith.truncf %22 : vector<48x32xf32> to vector<48x32xbf16>
    %c0_9 = arith.constant 0 : index
    %c0_10 = arith.constant 0 : index
    %24 = vector.load %arg4[%c0_9, %c0_10] : memref<48x32xbf16, #tpu.memory_space<vmem>>, vector<48x32xbf16>
    tpu.vector_store %arg4[%c0_9, %c0_10], %23 {strides = array<i32>} : memref<48x32xbf16, #tpu.memory_space<vmem>>, vector<48x32xbf16>,
    return
  }
  func.func @transform_0(%arg0: i32) -> (i32, i32) {
    %c0_i32 = arith.constant 0 : i32
    %c0_i32_0 = arith.constant 0 : i32
    return %arg0, %c0_i32 : i32, i32
  }
  func.func @transform_1(%arg0: i32) -> (i32, i32) {
    %c0_i32 = arith.constant 0 : i32
    %c0_i32_0 = arith.constant 0 : i32
    %c0_i32_1 = arith.constant 0 : i32
    return %c0_i32, %c0_i32_0 : i32, i32
  }
  func.func @transform_2(%arg0: i32) -> (i32, i32) {
    %c0_i32 = arith.constant 0 : i32
    %c0_i32_0 = arith.constant 0 : i32
    %c0_i32_1 = arith.constant 0 : i32
    return %c0_i32, %c0_i32_0 : i32, i32
  }
  func.func @transform_3(%arg0: i32) -> (i32, i32) {
    %c0_i32 = arith.constant 0 : i32
    %c0_i32_0 = arith.constant 0 : i32
    return %arg0, %c0_i32 : i32, i32
  }
}

module attributes {stable_mosaic.version = 11 : i64} {
  func.func @kernel(%arg0: i32, %arg1: i32, %arg2: i32, %arg3: memref<48x32xbf16, #tpu.memory_space<vmem>>, %arg4: memref<32x96xbf16, #tpu.memory_space<vmem>>, %arg5: memref<1x96xf32, #tpu.memory_space<vmem>>, %arg6: memref<48x96xbf16, #tpu.memory_space<vmem>>) attributes {dimension_semantics = [#tpu.dimension_semantics<parallel>, #tpu.dimension_semantics<parallel>, #tpu.dimension_semantics<arbitrary>], iteration_bounds = array<i64: 1, 1, 1>, scalar_prefetch = 0 : i64, scratch_operands = 0 : i64, tpu.core_type = #tpu.core_type<tc>, window_params = [{transform_indices = @transform_0, window_bounds = array<i64: 48, 32>}, {transform_indices = @transform_1, window_bounds = array<i64: 32, 96>}, {transform_indices = @transform_2, window_bounds = array<i64: 1, 96>}, {transform_indices = @transform_3, window_bounds = array<i64: 48, 96>}]} {
    %c0 = arith.constant 0 : index
    %c0_0 = arith.constant 0 : index
    %0 = vector.load %arg3[%c0, %c0_0] : memref<48x32xbf16, #tpu.memory_space<vmem>>, vector<48x32xbf16>
    %c0_1 = arith.constant 0 : index
    %c0_2 = arith.constant 0 : index
    %1 = vector.load %arg4[%c0_1, %c0_2] : memref<32x96xbf16, #tpu.memory_space<vmem>>, vector<32x96xbf16>
    %cst = arith.constant dense<0.000000e+00> : vector<48x96xf32>
    %2 = tpu.matmul %0, %1, %cst {dimension_numbers = #tpu.dot_dimension_numbers<[1], [0], [0], [1], [0, 0, 1, 1], [], []>} : vector<48x32xbf16>, vector<32x96xbf16>, vector<48x96xf32> -> vector<48x96xf32>
    %c0_3 = arith.constant 0 : index
    %c0_4 = arith.constant 0 : index
    %3 = vector.load %arg5[%c0_3, %c0_4] : memref<1x96xf32, #tpu.memory_space<vmem>>, vector<1x96xf32>
    %4 = vector.broadcast %3 : vector<1x96xf32> to vector<48x96xf32>
    %5 = arith.addf %2, %4 : vector<48x96xf32>
    %6 = arith.truncf %5 : vector<48x96xf32> to vector<48x96xbf16>
    %c0_5 = arith.constant 0 : index
    %c0_6 = arith.constant 0 : index
    %7 = vector.load %arg6[%c0_5, %c0_6] : memref<48x96xbf16, #tpu.memory_space<vmem>>, vector<48x96xbf16>
    tpu.vector_store %arg6[%c0_5, %c0_6], %6 {strides = array<i32>} : memref<48x96xbf16, #tpu.memory_space<vmem>>, vector<48x96xbf16>,
    return
  }
  func.func @transform_0(%arg0: i32, %arg1: i32, %arg2: i32) -> (i32, i32) {
    %c0_i32 = arith.constant 0 : i32
    return %arg0, %arg2 : i32, i32
  }
  func.func @transform_1(%arg0: i32, %arg1: i32, %arg2: i32) -> (i32, i32) {
    %c0_i32 = arith.constant 0 : i32
    return %arg2, %arg1 : i32, i32
  }
  func.func @transform_2(%arg0: i32, %arg1: i32, %arg2: i32) -> (i32, i32) {
    %c0_i32 = arith.constant 0 : i32
    %c0_i32_0 = arith.constant 0 : i32
    return %c0_i32, %arg1 : i32, i32
  }
  func.func @transform_3(%arg0: i32, %arg1: i32, %arg2: i32) -> (i32, i32) {
    %c0_i32 = arith.constant 0 : i32
    return %arg0, %arg1 : i32, i32
  }
}

module attributes {stable_mosaic.version = 11 : i64} {
  func.func @kernel(%arg0: i32, %arg1: i32, %arg2: i32, %arg3: memref<1x16x64xf32, #tpu.memory_space<vmem>>, %arg4: memref<64x32xbf16, #tpu.memory_space<vmem>>, %arg5: memref<1x32xf32, #tpu.memory_space<vmem>>, %arg6: memref<16x32xf32, #tpu.memory_space<vmem>>, %arg7: memref<1x32xf32, #tpu.memory_space<vmem>>, %arg8: memref<1x24x32xf32, #tpu.memory_space<vmem>>) attributes {dimension_semantics = [#tpu.dimension_semantics<parallel>, #tpu.dimension_semantics<parallel>, #tpu.dimension_semantics<arbitrary>], iteration_bounds = array<i64: 2, 1, 1>, scalar_prefetch = 0 : i64, scratch_operands = 0 : i64, tpu.core_type = #tpu.core_type<tc>, window_params = [{transform_indices = @transform_0, window_bounds = array<i64: 1, 16, 64>}, {transform_indices = @transform_1, window_bounds = array<i64: 64, 32>}, {transform_indices = @transform_2, window_bounds = array<i64: 1, 32>}, {transform_indices = @transform_3, window_bounds = array<i64: 16, 32>}, {transform_indices = @transform_4, window_bounds = array<i64: 1, 32>}, {transform_indices = @transform_5, window_bounds = array<i64: 1, 24, 32>}]} {
    %c0 = arith.constant 0 : index
    %c0_0 = arith.constant 0 : index
    %c0_1 = arith.constant 0 : index
    %0 = vector.load %arg3[%c0, %c0_0, %c0_1] : memref<1x16x64xf32, #tpu.memory_space<vmem>>, vector<1x16x64xf32>
    %1 = vector.shape_cast %0 : vector<1x16x64xf32> to vector<16x64xf32>
    %2 = arith.truncf %1 : vector<16x64xf32> to vector<16x64xbf16>
    %c0_2 = arith.constant 0 : index
    %c0_3 = arith.constant 0 : index
    %3 = vector.load %arg4[%c0_2, %c0_3] : memref<64x32xbf16, #tpu.memory_space<vmem>>, vector<64x32xbf16>
    %cst = arith.constant dense<0.000000e+00> : vector<16x32xf32>
    %4 = tpu.matmul %2, %3, %cst {dimension_numbers = #tpu.dot_dimension_numbers<[1], [0], [0], [1], [0, 0, 1, 1], [], []>} : vector<16x64xbf16>, vector<64x32xbf16>, vector<16x32xf32> -> vector<16x32xf32>
    %c0_4 = arith.constant 0 : index
    %c0_5 = arith.constant 0 : index
    %5 = vector.load %arg5[%c0_4, %c0_5] : memref<1x32xf32, #tpu.memory_space<vmem>>, vector<1x32xf32>
    %6 = vector.broadcast %5 : vector<1x32xf32> to vector<16x32xf32>
    %7 = arith.addf %4, %6 : vector<16x32xf32>
    %c0_6 = arith.constant 0 : index
    %c0_7 = arith.constant 0 : index
    %8 = vector.load %arg6[%c0_6, %c0_7] : memref<16x32xf32, #tpu.memory_space<vmem>>, vector<16x32xf32>
    %9 = arith.addf %7, %8 : vector<16x32xf32>
    %c0_8 = arith.constant 0 : index
    %c0_9 = arith.constant 0 : index
    %10 = vector.load %arg7[%c0_8, %c0_9] : memref<1x32xf32, #tpu.memory_space<vmem>>, vector<1x32xf32>
    %c0_10 = arith.constant 0 : index
    %c0_11 = arith.constant 0 : index
    %c0_12 = arith.constant 0 : index
    %11 = vector.load %arg8[%c0_10, %c0_11, %c0_12] : memref<1x24x32xf32, #tpu.memory_space<vmem>>, vector<1x1x32xf32>
    %12 = vector.shape_cast %11 : vector<1x1x32xf32> to vector<1x32xf32>
    %13 = vector.shape_cast %10 : vector<1x32xf32> to vector<1x1x32xf32>
    tpu.vector_store %arg8[%c0_10, %c0_11, %c0_12], %13 {strides = array<i32>} : memref<1x24x32xf32, #tpu.memory_space<vmem>>, vector<1x1x32xf32>,
    %c0_13 = arith.constant 0 : index
    %c1 = arith.constant 1 : index
    %c0_14 = arith.constant 0 : index
    %14 = vector.load %arg8[%c0_13, %c1, %c0_14] : memref<1x24x32xf32, #tpu.memory_space<vmem>>, vector<1x16x32xf32>
    %15 = vector.shape_cast %14 : vector<1x16x32xf32> to vector<16x32xf32>
    %16 = vector.shape_cast %9 : vector<16x32xf32> to vector<1x16x32xf32>
    tpu.vector_store %arg8[%c0_13, %c1, %c0_14], %16 {strides = array<i32>} : memref<1x24x32xf32, #tpu.memory_space<vmem>>, vector<1x16x32xf32>,
    %cst_15 = arith.constant 0.000000e+00 : f32
    %17 = vector.broadcast %cst_15 : f32 to vector<7x32xf32>
    %c0_16 = arith.constant 0 : index
    %c17 = arith.constant 17 : index
    %c0_17 = arith.constant 0 : index
    %18 = vector.load %arg8[%c0_16, %c17, %c0_17] : memref<1x24x32xf32, #tpu.memory_space<vmem>>, vector<1x7x32xf32>
    %19 = vector.shape_cast %18 : vector<1x7x32xf32> to vector<7x32xf32>
    %20 = vector.shape_cast %17 : vector<7x32xf32> to vector<1x7x32xf32>
    tpu.vector_store %arg8[%c0_16, %c17, %c0_17], %20 {strides = array<i32>} : memref<1x24x32xf32, #tpu.memory_space<vmem>>, vector<1x7x32xf32>,
    return
  }
  func.func @transform_0(%arg0: i32, %arg1: i32, %arg2: i32) -> (i32, i32, i32) {
    %c0_i32 = arith.constant 0 : i32
    %c0_i32_0 = arith.constant 0 : i32
    return %arg0, %c0_i32, %arg2 : i32, i32, i32
  }
  func.func @transform_1(%arg0: i32, %arg1: i32, %arg2: i32) -> (i32, i32) {
    %c0_i32 = arith.constant 0 : i32
    return %arg2, %arg1 : i32, i32
  }
  func.func @transform_2(%arg0: i32, %arg1: i32, %arg2: i32) -> (i32, i32) {
    %c0_i32 = arith.constant 0 : i32
    %c0_i32_0 = arith.constant 0 : i32
    return %c0_i32, %arg1 : i32, i32
  }
  func.func @transform_3(%arg0: i32, %arg1: i32, %arg2: i32) -> (i32, i32) {
    %c0_i32 = arith.constant 0 : i32
    %c0_i32_0 = arith.constant 0 : i32
    return %c0_i32, %arg1 : i32, i32
  }
  func.func @transform_4(%arg0: i32, %arg1: i32, %arg2: i32) -> (i32, i32) {
    %c0_i32 = arith.constant 0 : i32
    %c0_i32_0 = arith.constant 0 : i32
    return %c0_i32, %arg1 : i32, i32
  }
  func.func @transform_5(%arg0: i32, %arg1: i32, %arg2: i32) -> (i32, i32, i32) {
    %c0_i32 = arith.constant 0 : i32
    %c0_i32_0 = arith.constant 0 : i32
    return %arg0, %c0_i32, %arg1 : i32, i32, i32
  }
}

module attributes {stable_mosaic.version = 11 : i64} {
  func.func @kernel(%arg0: i32, %arg1: memref<1x24x96xbf16, #tpu.memory_space<vmem>>, %arg2: memref<1x24x32xbf16, #tpu.memory_space<vmem>>, %arg3: memref<1x4x24x24xbf16, #tpu.memory_space<vmem>>) attributes {dimension_semantics = [#tpu.dimension_semantics<parallel>], iteration_bounds = array<i64: 2>, scalar_prefetch = 0 : i64, scratch_operands = 0 : i64, tpu.core_type = #tpu.core_type<tc>, window_params = [{transform_indices = @transform_0, window_bounds = array<i64: 1, 24, 96>}, {transform_indices = @transform_1, window_bounds = array<i64: 1, 24, 32>}, {transform_indices = @transform_2, window_bounds = array<i64: 1, 4, 24, 24>}]} {
    %0 = tpu.iota {dimensions = array<i32: 1>} : vector<1x24xi32>
    %c17_i32 = arith.constant 17 : i32
    %1 = vector.broadcast %c17_i32 : i32 to vector<1x24xi32>
    %2 = arith.cmpi slt, %0, %1 : vector<1x24xi32>
    %c0 = arith.constant 0 : index
    %c0_0 = arith.constant 0 : index
    %c0_1 = arith.constant 0 : index
    %3 = vector.load %arg1[%c0, %c0_0, %c0_1] : memref<1x24x96xbf16, #tpu.memory_space<vmem>>, vector<1x24x8xbf16>
    %4 = vector.shape_cast %3 : vector<1x24x8xbf16> to vector<24x8xbf16>
    %c0_2 = arith.constant 0 : index
    %c0_3 = arith.constant 0 : index
    %c32 = arith.constant 32 : index
    %5 = vector.load %arg1[%c0_2, %c0_3, %c32] : memref<1x24x96xbf16, #tpu.memory_space<vmem>>, vector<1x24x8xbf16>
    %6 = vector.shape_cast %5 : vector<1x24x8xbf16> to vector<24x8xbf16>
    %c0_4 = arith.constant 0 : index
    %c0_5 = arith.constant 0 : index
    %c64 = arith.constant 64 : index
    %7 = vector.load %arg1[%c0_4, %c0_5, %c64] : memref<1x24x96xbf16, #tpu.memory_space<vmem>>, vector<1x24x8xbf16>
    %8 = vector.shape_cast %7 : vector<1x24x8xbf16> to vector<24x8xbf16>
    %cst = arith.constant dense<0.000000e+00> : vector<24x24xf32>
    %9 = tpu.matmul %4, %6, %cst {dimension_numbers = #tpu.dot_dimension_numbers<[1], [1], [0], [0], [0, 0, 1, 0], [], []>} : vector<24x8xbf16>, vector<24x8xbf16>, vector<24x24xf32> -> vector<24x24xf32>
    %cst_6 = arith.constant 0.353553385 : f32
    %10 = vector.broadcast %cst_6 : f32 to vector<24x24xf32>
    %11 = arith.mulf %9, %10 : vector<24x24xf32>
    %cst_7 = arith.constant -1.000000e+30 : f32
    %12 = vector.shape_cast %2 : vector<1x24xi1> to vector<1x24xi1>
    %13 = vector.broadcast %12 : vector<1x24xi1> to vector<24x24xi1>
    %14 = vector.broadcast %cst_7 : f32 to vector<24x24xf32>
    %15 = arith.select %13, %11, %14 : vector<24x24xi1>, vector<24x24xf32>
    %cst_8 = arith.constant dense<0xFF800000> : vector<24xf32>
    %16 = vector.multi_reduction <maximumf>, %15, %cst_8 [1] : vector<24x24xf32> to vector<24xf32>
    %17 = vector.shape_cast %16 : vector<24xf32> to vector<24x1xf32>
    %18 = vector.broadcast %17 : vector<24x1xf32> to vector<24x24xf32>
    %19 = arith.subf %15, %18 : vector<24x24xf32>
    %20 = math.exp %19 : vector<24x24xf32>
    %cst_9 = arith.constant dense<0.000000e+00> : vector<24xf32>
    %21 = vector.multi_reduction <add>, %20, %cst_9 [1] : vector<24x24xf32> to vector<24xf32>
    %22 = vector.shape_cast %21 : vector<24xf32> to vector<24x1xf32>
    %23 = tpu.reciprocal %22 {approx = true} : vector<24x1xf32> -> vector<24x1xf32>
    %24 = vector.broadcast %23 : vector<24x1xf32> to vector<24x24xf32>
    %25 = arith.mulf %20, %24 : vector<24x24xf32>
    %26 = arith.truncf %25 : vector<24x24xf32> to vector<24x24xbf16>
    %c0_10 = arith.constant 0 : index
    %c0_11 = arith.constant 0 : index
    %c0_12 = arith.constant 0 : index
    %c0_13 = arith.constant 0 : index
    %27 = vector.load %arg3[%c0_10, %c0_11, %c0_12, %c0_13] : memref<1x4x24x24xbf16, #tpu.memory_space<vmem>>, vector<1x1x24x24xbf16>
    %28 = vector.shape_cast %27 : vector<1x1x24x24xbf16> to vector<24x24xbf16>
    %29 = vector.shape_cast %26 : vector<24x24xbf16> to vector<1x1x24x24xbf16>
    tpu.vector_store %arg3[%c0_10, %c0_11, %c0_12, %c0_13], %29 {strides = array<i32>} : memref<1x4x24x24xbf16, #tpu.memory_space<vmem>>, vector<1x1x24x24xbf16>,
    %30 = arith.truncf %25 : vector<24x24xf32> to vector<24x24xbf16>
    %cst_14 = arith.constant dense<0.000000e+00> : vector<24x8xf32>
    %31 = tpu.matmul %30, %8, %cst_14 {dimension_numbers = #tpu.dot_dimension_numbers<[1], [0], [0], [1], [0, 0, 1, 1], [], []>} : vector<24x24xbf16>, vector<24x8xbf16>, vector<24x8xf32> -> vector<24x8xf32>
    %c0_15 = arith.constant 0 : index
    %c0_16 = arith.constant 0 : index
    %c8 = arith.constant 8 : index
    %32 = vector.load %arg1[%c0_15, %c0_16, %c8] : memref<1x24x96xbf16, #tpu.memory_space<vmem>>, vector<1x24x8xbf16>
    %33 = vector.shape_cast %32 : vector<1x24x8xbf16> to vector<24x8xbf16>
    %c0_17 = arith.constant 0 : index
    %c0_18 = arith.constant 0 : index
    %c40 = arith.constant 40 : index
    %34 = vector.load %arg1[%c0_17, %c0_18, %c40] : memref<1x24x96xbf16, #tpu.memory_space<vmem>>, vector<1x24x8xbf16>
    %35 = vector.shape_cast %34 : vector<1x24x8xbf16> to vector<24x8xbf16>
    %c0_19 = arith.constant 0 : index
    %c0_20 = arith.constant 0 : index
    %c72 = arith.constant 72 : index
    %36 = vector.load %arg1[%c0_19, %c0_20, %c72] : memref<1x24x96xbf16, #tpu.memory_space<vmem>>, vector<1x24x8xbf16>
    %37 = vector.shape_cast %36 : vector<1x24x8xbf16> to vector<24x8xbf16>
    %cst_21 = arith.constant dense<0.000000e+00> : vector<24x24xf32>
    %38 = tpu.matmul %33, %35, %cst_21 {dimension_numbers = #tpu.dot_dimension_numbers<[1], [1], [0], [0], [0, 0, 1, 0], [], []>} : vector<24x8xbf16>, vector<24x8xbf16>, vector<24x24xf32> -> vector<24x24xf32>
    %cst_22 = arith.constant 0.353553385 : f32
    %39 = vector.broadcast %cst_22 : f32 to vector<24x24xf32>
    %40 = arith.mulf %38, %39 : vector<24x24xf32>
    %cst_23 = arith.constant -1.000000e+30 : f32
    %41 = vector.shape_cast %2 : vector<1x24xi1> to vector<1x24xi1>
    %42 = vector.broadcast %41 : vector<1x24xi1> to vector<24x24xi1>
    %43 = vector.broadcast %cst_23 : f32 to vector<24x24xf32>
    %44 = arith.select %42, %40, %43 : vector<24x24xi1>, vector<24x24xf32>
    %cst_24 = arith.constant dense<0xFF800000> : vector<24xf32>
    %45 = vector.multi_reduction <maximumf>, %44, %cst_24 [1] : vector<24x24xf32> to vector<24xf32>
    %46 = vector.shape_cast %45 : vector<24xf32> to vector<24x1xf32>
    %47 = vector.broadcast %46 : vector<24x1xf32> to vector<24x24xf32>
    %48 = arith.subf %44, %47 : vector<24x24xf32>
    %49 = math.exp %48 : vector<24x24xf32>
    %cst_25 = arith.constant dense<0.000000e+00> : vector<24xf32>
    %50 = vector.multi_reduction <add>, %49, %cst_25 [1] : vector<24x24xf32> to vector<24xf32>
    %51 = vector.shape_cast %50 : vector<24xf32> to vector<24x1xf32>
    %52 = tpu.reciprocal %51 {approx = true} : vector<24x1xf32> -> vector<24x1xf32>
    %53 = vector.broadcast %52 : vector<24x1xf32> to vector<24x24xf32>
    %54 = arith.mulf %49, %53 : vector<24x24xf32>
    %55 = arith.truncf %54 : vector<24x24xf32> to vector<24x24xbf16>
    %c0_26 = arith.constant 0 : index
    %c1 = arith.constant 1 : index
    %c0_27 = arith.constant 0 : index
    %c0_28 = arith.constant 0 : index
    %56 = vector.load %arg3[%c0_26, %c1, %c0_27, %c0_28] : memref<1x4x24x24xbf16, #tpu.memory_space<vmem>>, vector<1x1x24x24xbf16>
    %57 = vector.shape_cast %56 : vector<1x1x24x24xbf16> to vector<24x24xbf16>
    %58 = vector.shape_cast %55 : vector<24x24xbf16> to vector<1x1x24x24xbf16>
    tpu.vector_store %arg3[%c0_26, %c1, %c0_27, %c0_28], %58 {strides = array<i32>} : memref<1x4x24x24xbf16, #tpu.memory_space<vmem>>, vector<1x1x24x24xbf16>,
    %59 = arith.truncf %54 : vector<24x24xf32> to vector<24x24xbf16>
    %cst_29 = arith.constant dense<0.000000e+00> : vector<24x8xf32>
    %60 = tpu.matmul %59, %37, %cst_29 {dimension_numbers = #tpu.dot_dimension_numbers<[1], [0], [0], [1], [0, 0, 1, 1], [], []>} : vector<24x24xbf16>, vector<24x8xbf16>, vector<24x8xf32> -> vector<24x8xf32>
    %c0_30 = arith.constant 0 : index
    %c0_31 = arith.constant 0 : index
    %c16 = arith.constant 16 : index
    %61 = vector.load %arg1[%c0_30, %c0_31, %c16] : memref<1x24x96xbf16, #tpu.memory_space<vmem>>, vector<1x24x8xbf16>
    %62 = vector.shape_cast %61 : vector<1x24x8xbf16> to vector<24x8xbf16>
    %c0_32 = arith.constant 0 : index
    %c0_33 = arith.constant 0 : index
    %c48 = arith.constant 48 : index
    %63 = vector.load %arg1[%c0_32, %c0_33, %c48] : memref<1x24x96xbf16, #tpu.memory_space<vmem>>, vector<1x24x8xbf16>
    %64 = vector.shape_cast %63 : vector<1x24x8xbf16> to vector<24x8xbf16>
    %c0_34 = arith.constant 0 : index
    %c0_35 = arith.constant 0 : index
    %c80 = arith.constant 80 : index
    %65 = vector.load %arg1[%c0_34, %c0_35, %c80] : memref<1x24x96xbf16, #tpu.memory_space<vmem>>, vector<1x24x8xbf16>
    %66 = vector.shape_cast %65 : vector<1x24x8xbf16> to vector<24x8xbf16>
    %cst_36 = arith.constant dense<0.000000e+00> : vector<24x24xf32>
    %67 = tpu.matmul %62, %64, %cst_36 {dimension_numbers = #tpu.dot_dimension_numbers<[1], [1], [0], [0], [0, 0, 1, 0], [], []>} : vector<24x8xbf16>, vector<24x8xbf16>, vector<24x24xf32> -> vector<24x24xf32>
    %cst_37 = arith.constant 0.353553385 : f32
    %68 = vector.broadcast %cst_37 : f32 to vector<24x24xf32>
    %69 = arith.mulf %67, %68 : vector<24x24xf32>
    %cst_38 = arith.constant -1.000000e+30 : f32
    %70 = vector.shape_cast %2 : vector<1x24xi1> to vector<1x24xi1>
    %71 = vector.broadcast %70 : vector<1x24xi1> to vector<24x24xi1>
    %72 = vector.broadcast %cst_38 : f32 to vector<24x24xf32>
    %73 = arith.select %71, %69, %72 : vector<24x24xi1>, vector<24x24xf32>
    %cst_39 = arith.constant dense<0xFF800000> : vector<24xf32>
    %74 = vector.multi_reduction <maximumf>, %73, %cst_39 [1] : vector<24x24xf32> to vector<24xf32>
    %75 = vector.shape_cast %74 : vector<24xf32> to vector<24x1xf32>
    %76 = vector.broadcast %75 : vector<24x1xf32> to vector<24x24xf32>
    %77 = arith.subf %73, %76 : vector<24x24xf32>
    %78 = math.exp %77 : vector<24x24xf32>
    %cst_40 = arith.constant dense<0.000000e+00> : vector<24xf32>
    %79 = vector.multi_reduction <add>, %78, %cst_40 [1] : vector<24x24xf32> to vector<24xf32>
    %80 = vector.shape_cast %79 : vector<24xf32> to vector<24x1xf32>
    %81 = tpu.reciprocal %80 {approx = true} : vector<24x1xf32> -> vector<24x1xf32>
    %82 = vector.broadcast %81 : vector<24x1xf32> to vector<24x24xf32>
    %83 = arith.mulf %78, %82 : vector<24x24xf32>
    %84 = arith.truncf %83 : vector<24x24xf32> to vector<24x24xbf16>
    %c0_41 = arith.constant 0 : index
    %c2 = arith.constant 2 : index
    %c0_42 = arith.constant 0 : index
    %c0_43 = arith.constant 0 : index
    %85 = vector.load %arg3[%c0_41, %c2, %c0_42, %c0_43] : memref<1x4x24x24xbf16, #tpu.memory_space<vmem>>, vector<1x1x24x24xbf16>
    %86 = vector.shape_cast %85 : vector<1x1x24x24xbf16> to vector<24x24xbf16>
    %87 = vector.shape_cast %84 : vector<24x24xbf16> to vector<1x1x24x24xbf16>
    tpu.vector_store %arg3[%c0_41, %c2, %c0_42, %c0_43], %87 {strides = array<i32>} : memref<1x4x24x24xbf16, #tpu.memory_space<vmem>>, vector<1x1x24x24xbf16>,
    %88 = arith.truncf %83 : vector<24x24xf32> to vector<24x24xbf16>
    %cst_44 = arith.constant dense<0.000000e+00> : vector<24x8xf32>
    %89 = tpu.matmul %88, %66, %cst_44 {dimension_numbers = #tpu.dot_dimension_numbers<[1], [0], [0], [1], [0, 0, 1, 1], [], []>} : vector<24x24xbf16>, vector<24x8xbf16>, vector<24x8xf32> -> vector<24x8xf32>
    %c0_45 = arith.constant 0 : index
    %c0_46 = arith.constant 0 : index
    %c24 = arith.constant 24 : index
    %90 = vector.load %arg1[%c0_45, %c0_46, %c24] : memref<1x24x96xbf16, #tpu.memory_space<vmem>>, vector<1x24x8xbf16>
    %91 = vector.shape_cast %90 : vector<1x24x8xbf16> to vector<24x8xbf16>
    %c0_47 = arith.constant 0 : index
    %c0_48 = arith.constant 0 : index
    %c56 = arith.constant 56 : index
    %92 = vector.load %arg1[%c0_47, %c0_48, %c56] : memref<1x24x96xbf16, #tpu.memory_space<vmem>>, vector<1x24x8xbf16>
    %93 = vector.shape_cast %92 : vector<1x24x8xbf16> to vector<24x8xbf16>
    %c0_49 = arith.constant 0 : index
    %c0_50 = arith.constant 0 : index
    %c88 = arith.constant 88 : index
    %94 = vector.load %arg1[%c0_49, %c0_50, %c88] : memref<1x24x96xbf16, #tpu.memory_space<vmem>>, vector<1x24x8xbf16>
    %95 = vector.shape_cast %94 : vector<1x24x8xbf16> to vector<24x8xbf16>
    %cst_51 = arith.constant dense<0.000000e+00> : vector<24x24xf32>
    %96 = tpu.matmul %91, %93, %cst_51 {dimension_numbers = #tpu.dot_dimension_numbers<[1], [1], [0], [0], [0, 0, 1, 0], [], []>} : vector<24x8xbf16>, vector<24x8xbf16>, vector<24x24xf32> -> vector<24x24xf32>
    %cst_52 = arith.constant 0.353553385 : f32
    %97 = vector.broadcast %cst_52 : f32 to vector<24x24xf32>
    %98 = arith.mulf %96, %97 : vector<24x24xf32>
    %cst_53 = arith.constant -1.000000e+30 : f32
    %99 = vector.shape_cast %2 : vector<1x24xi1> to vector<1x24xi1>
    %100 = vector.broadcast %99 : vector<1x24xi1> to vector<24x24xi1>
    %101 = vector.broadcast %cst_53 : f32 to vector<24x24xf32>
    %102 = arith.select %100, %98, %101 : vector<24x24xi1>, vector<24x24xf32>
    %cst_54 = arith.constant dense<0xFF800000> : vector<24xf32>
    %103 = vector.multi_reduction <maximumf>, %102, %cst_54 [1] : vector<24x24xf32> to vector<24xf32>
    %104 = vector.shape_cast %103 : vector<24xf32> to vector<24x1xf32>
    %105 = vector.broadcast %104 : vector<24x1xf32> to vector<24x24xf32>
    %106 = arith.subf %102, %105 : vector<24x24xf32>
    %107 = math.exp %106 : vector<24x24xf32>
    %cst_55 = arith.constant dense<0.000000e+00> : vector<24xf32>
    %108 = vector.multi_reduction <add>, %107, %cst_55 [1] : vector<24x24xf32> to vector<24xf32>
    %109 = vector.shape_cast %108 : vector<24xf32> to vector<24x1xf32>
    %110 = tpu.reciprocal %109 {approx = true} : vector<24x1xf32> -> vector<24x1xf32>
    %111 = vector.broadcast %110 : vector<24x1xf32> to vector<24x24xf32>
    %112 = arith.mulf %107, %111 : vector<24x24xf32>
    %113 = arith.truncf %112 : vector<24x24xf32> to vector<24x24xbf16>
    %c0_56 = arith.constant 0 : index
    %c3 = arith.constant 3 : index
    %c0_57 = arith.constant 0 : index
    %c0_58 = arith.constant 0 : index
    %114 = vector.load %arg3[%c0_56, %c3, %c0_57, %c0_58] : memref<1x4x24x24xbf16, #tpu.memory_space<vmem>>, vector<1x1x24x24xbf16>
    %115 = vector.shape_cast %114 : vector<1x1x24x24xbf16> to vector<24x24xbf16>
    %116 = vector.shape_cast %113 : vector<24x24xbf16> to vector<1x1x24x24xbf16>
    tpu.vector_store %arg3[%c0_56, %c3, %c0_57, %c0_58], %116 {strides = array<i32>} : memref<1x4x24x24xbf16, #tpu.memory_space<vmem>>, vector<1x1x24x24xbf16>,
    %117 = arith.truncf %112 : vector<24x24xf32> to vector<24x24xbf16>
    %cst_59 = arith.constant dense<0.000000e+00> : vector<24x8xf32>
    %118 = tpu.matmul %117, %95, %cst_59 {dimension_numbers = #tpu.dot_dimension_numbers<[1], [0], [0], [1], [0, 0, 1, 1], [], []>} : vector<24x24xbf16>, vector<24x8xbf16>, vector<24x8xf32> -> vector<24x8xf32>
    %119 = tpu.concatenate %31, %60, %89, %118 in 1 : vector<24x8xf32>, vector<24x8xf32>, vector<24x8xf32>, vector<24x8xf32> -> vector<24x32xf32>
    %120 = arith.truncf %119 : vector<24x32xf32> to vector<24x32xbf16>
    %c0_60 = arith.constant 0 : index
    %c0_61 = arith.constant 0 : index
    %c0_62 = arith.constant 0 : index
    %121 = vector.load %arg2[%c0_60, %c0_61, %c0_62] : memref<1x24x32xbf16, #tpu.memory_space<vmem>>, vector<1x24x32xbf16>
    %122 = vector.shape_cast %121 : vector<1x24x32xbf16> to vector<24x32xbf16>
    %123 = vector.shape_cast %120 : vector<24x32xbf16> to vector<1x24x32xbf16>
    tpu.vector_store %arg2[%c0_60, %c0_61, %c0_62], %123 {strides = array<i32>} : memref<1x24x32xbf16, #tpu.memory_space<vmem>>, vector<1x24x32xbf16>,
    return
  }
  func.func @transform_0(%arg0: i32) -> (i32, i32, i32) {
    %c0_i32 = arith.constant 0 : i32
    %c0_i32_0 = arith.constant 0 : i32
    %c0_i32_1 = arith.constant 0 : i32
    return %arg0, %c0_i32, %c0_i32_0 : i32, i32, i32
  }
  func.func @transform_1(%arg0: i32) -> (i32, i32, i32) {
    %c0_i32 = arith.constant 0 : i32
    %c0_i32_0 = arith.constant 0 : i32
    %c0_i32_1 = arith.constant 0 : i32
    return %arg0, %c0_i32, %c0_i32_0 : i32, i32, i32
  }
  func.func @transform_2(%arg0: i32) -> (i32, i32, i32, i32) {
    %c0_i32 = arith.constant 0 : i32
    %c0_i32_0 = arith.constant 0 : i32
    %c0_i32_1 = arith.constant 0 : i32
    %c0_i32_2 = arith.constant 0 : i32
    return %arg0, %c0_i32, %c0_i32_0, %c0_i32_1 : i32, i32, i32, i32
  }
}

module attributes {stable_mosaic.version = 11 : i64} {
  func.func @kernel(%arg0: i32, %arg1: i32, %arg2: i32, %arg3: memref<48x32xbf16, #tpu.memory_space<vmem>>, %arg4: memref<32x32xbf16, #tpu.memory_space<vmem>>, %arg5: memref<1x32xf32, #tpu.memory_space<vmem>>, %arg6: memref<48x32xf32, #tpu.memory_space<vmem>>, %arg7: memref<1x32xf32, #tpu.memory_space<vmem>>, %arg8: memref<1x32xf32, #tpu.memory_space<vmem>>, %arg9: memref<48x32xf32, #tpu.memory_space<vmem>>, %arg10: memref<48x32xbf16, #tpu.memory_space<vmem>>) attributes {dimension_semantics = [#tpu.dimension_semantics<parallel>, #tpu.dimension_semantics<parallel>, #tpu.dimension_semantics<arbitrary>], iteration_bounds = array<i64: 1, 1, 1>, scalar_prefetch = 0 : i64, scratch_operands = 0 : i64, tpu.core_type = #tpu.core_type<tc>, window_params = [{transform_indices = @transform_0, window_bounds = array<i64: 48, 32>}, {transform_indices = @transform_1, window_bounds = array<i64: 32, 32>}, {transform_indices = @transform_2, window_bounds = array<i64: 1, 32>}, {transform_indices = @transform_3, window_bounds = array<i64: 48, 32>}, {transform_indices = @transform_4, window_bounds = array<i64: 1, 32>}, {transform_indices = @transform_5, window_bounds = array<i64: 1, 32>}, {transform_indices = @transform_6, window_bounds = array<i64: 48, 32>}, {transform_indices = @transform_7, window_bounds = array<i64: 48, 32>}]} {
    %c0 = arith.constant 0 : index
    %c0_0 = arith.constant 0 : index
    %0 = vector.load %arg3[%c0, %c0_0] : memref<48x32xbf16, #tpu.memory_space<vmem>>, vector<48x32xbf16>
    %c0_1 = arith.constant 0 : index
    %c0_2 = arith.constant 0 : index
    %1 = vector.load %arg4[%c0_1, %c0_2] : memref<32x32xbf16, #tpu.memory_space<vmem>>, vector<32x32xbf16>
    %cst = arith.constant dense<0.000000e+00> : vector<48x32xf32>
    %2 = tpu.matmul %0, %1, %cst {dimension_numbers = #tpu.dot_dimension_numbers<[1], [0], [0], [1], [0, 0, 1, 1], [], []>} : vector<48x32xbf16>, vector<32x32xbf16>, vector<48x32xf32> -> vector<48x32xf32>
    %c0_3 = arith.constant 0 : index
    %c0_4 = arith.constant 0 : index
    %3 = vector.load %arg5[%c0_3, %c0_4] : memref<1x32xf32, #tpu.memory_space<vmem>>, vector<1x32xf32>
    %4 = vector.broadcast %3 : vector<1x32xf32> to vector<48x32xf32>
    %5 = arith.addf %2, %4 : vector<48x32xf32>
    %c0_5 = arith.constant 0 : index
    %c0_6 = arith.constant 0 : index
    %6 = vector.load %arg6[%c0_5, %c0_6] : memref<48x32xf32, #tpu.memory_space<vmem>>, vector<48x32xf32>
    %7 = arith.addf %5, %6 : vector<48x32xf32>
    %c0_7 = arith.constant 0 : index
    %c0_8 = arith.constant 0 : index
    %8 = vector.load %arg9[%c0_7, %c0_8] : memref<48x32xf32, #tpu.memory_space<vmem>>, vector<48x32xf32>
    tpu.vector_store %arg9[%c0_7, %c0_8], %7 {strides = array<i32>} : memref<48x32xf32, #tpu.memory_space<vmem>>, vector<48x32xf32>,
    %cst_9 = arith.constant dense<0.000000e+00> : vector<48xf32>
    %9 = vector.multi_reduction <add>, %7, %cst_9 [1] : vector<48x32xf32> to vector<48xf32>
    %10 = vector.shape_cast %9 : vector<48xf32> to vector<48x1xf32>
    %cst_10 = arith.constant 3.200000e+01 : f32
    %11 = vector.broadcast %cst_10 : f32 to vector<48x1xf32>
    %12 = arith.divf %10, %11 : vector<48x1xf32>
    %13 = vector.broadcast %12 : vector<48x1xf32> to vector<48x32xf32>
    %14 = arith.subf %7, %13 : vector<48x32xf32>
    %15 = arith.mulf %14, %14 : vector<48x32xf32>
    %cst_11 = arith.constant dense<0.000000e+00> : vector<48xf32>
    %16 = vector.multi_reduction <add>, %15, %cst_11 [1] : vector<48x32xf32> to vector<48xf32>
    %17 = vector.shape_cast %16 : vector<48xf32> to vector<48x1xf32>
    %cst_12 = arith.constant 3.200000e+01 : f32
    %18 = vector.broadcast %cst_12 : f32 to vector<48x1xf32>
    %19 = arith.divf %17, %18 : vector<48x1xf32>
    %cst_13 = arith.constant 9.99999974E-6 : f32
    %20 = vector.broadcast %cst_13 : f32 to vector<48x1xf32>
    %21 = arith.addf %19, %20 : vector<48x1xf32>
    %22 = math.rsqrt %21 : vector<48x1xf32>
    %23 = vector.broadcast %22 : vector<48x1xf32> to vector<48x32xf32>
    %24 = arith.mulf %14, %23 : vector<48x32xf32>
    %c0_14 = arith.constant 0 : index
    %c0_15 = arith.constant 0 : index
    %25 = vector.load %arg7[%c0_14, %c0_15] : memref<1x32xf32, #tpu.memory_space<vmem>>, vector<1x32xf32>
    %26 = vector.broadcast %25 : vector<1x32xf32> to vector<48x32xf32>
    %27 = arith.mulf %24, %26 : vector<48x32xf32>
    %c0_16 = arith.constant 0 : index
    %c0_17 = arith.constant 0 : index
    %28 = vector.load %arg8[%c0_16, %c0_17] : memref<1x32xf32, #tpu.memory_space<vmem>>, vector<1x32xf32>
    %29 = vector.broadcast %28 : vector<1x32xf32> to vector<48x32xf32>
    %30 = arith.addf %27, %29 : vector<48x32xf32>
    %31 = arith.truncf %30 : vector<48x32xf32> to vector<48x32xbf16>
    %c0_18 = arith.constant 0 : index
    %c0_19 = arith.constant 0 : index
    %32 = vector.load %arg10[%c0_18, %c0_19] : memref<48x32xbf16, #tpu.memory_space<vmem>>, vector<48x32xbf16>
    tpu.vector_store %arg10[%c0_18, %c0_19], %31 {strides = array<i32>} : memref<48x32xbf16, #tpu.memory_space<vmem>>, vector<48x32xbf16>,
    return
  }
  func.func @transform_0(%arg0: i32, %arg1: i32, %arg2: i32) -> (i32, i32) {
    %c0_i32 = arith.constant 0 : i32
    return %arg0, %arg2 : i32, i32
  }
  func.func @transform_1(%arg0: i32, %arg1: i32, %arg2: i32) -> (i32, i32) {
    %c0_i32 = arith.constant 0 : i32
    return %arg2, %arg1 : i32, i32
  }
  func.func @transform_2(%arg0: i32, %arg1: i32, %arg2: i32) -> (i32, i32) {
    %c0_i32 = arith.constant 0 : i32
    %c0_i32_0 = arith.constant 0 : i32
    return %c0_i32, %arg1 : i32, i32
  }
  func.func @transform_3(%arg0: i32, %arg1: i32, %arg2: i32) -> (i32, i32) {
    %c0_i32 = arith.constant 0 : i32
    return %arg0, %arg1 : i32, i32
  }
  func.func @transform_4(%arg0: i32, %arg1: i32, %arg2: i32) -> (i32, i32) {
    %c0_i32 = arith.constant 0 : i32
    %c0_i32_0 = arith.constant 0 : i32
    return %c0_i32, %arg1 : i32, i32
  }
  func.func @transform_5(%arg0: i32, %arg1: i32, %arg2: i32) -> (i32, i32) {
    %c0_i32 = arith.constant 0 : i32
    %c0_i32_0 = arith.constant 0 : i32
    return %c0_i32, %arg1 : i32, i32
  }
  func.func @transform_6(%arg0: i32, %arg1: i32, %arg2: i32) -> (i32, i32) {
    %c0_i32 = arith.constant 0 : i32
    return %arg0, %arg1 : i32, i32
  }
  func.func @transform_7(%arg0: i32, %arg1: i32, %arg2: i32) -> (i32, i32) {
    %c0_i32 = arith.constant 0 : i32
    return %arg0, %arg1 : i32, i32
  }
}

module attributes {stable_mosaic.version = 11 : i64} {
  func.func @kernel(%arg0: i32, %arg1: i32, %arg2: i32, %arg3: memref<48x64xbf16, #tpu.memory_space<vmem>>, %arg4: memref<64x32xbf16, #tpu.memory_space<vmem>>, %arg5: memref<1x32xf32, #tpu.memory_space<vmem>>, %arg6: memref<48x32xf32, #tpu.memory_space<vmem>>, %arg7: memref<1x32xf32, #tpu.memory_space<vmem>>, %arg8: memref<1x32xf32, #tpu.memory_space<vmem>>, %arg9: memref<48x32xf32, #tpu.memory_space<vmem>>, %arg10: memref<48x32xbf16, #tpu.memory_space<vmem>>) attributes {dimension_semantics = [#tpu.dimension_semantics<parallel>, #tpu.dimension_semantics<parallel>, #tpu.dimension_semantics<arbitrary>], iteration_bounds = array<i64: 1, 1, 1>, scalar_prefetch = 0 : i64, scratch_operands = 0 : i64, tpu.core_type = #tpu.core_type<tc>, window_params = [{transform_indices = @transform_0, window_bounds = array<i64: 48, 64>}, {transform_indices = @transform_1, window_bounds = array<i64: 64, 32>}, {transform_indices = @transform_2, window_bounds = array<i64: 1, 32>}, {transform_indices = @transform_3, window_bounds = array<i64: 48, 32>}, {transform_indices = @transform_4, window_bounds = array<i64: 1, 32>}, {transform_indices = @transform_5, window_bounds = array<i64: 1, 32>}, {transform_indices = @transform_6, window_bounds = array<i64: 48, 32>}, {transform_indices = @transform_7, window_bounds = array<i64: 48, 32>}]} {
    %c0 = arith.constant 0 : index
    %c0_0 = arith.constant 0 : index
    %0 = vector.load %arg3[%c0, %c0_0] : memref<48x64xbf16, #tpu.memory_space<vmem>>, vector<48x64xbf16>
    %c0_1 = arith.constant 0 : index
    %c0_2 = arith.constant 0 : index
    %1 = vector.load %arg4[%c0_1, %c0_2] : memref<64x32xbf16, #tpu.memory_space<vmem>>, vector<64x32xbf16>
    %cst = arith.constant dense<0.000000e+00> : vector<48x32xf32>
    %2 = tpu.matmul %0, %1, %cst {dimension_numbers = #tpu.dot_dimension_numbers<[1], [0], [0], [1], [0, 0, 1, 1], [], []>} : vector<48x64xbf16>, vector<64x32xbf16>, vector<48x32xf32> -> vector<48x32xf32>
    %c0_3 = arith.constant 0 : index
    %c0_4 = arith.constant 0 : index
    %3 = vector.load %arg5[%c0_3, %c0_4] : memref<1x32xf32, #tpu.memory_space<vmem>>, vector<1x32xf32>
    %4 = vector.broadcast %3 : vector<1x32xf32> to vector<48x32xf32>
    %5 = arith.addf %2, %4 : vector<48x32xf32>
    %c0_5 = arith.constant 0 : index
    %c0_6 = arith.constant 0 : index
    %6 = vector.load %arg6[%c0_5, %c0_6] : memref<48x32xf32, #tpu.memory_space<vmem>>, vector<48x32xf32>
    %7 = arith.addf %5, %6 : vector<48x32xf32>
    %c0_7 = arith.constant 0 : index
    %c0_8 = arith.constant 0 : index
    %8 = vector.load %arg9[%c0_7, %c0_8] : memref<48x32xf32, #tpu.memory_space<vmem>>, vector<48x32xf32>
    tpu.vector_store %arg9[%c0_7, %c0_8], %7 {strides = array<i32>} : memref<48x32xf32, #tpu.memory_space<vmem>>, vector<48x32xf32>,
    %cst_9 = arith.constant dense<0.000000e+00> : vector<48xf32>
    %9 = vector.multi_reduction <add>, %7, %cst_9 [1] : vector<48x32xf32> to vector<48xf32>
    %10 = vector.shape_cast %9 : vector<48xf32> to vector<48x1xf32>
    %cst_10 = arith.constant 3.200000e+01 : f32
    %11 = vector.broadcast %cst_10 : f32 to vector<48x1xf32>
    %12 = arith.divf %10, %11 : vector<48x1xf32>
    %13 = vector.broadcast %12 : vector<48x1xf32> to vector<48x32xf32>
    %14 = arith.subf %7, %13 : vector<48x32xf32>
    %15 = arith.mulf %14, %14 : vector<48x32xf32>
    %cst_11 = arith.constant dense<0.000000e+00> : vector<48xf32>
    %16 = vector.multi_reduction <add>, %15, %cst_11 [1] : vector<48x32xf32> to vector<48xf32>
    %17 = vector.shape_cast %16 : vector<48xf32> to vector<48x1xf32>
    %cst_12 = arith.constant 3.200000e+01 : f32
    %18 = vector.broadcast %cst_12 : f32 to vector<48x1xf32>
    %19 = arith.divf %17, %18 : vector<48x1xf32>
    %cst_13 = arith.constant 9.99999974E-6 : f32
    %20 = vector.broadcast %cst_13 : f32 to vector<48x1xf32>
    %21 = arith.addf %19, %20 : vector<48x1xf32>
    %22 = math.rsqrt %21 : vector<48x1xf32>
    %23 = vector.broadcast %22 : vector<48x1xf32> to vector<48x32xf32>
    %24 = arith.mulf %14, %23 : vector<48x32xf32>
    %c0_14 = arith.constant 0 : index
    %c0_15 = arith.constant 0 : index
    %25 = vector.load %arg7[%c0_14, %c0_15] : memref<1x32xf32, #tpu.memory_space<vmem>>, vector<1x32xf32>
    %26 = vector.broadcast %25 : vector<1x32xf32> to vector<48x32xf32>
    %27 = arith.mulf %24, %26 : vector<48x32xf32>
    %c0_16 = arith.constant 0 : index
    %c0_17 = arith.constant 0 : index
    %28 = vector.load %arg8[%c0_16, %c0_17] : memref<1x32xf32, #tpu.memory_space<vmem>>, vector<1x32xf32>
    %29 = vector.broadcast %28 : vector<1x32xf32> to vector<48x32xf32>
    %30 = arith.addf %27, %29 : vector<48x32xf32>
    %31 = arith.truncf %30 : vector<48x32xf32> to vector<48x32xbf16>
    %c0_18 = arith.constant 0 : index
    %c0_19 = arith.constant 0 : index
    %32 = vector.load %arg10[%c0_18, %c0_19] : memref<48x32xbf16, #tpu.memory_space<vmem>>, vector<48x32xbf16>
    tpu.vector_store %arg10[%c0_18, %c0_19], %31 {strides = array<i32>} : memref<48x32xbf16, #tpu.memory_space<vmem>>, vector<48x32xbf16>,
    return
  }
  func.func @transform_0(%arg0: i32, %arg1: i32, %arg2: i32) -> (i32, i32) {
    %c0_i32 = arith.constant 0 : i32
    return %arg0, %arg2 : i32, i32
  }
  func.func @transform_1(%arg0: i32, %arg1: i32, %arg2: i32) -> (i32, i32) {
    %c0_i32 = arith.constant 0 : i32
    return %arg2, %arg1 : i32, i32
  }
  func.func @transform_2(%arg0: i32, %arg1: i32, %arg2: i32) -> (i32, i32) {
    %c0_i32 = arith.constant 0 : i32
    %c0_i32_0 = arith.constant 0 : i32
    return %c0_i32, %arg1 : i32, i32
  }
  func.func @transform_3(%arg0: i32, %arg1: i32, %arg2: i32) -> (i32, i32) {
    %c0_i32 = arith.constant 0 : i32
    return %arg0, %arg1 : i32, i32
  }
  func.func @transform_4(%arg0: i32, %arg1: i32, %arg2: i32) -> (i32, i32) {
    %c0_i32 = arith.constant 0 : i32
    %c0_i32_0 = arith.constant 0 : i32
    return %c0_i32, %arg1 : i32, i32
  }
  func.func @transform_5(%arg0: i32, %arg1: i32, %arg2: i32) -> (i32, i32) {
    %c0_i32 = arith.constant 0 : i32
    %c0_i32_0 = arith.constant 0 : i32
    return %c0_i32, %arg1 : i32, i32
  }
  func.func @transform_6(%arg0: i32, %arg1: i32, %arg2: i32) -> (i32, i32) {
    %c0_i32 = arith.constant 0 : i32
    return %arg0, %arg1 : i32, i32
  }
  func.func @transform_7(%arg0: i32, %arg1: i32, %arg2: i32) -> (i32, i32) {
    %c0_i32 = arith.constant 0 : i32
    return %arg0, %arg1 : i32, i32
  }
}

module attributes {stable_mosaic.version = 11 : i64} {
  func.func @kernel(%arg0: i32, %arg1: i32, %arg2: i32, %arg3: memref<48x32xbf16, #tpu.memory_space<vmem>>, %arg4: memref<32x64xbf16, #tpu.memory_space<vmem>>, %arg5: memref<1x64xf32, #tpu.memory_space<vmem>>, %arg6: memref<48x64xbf16, #tpu.memory_space<vmem>>) attributes {dimension_semantics = [#tpu.dimension_semantics<parallel>, #tpu.dimension_semantics<parallel>, #tpu.dimension_semantics<arbitrary>], iteration_bounds = array<i64: 1, 1, 1>, scalar_prefetch = 0 : i64, scratch_operands = 0 : i64, tpu.core_type = #tpu.core_type<tc>, window_params = [{transform_indices = @transform_0, window_bounds = array<i64: 48, 32>}, {transform_indices = @transform_1, window_bounds = array<i64: 32, 64>}, {transform_indices = @transform_2, window_bounds = array<i64: 1, 64>}, {transform_indices = @transform_3, window_bounds = array<i64: 48, 64>}]} {
    %c0 = arith.constant 0 : index
    %c0_0 = arith.constant 0 : index
    %0 = vector.load %arg3[%c0, %c0_0] : memref<48x32xbf16, #tpu.memory_space<vmem>>, vector<48x32xbf16>
    %c0_1 = arith.constant 0 : index
    %c0_2 = arith.constant 0 : index
    %1 = vector.load %arg4[%c0_1, %c0_2] : memref<32x64xbf16, #tpu.memory_space<vmem>>, vector<32x64xbf16>
    %cst = arith.constant dense<0.000000e+00> : vector<48x64xf32>
    %2 = tpu.matmul %0, %1, %cst {dimension_numbers = #tpu.dot_dimension_numbers<[1], [0], [0], [1], [0, 0, 1, 1], [], []>} : vector<48x32xbf16>, vector<32x64xbf16>, vector<48x64xf32> -> vector<48x64xf32>
    %c0_3 = arith.constant 0 : index
    %c0_4 = arith.constant 0 : index
    %3 = vector.load %arg5[%c0_3, %c0_4] : memref<1x64xf32, #tpu.memory_space<vmem>>, vector<1x64xf32>
    %4 = vector.broadcast %3 : vector<1x64xf32> to vector<48x64xf32>
    %5 = arith.addf %2, %4 : vector<48x64xf32>
    %cst_5 = arith.constant 5.000000e-01 : f32
    %6 = vector.broadcast %cst_5 : f32 to vector<48x64xf32>
    %7 = arith.mulf %6, %5 : vector<48x64xf32>
    %cst_6 = arith.constant 0.707106769 : f32
    %8 = vector.broadcast %cst_6 : f32 to vector<48x64xf32>
    %9 = arith.mulf %5, %8 : vector<48x64xf32>
    %10 = math.erf %9 : vector<48x64xf32>
    %cst_7 = arith.constant 1.000000e+00 : f32
    %11 = vector.broadcast %cst_7 : f32 to vector<48x64xf32>
    %12 = arith.addf %11, %10 : vector<48x64xf32>
    %13 = arith.mulf %7, %12 : vector<48x64xf32>
    %14 = arith.truncf %13 : vector<48x64xf32> to vector<48x64xbf16>
    %c0_8 = arith.constant 0 : index
    %c0_9 = arith.constant 0 : index
    %15 = vector.load %arg6[%c0_8, %c0_9] : memref<48x64xbf16, #tpu.memory_space<vmem>>, vector<48x64xbf16>
    tpu.vector_store %arg6[%c0_8, %c0_9], %14 {strides = array<i32>} : memref<48x64xbf16, #tpu.memory_space<vmem>>, vector<48x64xbf16>,
    return
  }
  func.func @transform_0(%arg0: i32, %arg1: i32, %arg2: i32) -> (i32, i32) {
    %c0_i32 = arith.constant 0 : i32
    return %arg0, %arg2 : i32, i32
  }
  func.func @transform_1(%arg0: i32, %arg1: i32, %arg2: i32) -> (i32, i32) {
    %c0_i32 = arith.constant 0 : i32
    return %arg2, %arg1 : i32, i32
  }
  func.func @transform_2(%arg0: i32, %arg1: i32, %arg2: i32) -> (i32, i32) {
    %c0_i32 = arith.constant 0 : i32
    %c0_i32_0 = arith.constant 0 : i32
    return %c0_i32, %arg1 : i32, i32
  }
  func.func @transform_3(%arg0: i32, %arg1: i32, %arg2: i32) -> (i32, i32) {
    %c0_i32 = arith.constant 0 : i32
    return %arg0, %arg1 : i32, i32
  }
}

module attributes {stable_mosaic.version = 11 : i64} {
  func.func @kernel(%arg0: i32, %arg1: i32, %arg2: i32, %arg3: memref<48x64xbf16, #tpu.memory_space<vmem>>, %arg4: memref<64x32xbf16, #tpu.memory_space<vmem>>, %arg5: memref<1x32xf32, #tpu.memory_space<vmem>>, %arg6: memref<48x32xf32, #tpu.memory_space<vmem>>, %arg7: memref<48x32xf32, #tpu.memory_space<vmem>>) attributes {dimension_semantics = [#tpu.dimension_semantics<parallel>, #tpu.dimension_semantics<parallel>, #tpu.dimension_semantics<arbitrary>], iteration_bounds = array<i64: 1, 1, 1>, scalar_prefetch = 0 : i64, scratch_operands = 0 : i64, tpu.core_type = #tpu.core_type<tc>, window_params = [{transform_indices = @transform_0, window_bounds = array<i64: 48, 64>}, {transform_indices = @transform_1, window_bounds = array<i64: 64, 32>}, {transform_indices = @transform_2, window_bounds = array<i64: 1, 32>}, {transform_indices = @transform_3, window_bounds = array<i64: 48, 32>}, {transform_indices = @transform_4, window_bounds = array<i64: 48, 32>}]} {
    %c0 = arith.constant 0 : index
    %c0_0 = arith.constant 0 : index
    %0 = vector.load %arg3[%c0, %c0_0] : memref<48x64xbf16, #tpu.memory_space<vmem>>, vector<48x64xbf16>
    %c0_1 = arith.constant 0 : index
    %c0_2 = arith.constant 0 : index
    %1 = vector.load %arg4[%c0_1, %c0_2] : memref<64x32xbf16, #tpu.memory_space<vmem>>, vector<64x32xbf16>
    %cst = arith.constant dense<0.000000e+00> : vector<48x32xf32>
    %2 = tpu.matmul %0, %1, %cst {dimension_numbers = #tpu.dot_dimension_numbers<[1], [0], [0], [1], [0, 0, 1, 1], [], []>} : vector<48x64xbf16>, vector<64x32xbf16>, vector<48x32xf32> -> vector<48x32xf32>
    %c0_3 = arith.constant 0 : index
    %c0_4 = arith.constant 0 : index
    %3 = vector.load %arg5[%c0_3, %c0_4] : memref<1x32xf32, #tpu.memory_space<vmem>>, vector<1x32xf32>
    %4 = vector.broadcast %3 : vector<1x32xf32> to vector<48x32xf32>
    %5 = arith.addf %2, %4 : vector<48x32xf32>
    %c0_5 = arith.constant 0 : index
    %c0_6 = arith.constant 0 : index
    %6 = vector.load %arg6[%c0_5, %c0_6] : memref<48x32xf32, #tpu.memory_space<vmem>>, vector<48x32xf32>
    %7 = arith.addf %5, %6 : vector<48x32xf32>
    %c0_7 = arith.constant 0 : index
    %c0_8 = arith.constant 0 : index
    %8 = vector.load %arg7[%c0_7, %c0_8] : memref<48x32xf32, #tpu.memory_space<vmem>>, vector<48x32xf32>
    tpu.vector_store %arg7[%c0_7, %c0_8], %7 {strides = array<i32>} : memref<48x32xf32, #tpu.memory_space<vmem>>, vector<48x32xf32>,
    return
  }
  func.func @transform_0(%arg0: i32, %arg1: i32, %arg2: i32) -> (i32, i32) {
    %c0_i32 = arith.constant 0 : i32
    return %arg0, %arg2 : i32, i32
  }
  func.func @transform_1(%arg0: i32, %arg1: i32, %arg2: i32) -> (i32, i32) {
    %c0_i32 = arith.constant 0 : i32
    return %arg2, %arg1 : i32, i32
  }
  func.func @transform_2(%arg0: i32, %arg1: i32, %arg2: i32) -> (i32, i32) {
    %c0_i32 = arith.constant 0 : i32
    %c0_i32_0 = arith.constant 0 : i32
    return %c0_i32, %arg1 : i32, i32
  }
  func.func @transform_3(%arg0: i32, %arg1: i32, %arg2: i32) -> (i32, i32) {
    %c0_i32 = arith.constant 0 : i32
    return %arg0, %arg1 : i32, i32
  }
  func.func @transform_4(%arg0: i32, %arg1: i32, %arg2: i32) -> (i32, i32) {
    %c0_i32 = arith.constant 0 : i32
    return %arg0, %arg1 : i32, i32
  }
}

module attributes {stable_mosaic.version = 11 : i64} {
  func.func @_layernorm_kernel(%arg0: i32, %arg1: memref<2x32xf32, #tpu.memory_space<vmem>>, %arg2: memref<1x32xf32, #tpu.memory_space<vmem>>, %arg3: memref<1x32xf32, #tpu.memory_space<vmem>>, %arg4: memref<2x32xf32, #tpu.memory_space<vmem>>) attributes {dimension_semantics = [#tpu.dimension_semantics<parallel>], iteration_bounds = array<i64: 1>, scalar_prefetch = 0 : i64, scratch_operands = 0 : i64, tpu.core_type = #tpu.core_type<tc>, window_params = [{transform_indices = @transform_0, window_bounds = array<i64: 2, 32>}, {pipeline_mode = #tpu.pipeline_mode<synchronous>, transform_indices = @transform_1, window_bounds = array<i64: 1, 32>}, {pipeline_mode = #tpu.pipeline_mode<synchronous>, transform_indices = @transform_2, window_bounds = array<i64: 1, 32>}, {transform_indices = @transform_3, window_bounds = array<i64: 2, 32>}]} {
    %c0 = arith.constant 0 : index
    %c0_0 = arith.constant 0 : index
    %0 = vector.load %arg1[%c0, %c0_0] : memref<2x32xf32, #tpu.memory_space<vmem>>, vector<2x32xf32>
    %cst = arith.constant dense<0.000000e+00> : vector<2xf32>
    %1 = vector.multi_reduction <add>, %0, %cst [1] : vector<2x32xf32> to vector<2xf32>
    %2 = vector.shape_cast %1 : vector<2xf32> to vector<2x1xf32>
    %cst_1 = arith.constant 3.200000e+01 : f32
    %3 = vector.broadcast %cst_1 : f32 to vector<2x1xf32>
    %4 = arith.divf %2, %3 : vector<2x1xf32>
    %5 = vector.broadcast %4 : vector<2x1xf32> to vector<2x32xf32>
    %6 = arith.subf %0, %5 : vector<2x32xf32>
    %7 = arith.mulf %6, %6 : vector<2x32xf32>
    %cst_2 = arith.constant dense<0.000000e+00> : vector<2xf32>
    %8 = vector.multi_reduction <add>, %7, %cst_2 [1] : vector<2x32xf32> to vector<2xf32>
    %9 = vector.shape_cast %8 : vector<2xf32> to vector<2x1xf32>
    %cst_3 = arith.constant 3.200000e+01 : f32
    %10 = vector.broadcast %cst_3 : f32 to vector<2x1xf32>
    %11 = arith.divf %9, %10 : vector<2x1xf32>
    %cst_4 = arith.constant 9.99999974E-6 : f32
    %12 = vector.broadcast %cst_4 : f32 to vector<2x1xf32>
    %13 = arith.addf %11, %12 : vector<2x1xf32>
    %14 = math.rsqrt %13 : vector<2x1xf32>
    %15 = vector.broadcast %14 : vector<2x1xf32> to vector<2x32xf32>
    %16 = arith.mulf %6, %15 : vector<2x32xf32>
    %c0_5 = arith.constant 0 : index
    %c0_6 = arith.constant 0 : index
    %17 = vector.load %arg2[%c0_5, %c0_6] : memref<1x32xf32, #tpu.memory_space<vmem>>, vector<1x32xf32>
    %18 = vector.broadcast %17 : vector<1x32xf32> to vector<2x32xf32>
    %19 = arith.mulf %16, %18 : vector<2x32xf32>
    %c0_7 = arith.constant 0 : index
    %c0_8 = arith.constant 0 : index
    %20 = vector.load %arg3[%c0_7, %c0_8] : memref<1x32xf32, #tpu.memory_space<vmem>>, vector<1x32xf32>
    %21 = vector.broadcast %20 : vector<1x32xf32> to vector<2x32xf32>
    %22 = arith.addf %19, %21 : vector<2x32xf32>
    %c0_9 = arith.constant 0 : index
    %c0_10 = arith.constant 0 : index
    %23 = vector.load %arg4[%c0_9, %c0_10] : memref<2x32xf32, #tpu.memory_space<vmem>>, vector<2x32xf32>
    tpu.vector_store %arg4[%c0_9, %c0_10], %22 {strides = array<i32>} : memref<2x32xf32, #tpu.memory_space<vmem>>, vector<2x32xf32>,
    return
  }
  func.func @transform_0(%arg0: i32) -> (i32, i32) {
    %c0_i32 = arith.constant 0 : i32
    %c0_i32_0 = arith.constant 0 : i32
    return %arg0, %c0_i32 : i32, i32
  }
  func.func @transform_1(%arg0: i32) -> (i32, i32) {
    %c0_i32 = arith.constant 0 : i32
    %c0_i32_0 = arith.constant 0 : i32
    %c0_i32_1 = arith.constant 0 : i32
    return %c0_i32, %c0_i32_0 : i32, i32
  }
  func.func @transform_2(%arg0: i32) -> (i32, i32) {
    %c0_i32 = arith.constant 0 : i32
    %c0_i32_0 = arith.constant 0 : i32
    %c0_i32_1 = arith.constant 0 : i32
    return %c0_i32, %c0_i32_0 : i32, i32
  }
  func.func @transform_3(%arg0: i32) -> (i32, i32) {
    %c0_i32 = arith.constant 0 : i32
    %c0_i32_0 = arith.constant 0 : i32
    return %arg0, %c0_i32 : i32, i32
  }
}

module attributes {stable_mosaic.version = 11 : i64} {
  func.func @kernel(%arg0: i32, %arg1: i32, %arg2: i32, %arg3: memref<2x32xf32, #tpu.memory_space<vmem>>, %arg4: memref<32x2xbf16, #tpu.memory_space<vmem>>, %arg5: memref<1x2xf32, #tpu.memory_space<vmem>>, %arg6: memref<2x2xf32, #tpu.memory_space<vmem>>) attributes {dimension_semantics = [#tpu.dimension_semantics<parallel>, #tpu.dimension_semantics<parallel>, #tpu.dimension_semantics<arbitrary>], iteration_bounds = array<i64: 1, 1, 1>, scalar_prefetch = 0 : i64, scratch_operands = 0 : i64, tpu.core_type = #tpu.core_type<tc>, window_params = [{transform_indices = @transform_0, window_bounds = array<i64: 2, 32>}, {transform_indices = @transform_1, window_bounds = array<i64: 32, 2>}, {transform_indices = @transform_2, window_bounds = array<i64: 1, 2>}, {transform_indices = @transform_3, window_bounds = array<i64: 2, 2>}]} {
    %c0 = arith.constant 0 : index
    %c0_0 = arith.constant 0 : index
    %0 = vector.load %arg3[%c0, %c0_0] : memref<2x32xf32, #tpu.memory_space<vmem>>, vector<2x32xf32>
    %1 = arith.truncf %0 : vector<2x32xf32> to vector<2x32xbf16>
    %c0_1 = arith.constant 0 : index
    %c0_2 = arith.constant 0 : index
    %2 = vector.load %arg4[%c0_1, %c0_2] : memref<32x2xbf16, #tpu.memory_space<vmem>>, vector<32x2xbf16>
    %cst = arith.constant dense<0.000000e+00> : vector<2x2xf32>
    %3 = tpu.matmul %1, %2, %cst {dimension_numbers = #tpu.dot_dimension_numbers<[1], [0], [0], [1], [0, 0, 1, 1], [], []>} : vector<2x32xbf16>, vector<32x2xbf16>, vector<2x2xf32> -> vector<2x2xf32>
    %c0_3 = arith.constant 0 : index
    %c0_4 = arith.constant 0 : index
    %4 = vector.load %arg5[%c0_3, %c0_4] : memref<1x2xf32, #tpu.memory_space<vmem>>, vector<1x2xf32>
    %5 = vector.broadcast %4 : vector<1x2xf32> to vector<2x2xf32>
    %6 = arith.addf %3, %5 : vector<2x2xf32>
    %c0_5 = arith.constant 0 : index
    %c0_6 = arith.constant 0 : index
    %7 = vector.load %arg6[%c0_5, %c0_6] : memref<2x2xf32, #tpu.memory_space<vmem>>, vector<2x2xf32>
    tpu.vector_store %arg6[%c0_5, %c0_6], %6 {strides = array<i32>} : memref<2x2xf32, #tpu.memory_space<vmem>>, vector<2x2xf32>,
    return
  }
  func.func @transform_0(%arg0: i32, %arg1: i32, %arg2: i32) -> (i32, i32) {
    %c0_i32 = arith.constant 0 : i32
    return %arg0, %arg2 : i32, i32
  }
  func.func @transform_1(%arg0: i32, %arg1: i32, %arg2: i32) -> (i32, i32) {
    %c0_i32 = arith.constant 0 : i32
    return %arg2, %arg1 : i32, i32
  }
  func.func @transform_2(%arg0: i32, %arg1: i32, %arg2: i32) -> (i32, i32) {
    %c0_i32 = arith.constant 0 : i32
    %c0_i32_0 = arith.constant 0 : i32
    return %c0_i32, %arg1 : i32, i32
  }
  func.func @transform_3(%arg0: i32, %arg1: i32, %arg2: i32) -> (i32, i32) {
    %c0_i32 = arith.constant 0 : i32
    return %arg0, %arg1 : i32, i32
  }
}

</mosaic_0001>

<llo_original>
// kernel: image_transformer_forward.14
$region0: #{image_transformer_forward.14}
  #allocation0 [shape = 'u32[]', space=smem, size = 0x4, offset = 0x4, fixed_abs, tag = 'smem constant byte address 0x4 - core index']
  #allocation1 [shape = 'u32[144,128]{1,0:T(1,128)}', space=vmem, size = 0x12000, scoped, tag = 'internal scratch']
  %s0 = inlined_call_operand.vmem [shape: f32[2,16,64], index: 0, kind: input, shape index: {}]
  %s1 = inlined_call_operand.vmem [shape: bf16[64,32], index: 1, kind: input, shape index: {}]
  %s2 = inlined_call_operand.vmem [shape: f32[1,32], index: 2, kind: input, shape index: {}]
  %s3 = inlined_call_operand.vmem [shape: f32[16,32], index: 3, kind: input, shape index: {}]
  %s4 = inlined_call_operand.vmem [shape: f32[1,32], index: 4, kind: input, shape index: {}]
  %s5 = inlined_call_operand.vmem [shape: f32[2,24,32], index: 5, kind: output, shape index: {}]
  %s6 = sld [smem:[#allocation0]]
  $region53: #{image_transformer_forward.14} parent=0
    _
  %s8 = ssub.s32 1, %s6
  %s9 = scalar_select 0, %s8, %s6
  loop: start=0, step=1, limit=4
  $region2: #{image_transformer_forward.14} parent=0 // loop_pre_header
    _
  $region3: #{image_transformer_forward.14} parent=0 // loop_header
    %s11 = sphi 0, %s15
    %p12 = scmp.ge.s32.totalorder %s11, 4
    %s18 = sphi 0, %s37
    %s19 = sphi 0, %s33
    %s20 = sphi 0, %s29
    %s21 = sphi 0, %s18
    %s22 = sphi 0, %s19
    %s23 = sphi 0, %s20
    %s24 = sphi 0, %s21
    %s25 = sphi 0, %s22
    %s26 = sphi 0, %s23
    %s42 = sphi 0, %s44
    %s45 = sphi 0, %s42
    %s46 = sphi 0, %s45
    %s62 = sphi 0, %s46
    %s70 = sphi 0, %s72
    %s73 = sphi 0, %s70
    %s74 = sphi 0, %s73
    %s90 = sphi 0, %s74
    %s96 = sphi 0, %s98
    %s99 = sphi 0, %s96
    %s100 = sphi 0, %s99
    %s116 = sphi 0, %s100
    %s122 = sphi 0, %s124
    %s125 = sphi 0, %s122
    %s126 = sphi 0, %s125
    %s142 = sphi 0, %s126
    %s148 = sphi 0, %s150
    %s151 = sphi 0, %s148
    %s152 = sphi 0, %s151
    %s168 = sphi 0, %s152
    %s176 = sphi 0, %s178
    %s179 = sphi 0, %s176
    %s180 = sphi 0, %s179
    %s196 = sphi 0, %s180
  $region4: #{image_transformer_forward.14} parent=0 // loop_header_branch
    %14 = sbr.rel (%p12) target = $region8
  $region5: #{image_transformer_forward.14} parent=0 // loop_body
    %s16 = ssub.s32 %s11, 1
    %s17 = ssub.s32 %s11, 2
    %s27 = sadd.s32 1, %s20
    %p28 = scmp.ge.s32.totalorder %s27, 1
    %s29 = scalar_select %p28, 0, %s27
    %s30 = sadd.s32 1, %s19
    %s31 = scalar_select %p28, %s30, %s19
    %p32 = scmp.ge.s32.totalorder %s31, 1
    %s33 = scalar_select %p32, 0, %s31
    %s34 = sadd.s32 1, %s18
    %s35 = scalar_select %p32, %s34, %s18
    %p36 = scmp.ge.s32.totalorder %s35, 2
    %s37 = scalar_select %p36, 0, %s35
    %s38 = ssub.s32 %s18, %s37
    %s39 = ssub.s32 %s20, %s29
    %s40 = sor.u32 %s38, %s39
    %p41 = scmp.eq.s32.totalorder %s40, 0
    %s43 = sadd.s32 %s42, 1
    %s44 = scalar_select %p41, %s42, %s43
    %p47 = pneg %p41
    %p48 = scmp.eq.s32.totalorder %s11, 1
    %p49 = por %p47, %p48
    %p50 = scmp.ne.s32.totalorder %s42, %s45
    %p51 = scmp.eq.s32.totalorder %s11, 0
    %p52 = por %p50, %p51
    %p53 = scmp.ne.s32.totalorder %s42, %s45
    %p54 = scmp.eq.s32.totalorder %s16, 1
    %p55 = por %p53, %p54
    %p56 = scmp.ne.s32.totalorder %s45, %s46
    %p57 = scmp.eq.s32.totalorder %s16, 0
    %p58 = por %p56, %p57
    %p59 = scmp.ne.s32.totalorder %s45, %s46
    %p60 = scmp.eq.s32.totalorder %s17, 1
    %p61 = por %p59, %p60
    %p63 = scmp.ne.s32.totalorder %s46, %s62
    %p64 = scmp.eq.s32.totalorder %s17, 0
    %p65 = por %p63, %p64
    %s66 = ssub.s32 %s20, %s29
    %s67 = ssub.s32 %s19, %s33
    %s68 = sor.u32 %s66, %s67
    %p69 = scmp.eq.s32.totalorder %s68, 0
    %s71 = sadd.s32 %s70, 1
    %s72 = scalar_select %p69, %s70, %s71
    %p75 = pneg %p69
    %p76 = scmp.eq.s32.totalorder %s11, 1
    %p77 = por %p75, %p76
    %p78 = scmp.ne.s32.totalorder %s70, %s73
    %p79 = scmp.eq.s32.totalorder %s11, 0
    %p80 = por %p78, %p79
    %p81 = scmp.ne.s32.totalorder %s70, %s73
    %p82 = scmp.eq.s32.totalorder %s16, 1
    %p83 = por %p81, %p82
    %p84 = scmp.ne.s32.totalorder %s73, %s74
    %p85 = scmp.eq.s32.totalorder %s16, 0
    %p86 = por %p84, %p85
    %p87 = scmp.ne.s32.totalorder %s73, %s74
    %p88 = scmp.eq.s32.totalorder %s17, 1
    %p89 = por %p87, %p88
    %p91 = scmp.ne.s32.totalorder %s74, %s90
    %p92 = scmp.eq.s32.totalorder %s17, 0
    %p93 = por %p91, %p92
    %s94 = ssub.s32 %s19, %s33
    %p95 = scmp.eq.s32.totalorder %s94, 0
    %s97 = sadd.s32 %s96, 1
    %s98 = scalar_select %p95, %s96, %s97
    %p101 = pneg %p95
    %p102 = scmp.eq.s32.totalorder %s11, 1
    %p103 = por %p101, %p102
    %p104 = scmp.ne.s32.totalorder %s96, %s99
    %p105 = scmp.eq.s32.totalorder %s11, 0
    %p106 = por %p104, %p105
    %p107 = scmp.ne.s32.totalorder %s96, %s99
    %p108 = scmp.eq.s32.totalorder %s16, 1
    %p109 = por %p107, %p108
    %p110 = scmp.ne.s32.totalorder %s99, %s100
    %p111 = scmp.eq.s32.totalorder %s16, 0
    %p112 = por %p110, %p111
    %p113 = scmp.ne.s32.totalorder %s99, %s100
    %p114 = scmp.eq.s32.totalorder %s17, 1
    %p115 = por %p113, %p114
    %p117 = scmp.ne.s32.totalorder %s100, %s116
    %p118 = scmp.eq.s32.totalorder %s17, 0
    %p119 = por %p117, %p118
    %s120 = ssub.s32 %s19, %s33
    %p121 = scmp.eq.s32.totalorder %s120, 0
    %s123 = sadd.s32 %s122, 1
    %s124 = scalar_select %p121, %s122, %s123
    %p127 = pneg %p121
    %p128 = scmp.eq.s32.totalorder %s11, 1
    %p129 = por %p127, %p128
    %p130 = scmp.ne.s32.totalorder %s122, %s125
    %p131 = scmp.eq.s32.totalorder %s11, 0
    %p132 = por %p130, %p131
    %p133 = scmp.ne.s32.totalorder %s122, %s125
    %p134 = scmp.eq.s32.totalorder %s16, 1
    %p135 = por %p133, %p134
    %p136 = scmp.ne.s32.totalorder %s125, %s126
    %p137 = scmp.eq.s32.totalorder %s16, 0
    %p138 = por %p136, %p137
    %p139 = scmp.ne.s32.totalorder %s125, %s126
    %p140 = scmp.eq.s32.totalorder %s17, 1
    %p141 = por %p139, %p140
    %p143 = scmp.ne.s32.totalorder %s126, %s142
    %p144 = scmp.eq.s32.totalorder %s17, 0
    %p145 = por %p143, %p144
    %s146 = ssub.s32 %s19, %s33
    %p147 = scmp.eq.s32.totalorder %s146, 0
    %s149 = sadd.s32 %s148, 1
    %s150 = scalar_select %p147, %s148, %s149
    %p153 = pneg %p147
    %p154 = scmp.eq.s32.totalorder %s11, 1
    %p155 = por %p153, %p154
    %p156 = scmp.ne.s32.totalorder %s148, %s151
    %p157 = scmp.eq.s32.totalorder %s11, 0
    %p158 = por %p156, %p157
    %p159 = scmp.ne.s32.totalorder %s148, %s151
    %p160 = scmp.eq.s32.totalorder %s16, 1
    %p161 = por %p159, %p160
    %p162 = scmp.ne.s32.totalorder %s151, %s152
    %p163 = scmp.eq.s32.totalorder %s16, 0
    %p164 = por %p162, %p163
    %p165 = scmp.ne.s32.totalorder %s151, %s152
    %p166 = scmp.eq.s32.totalorder %s17, 1
    %p167 = por %p165, %p166
    %p169 = scmp.ne.s32.totalorder %s152, %s168
    %p170 = scmp.eq.s32.totalorder %s17, 0
    %p171 = por %p169, %p170
    %s172 = ssub.s32 %s18, %s37
    %s173 = ssub.s32 %s19, %s33
    %s174 = sor.u32 %s172, %s173
    %p175 = scmp.eq.s32.totalorder %s174, 0
    %s177 = sadd.s32 %s176, 1
    %s178 = scalar_select %p175, %s176, %s177
    %p181 = pneg %p175
    %p182 = scmp.eq.s32.totalorder %s11, 1
    %p183 = por %p181, %p182
    %p184 = scmp.ne.s32.totalorder %s176, %s179
    %p185 = scmp.eq.s32.totalorder %s11, 0
    %p186 = por %p184, %p185
    %p187 = scmp.ne.s32.totalorder %s176, %s179
    %p188 = scmp.eq.s32.totalorder %s16, 1
    %p189 = por %p187, %p188
    %p190 = scmp.ne.s32.totalorder %s179, %s180
    %p191 = scmp.eq.s32.totalorder %s16, 0
    %p192 = por %p190, %p191
    %p193 = scmp.ne.s32.totalorder %s179, %s180
    %p194 = scmp.eq.s32.totalorder %s17, 1
    %p195 = por %p193, %p194
    %p197 = scmp.ne.s32.totalorder %s180, %s196
    %p198 = scmp.eq.s32.totalorder %s17, 0
    %p199 = por %p197, %p198
    %p200 = scmp.le.s32.totalorder 1, %s11
    %p201 = scmp.lt.s32.totalorder %s11, 3
    %p202 = pnand %p200, %p201
    %p203 = pneg %p202
    // Predicated region
    $region9: #{image_transformer_forward.14} parent=5 // pred_check
      _
    $region10: #{image_transformer_forward.14} parent=5 // pred_check_branch
      %205 = sbr.rel (%p202) target = $region12
    $region11: #{image_transformer_forward.14} parent=5 // pred_region
      %s206 = ssub.s32 %s11, 1
      // Predicated region
      $region13: #{image_transformer_forward.14} parent=11 // pred_check
        %p207 = pneg %p86
      $region14: #{image_transformer_forward.14} parent=11 // pred_check_branch
        %209 = sbr.rel (%p207) target = $region16
      $region15: #{image_transformer_forward.14} parent=11 // pred_region
        %s210 = smul.u32 8, %s23
        %p211 = scmp.lt.s32.totalorder %s210, 7
        %s212 = scalar_select %p211, %s210, 7
        %p213 = scmp.lt.s32.totalorder %s22, 0
        %s214 = scalar_select %p213, %s22, 0
        %s215 = sadd.s32 %s214, %s212
        %s216 = smul.addr %s215, 4
        %s217 = scalar_lea.vmem %s1, %s216
        %s218 = smul.u32 8, %s23
      $region16: #{image_transformer_forward.14} parent=11 // pred_fallthru
        _
      // Predicated region
      $region17: #{image_transformer_forward.14} parent=11 // pred_check
        %p219 = pneg %p112
      $region18: #{image_transformer_forward.14} parent=11 // pred_check_branch
        %221 = sbr.rel (%p219) target = $region20
      $region19: #{image_transformer_forward.14} parent=11 // pred_region
        %p222 = scmp.lt.s32.totalorder %s22, 0
        %s223 = scalar_select %p222, %s22, 0
        %s224 = scalar_lea.vmem %s2, %s223
      $region20: #{image_transformer_forward.14} parent=11 // pred_fallthru
        _
      // Predicated region
      $region21: #{image_transformer_forward.14} parent=11 // pred_check
        %p225 = pneg %p138
      $region22: #{image_transformer_forward.14} parent=11 // pred_check_branch
        %227 = sbr.rel (%p225) target = $region24
      $region23: #{image_transformer_forward.14} parent=11 // pred_region
        %p228 = scmp.lt.s32.totalorder %s22, 0
        %s229 = scalar_select %p228, %s22, 0
        %s230 = smul.addr %s229, 8
        %s231 = scalar_lea.vmem %s3, %s230
      $region24: #{image_transformer_forward.14} parent=11 // pred_fallthru
        _
      // Predicated region
      $region25: #{image_transformer_forward.14} parent=11 // pred_check
        %p232 = pneg %p164
      $region26: #{image_transformer_forward.14} parent=11 // pred_check_branch
        %234 = sbr.rel (%p232) target = $region28
      $region27: #{image_transformer_forward.14} parent=11 // pred_region
        %p235 = scmp.lt.s32.totalorder %s22, 0
        %s236 = scalar_select %p235, %s22, 0
        %s237 = scalar_lea.vmem %s4, %s236
      $region28: #{image_transformer_forward.14} parent=11 // pred_fallthru
        _
    $region12: #{image_transformer_forward.14} parent=5 // pred_fallthru
      _
    %p238 = scmp.lt.s32.totalorder %s11, 2
    // Predicated region
    $region29: #{image_transformer_forward.14} parent=5 // pred_check
      %p239 = pneg %p238
    $region30: #{image_transformer_forward.14} parent=5 // pred_check_branch
      %241 = sbr.rel (%p239) target = $region32
    $region31: #{image_transformer_forward.14} parent=5 // pred_region
      // Predicated region
      $region33: #{image_transformer_forward.14} parent=31 // pred_check
        %p242 = pneg %p52
      $region34: #{image_transformer_forward.14} parent=31 // pred_check_branch
        %244 = sbr.rel (%p242) target = $region36
      $region35: #{image_transformer_forward.14} parent=31 // pred_region
        %p245 = scmp.lt.s32.totalorder %s18, 1
        %s246 = scalar_select %p245, %s18, 1
        %p247 = scmp.lt.s32.totalorder %s20, 0
        %s248 = scalar_select %p247, %s20, 0
        %s249 = smul.addr %s246, 2
        %s250 = sadd.s32 %s248, %s249
        %s251 = smul.addr %s250, 8
        %s252 = scalar_lea.vmem %s0, %s251
      $region36: #{image_transformer_forward.14} parent=31 // pred_fallthru
        _
    $region32: #{image_transformer_forward.14} parent=5 // pred_fallthru
      _
    %p253 = scmp.le.s32.totalorder 1, %s11
    %p254 = scmp.lt.s32.totalorder %s11, 3
    %p255 = pnand %p253, %p254
    %p256 = pneg %p255
    // Predicated region
    $region37: #{image_transformer_forward.14} parent=5 // pred_check
      _
    $region38: #{image_transformer_forward.14} parent=5 // pred_check_branch
      %258 = sbr.rel (%p255) target = $region40
    $region39: #{image_transformer_forward.14} parent=5 // pred_region
      %s259 = ssub.s32 %s11, 1
      %p260 = scmp.lt.s32.totalorder %s21, 1
      %s261 = scalar_select %p260, %s21, 1
      %p262 = scmp.lt.s32.totalorder %s23, 0
      %s263 = scalar_select %p262, %s23, 0
      %s264 = smul.addr %s261, 2
      %s265 = sadd.s32 %s263, %s264
      %s266 = smul.addr %s265, 8
      %s267 = scalar_lea.vmem %s0, %s266
      %p268 = pneg %p58
      %p269 = pneg %p55
      %s270 = smul.u32 8, %s23
      %p271 = scmp.lt.s32.totalorder %s270, 7
      %s272 = scalar_select %p271, %s270, 7
      %p273 = scmp.lt.s32.totalorder %s22, 0
      %s274 = scalar_select %p273, %s22, 0
      %s275 = sadd.s32 %s274, %s272
      %s276 = smul.addr %s275, 4
      %s277 = scalar_lea.vmem %s1, %s276
      %p278 = pneg %p86
      %p279 = pneg %p83
      %p280 = scmp.lt.s32.totalorder %s22, 0
      %s281 = scalar_select %p280, %s22, 0
      %s282 = scalar_lea.vmem %s2, %s281
      %p283 = pneg %p112
      %p284 = pneg %p109
      %p285 = scmp.lt.s32.totalorder %s22, 0
      %s286 = scalar_select %p285, %s22, 0
      %s287 = smul.addr %s286, 8
      %s288 = scalar_lea.vmem %s3, %s287
      %p289 = pneg %p138
      %p290 = pneg %p135
      %p291 = scmp.lt.s32.totalorder %s22, 0
      %s292 = scalar_select %p291, %s22, 0
      %s293 = scalar_lea.vmem %s4, %s292
      %p294 = pneg %p164
      %p295 = pneg %p161
      %p296 = pneg %p192
      %p297 = pneg %p189
      %p298 = scmp.lt.s32.totalorder %s21, 1
      %s299 = scalar_select %p298, %s21, 1
      %p300 = scmp.lt.s32.totalorder %s22, 0
      %s301 = scalar_select %p300, %s22, 0
      %s302 = smul.addr %s299, 3
      %s303 = sadd.s32 %s301, %s302
      %s304 = smul.addr %s303, 8
      %s305 = scalar_lea.vmem %s5, %s304
      %p306 = scmp.lt.s32.totalorder %s21, 1
      %s307 = scalar_select %p306, %s21, 1
      %p308 = scmp.lt.s32.totalorder %s23, 0
      %s309 = scalar_select %p308, %s23, 0
      %s310 = smul.addr %s307, 2
      %s311 = sadd.s32 %s309, %s310
      %s312 = smul.addr %s311, 8
      %s313 = scalar_lea.vmem %s0, %s312
      %s314 = smul.u32 8, %s23
      %p315 = scmp.lt.s32.totalorder %s314, 7
      %s316 = scalar_select %p315, %s314, 7
      %p317 = scmp.lt.s32.totalorder %s22, 0
      %s318 = scalar_select %p317, %s22, 0
      %s319 = sadd.s32 %s318, %s316
      %s320 = smul.addr %s319, 4
      %s321 = scalar_lea.vmem %s1, %s320
      %s322 = smul.u32 8, %s23
      %p323 = scmp.lt.s32.totalorder %s22, 0
      %s324 = scalar_select %p323, %s22, 0
      %s325 = scalar_lea.vmem %s2, %s324
      %p326 = scmp.lt.s32.totalorder %s22, 0
      %s327 = scalar_select %p326, %s22, 0
      %s328 = smul.addr %s327, 8
      %s329 = scalar_lea.vmem %s3, %s328
      %p330 = scmp.lt.s32.totalorder %s22, 0
      %s331 = scalar_select %p330, %s22, 0
      %s332 = scalar_lea.vmem %s4, %s331
      %p333 = scmp.lt.s32.totalorder %s21, 1
      %s334 = scalar_select %p333, %s21, 1
      %p335 = scmp.lt.s32.totalorder %s22, 0
      %s336 = scalar_select %p335, %s22, 0
      %s337 = smul.addr %s334, 3
      %s338 = sadd.s32 %s336, %s337
      %s339 = smul.addr %s338, 8
      %s340 = scalar_lea.vmem %s5, %s339
      %v342 = vld [vmem:[%s313] sm:$0xff]
      %v343 = vld [vmem:[%s313 + $0x8] sm:$0xff]
      %v344 = vpack.c.bf16 %v343, %v342
      %v345 = vld [vmem:[%s321] sm:$0xf]
      %v346 = vld [vmem:[%s321 + $0x4] sm:$0xf]
      %v347 = vld [vmem:[%s321 + $0x8] sm:$0xf]
      %v348 = vld [vmem:[%s321 + $0xc] sm:$0xf]
      %v349 = vld [vmem:[%s321 + $0x10] sm:$0xf]
      %v350 = vld [vmem:[%s321 + $0x14] sm:$0xf]
      %v351 = vld [vmem:[%s321 + $0x18] sm:$0xf]
      %v352 = vld [vmem:[%s321 + $0x1c] sm:$0xf]
      %v353 = vld [vmem:[%s325] sm:$0x1]
      %v355 = vlaneseq
      %v356 = vshrl.u32 %v355, 7
      %v357 = vsub.s32 0, %v356
      %v358 = vrot.slane %v353, %v357
      %v368 = vunpack.c.l.b16 %v345
      %v369 = vunpack.c.l.b16 %v346
      %v370 = vunpack.c.l.b16 %v347
      %v371 = vunpack.c.l.b16 %v348
      %v372 = vunpack.c.l.b16 %v349
      %v373 = vunpack.c.l.b16 %v350
      %v374 = vunpack.c.l.b16 %v351
      %v375 = vunpack.c.l.b16 %v352
      %v376 = vpack.c.b16 %v369, %v368
      %v377 = vpack.c.b16 %v371, %v370
      %v378 = vpack.c.b16 %v373, %v372
      %v379 = vpack.c.b16 %v375, %v374
      %vm384 = vcmask 523264
      %v386 = vsel %vm384, %v344, 0
      %388 = vmatprep.subr.bf16.mxu0 0
      %389 = vmatpush1.bf16.msra.mxu0 %v376
      %390 = vmatprep.subr.bf16.mxu0 0
      %391 = vmatpush1.bf16.msra.mxu0 %v377
      %392 = vmatprep.subr.bf16.mxu0 0
      %393 = vmatpush1.bf16.msra.mxu0 %v378
      %394 = vmatprep.subr.bf16.mxu0 0
      %395 = vmatpush1.bf16.msra.mxu0 %v379
      %396 = vmatprep.subr.bf16.mxu0 0
      %397 = vmatpush1.bf16.msra.mxu0 0
      %398 = vmatprep.subr.bf16.mxu0 0
      %399 = vmatpush1.bf16.msra.mxu0 0
      %400 = vmatprep.subr.bf16.mxu0 0
      %401 = vmatpush1.bf16.msra.mxu0 0
      %402 = vmatprep.subr.bf16.mxu0 0
      %403 = vmatpush1.bf16.msra.mxu0 0
      %404 = vmatprep.subr.bf16.mxu0 0
      %405 = vmatpush1.bf16.msra.mxu0 0
      %406 = vmatprep.subr.bf16.mxu0 0
      %407 = vmatpush1.bf16.msra.mxu0 0
      %408 = vmatprep.subr.bf16.mxu0 0
      %409 = vmatpush1.bf16.msra.mxu0 0
      %410 = vmatprep.subr.bf16.mxu0 0
      %411 = vmatpush1.bf16.msra.mxu0 0
      %412 = vmatprep.subr.bf16.mxu0 0
      %413 = vmatpush1.bf16.msra.mxu0 0
      %414 = vmatprep.subr.bf16.mxu0 0
      %415 = vmatpush1.bf16.msra.mxu0 0
      %416 = vmatprep.subr.bf16.mxu0 0
      %417 = vmatpush1.bf16.msra.mxu0 0
      %418 = vmatprep.subr.bf16.mxu0 0
      %419 = vmatpush1.bf16.msra.mxu0 0
      %420 = vmatprep.mubr.bf16.mxu0 0
      %421 = vmatmul.mubr.bf16.gmra.mrb[0].mxu0 %v386
      %v422 = vpop.f32.mrb[0].mxu0
      %v423 = vadd.f32 %v358, %v422
      %v424 = vpop.f32.mrb[0].mxu0
      %v425 = vpop.f32.mrb[0].mxu0
      %v426 = vadd.f32 %v358, %v425
      %v427 = vpop.f32.mrb[0].mxu0
      %428 = vdwg.mxu0
      %v429 = vld [vmem:[%s329] sm:$0xff]
      %v430 = vld [vmem:[%s329 + $0x8] sm:$0xff]
      %v431 = vadd.f32 %v423, %v429
      %v432 = vadd.f32 %v426, %v430
      %v433 = vld [vmem:[%s332] sm:$0x1]
      %vm434 = vcmask 253952
      %435 = vst.msk [vmem:[%s340] sm:$0x1] %vm434, %v433
      %vm436 = vcmask 261120
      %437 = vst.msk [vmem:[%s340 + $0x1] sm:$0xff] %vm436, %v431
      %438 = vst.msk [vmem:[%s340 + $0x9] sm:$0xff] %vm436, %v432
      %vm439 = vcmask 260096
      %440 = vst.msk [vmem:[%s340 + $0x11] sm:$0x7f] %vm439, 0.0
      %p441 = scmp.lt.s32.totalorder %s21, 1
      %s442 = scalar_select %p441, %s21, 1
      %p443 = scmp.lt.s32.totalorder %s22, 0
      %s444 = scalar_select %p443, %s22, 0
      %s445 = smul.addr %s442, 3
      %s446 = sadd.s32 %s444, %s445
      %s447 = smul.addr %s446, 8
      %s448 = scalar_lea.vmem %s5, %s447
      // Predicated region
      $region41: #{image_transformer_forward.14} parent=39 // pred_check
        %p449 = pneg %p189
      $region42: #{image_transformer_forward.14} parent=39 // pred_check_branch
        %451 = sbr.rel (%p449) target = $region44
      $region43: #{image_transformer_forward.14} parent=39 // pred_region
        _
      $region44: #{image_transformer_forward.14} parent=39 // pred_fallthru
        _
    $region40: #{image_transformer_forward.14} parent=5 // pred_fallthru
      _
    %p452 = scmp.le.s32.totalorder 2, %s11
    // Predicated region
    $region45: #{image_transformer_forward.14} parent=5 // pred_check
      %p453 = pneg %p452
    $region46: #{image_transformer_forward.14} parent=5 // pred_check_branch
      %455 = sbr.rel (%p453) target = $region48
    $region47: #{image_transformer_forward.14} parent=5 // pred_region
      %s456 = ssub.s32 %s11, 2
      // Predicated region
      $region49: #{image_transformer_forward.14} parent=47 // pred_check
        %p457 = pneg %p195
      $region50: #{image_transformer_forward.14} parent=47 // pred_check_branch
        %459 = sbr.rel (%p457) target = $region52
      $region51: #{image_transformer_forward.14} parent=47 // pred_region
        %p460 = scmp.lt.s32.totalorder %s24, 1
        %s461 = scalar_select %p460, %s24, 1
        %p462 = scmp.lt.s32.totalorder %s25, 0
        %s463 = scalar_select %p462, %s25, 0
        %s464 = smul.addr %s461, 3
        %s465 = sadd.s32 %s463, %s464
        %s466 = smul.addr %s465, 8
        %s467 = scalar_lea.vmem %s5, %s466
      $region52: #{image_transformer_forward.14} parent=47 // pred_fallthru
        _
    $region48: #{image_transformer_forward.14} parent=5 // pred_fallthru
      _
  $region6: #{image_transformer_forward.14} parent=0 // loop_footer
    %s15 = sadd.s32 1, %s11
  $region7: #{image_transformer_forward.14} parent=0 // loop_footer_branch
    %10 = sbr.rel target = $region3
  $region8: #{image_transformer_forward.14} parent=0 // loop_exit
    _

// kernel: image_transformer_forward.16
$region0: #{image_transformer_forward.16}
  #allocation0 [shape = 'u32[]', space=smem, size = 0x4, offset = 0x4, fixed_abs, tag = 'smem constant byte address 0x4 - core index']
  #allocation1 [shape = 'u32[144,128]{1,0:T(1,128)}', space=vmem, size = 0x12000, scoped, tag = 'internal scratch']
  %s0 = inlined_call_operand.vmem [shape: bf16[48,32], index: 0, kind: input, shape index: {}]
  %s1 = inlined_call_operand.vmem [shape: bf16[32,96], index: 1, kind: input, shape index: {}]
  %s2 = inlined_call_operand.vmem [shape: f32[1,96], index: 2, kind: input, shape index: {}]
  %s3 = inlined_call_operand.vmem [shape: bf16[48,96], index: 3, kind: output, shape index: {}]
  %s4 = sld [smem:[#allocation0]]
  $region22: #{image_transformer_forward.16} parent=0
    _
  %s6 = ssub.s32 1, %s4
  %s7 = scalar_select 0, %s6, %s4
  // Predicated region
  $region2: #{image_transformer_forward.16} parent=0 // pred_check
    _
  $region3: #{image_transformer_forward.16} parent=0 // pred_check_branch
    %9 = sbr.rel (0) target = $region5
  $region4: #{image_transformer_forward.16} parent=0 // pred_region
    _
  $region5: #{image_transformer_forward.16} parent=0 // pred_fallthru
    _
  // Predicated region
  $region6: #{image_transformer_forward.16} parent=0 // pred_check
    _
  $region7: #{image_transformer_forward.16} parent=0 // pred_check_branch
    %11 = sbr.rel (0) target = $region9
  $region8: #{image_transformer_forward.16} parent=0 // pred_region
    _
  $region9: #{image_transformer_forward.16} parent=0 // pred_fallthru
    _
  // Predicated region
  $region10: #{image_transformer_forward.16} parent=0 // pred_check
    _
  $region11: #{image_transformer_forward.16} parent=0 // pred_check_branch
    %13 = sbr.rel (0) target = $region13
  $region12: #{image_transformer_forward.16} parent=0 // pred_region
    _
  $region13: #{image_transformer_forward.16} parent=0 // pred_fallthru
    _
  %v15 = vld [vmem:[%s0] sm:$0xf]
  %v16 = vld [vmem:[%s0 + $0x4] sm:$0xf]
  %v17 = vld [vmem:[%s0 + $0x8] sm:$0xf]
  %v18 = vld [vmem:[%s0 + $0xc] sm:$0xf]
  %v19 = vld [vmem:[%s0 + $0x10] sm:$0xf]
  %v20 = vld [vmem:[%s0 + $0x14] sm:$0xf]
  %v21 = vld [vmem:[%s1] sm:$0xf]
  %v22 = vld [vmem:[%s1 + $0x4] sm:$0xf]
  %v23 = vld [vmem:[%s1 + $0x8] sm:$0xf]
  %v24 = vld [vmem:[%s1 + $0xc] sm:$0xf]
  %v25 = vld [vmem:[%s2] sm:$0x1]
  %v27 = vlaneseq
  %v28 = vshrl.u32 %v27, 7
  %v29 = vsub.s32 0, %v28
  %v30 = vrot.slane %v25, %v29
  %v38 = vunpack.c.l.b16 %v15
  %v39 = vunpack.c.l.b16 %v16
  %v40 = vunpack.c.l.b16 %v17
  %v41 = vunpack.c.l.b16 %v18
  %v42 = vunpack.c.l.b16 %v19
  %v43 = vunpack.c.l.b16 %v20
  %v44 = vpack.c.b16 %v39, %v38
  %v45 = vpack.c.b16 %v41, %v40
  %v46 = vpack.c.b16 %v43, %v42
  %v51 = vunpack.c.l.b16 %v21
  %v52 = vunpack.c.l.b16 %v22
  %v53 = vunpack.c.l.b16 %v23
  %v54 = vunpack.c.l.b16 %v24
  %v55 = vpack.c.b16 %v52, %v51
  %v56 = vpack.c.b16 %v54, %v53
  %vm59 = vcmask 261120
  %v61 = vsel %vm59, %v44, 0
  %v64 = vsel %vm59, %v45, 0
  %v67 = vsel %vm59, %v46, 0
  %69 = vmatprep.subr.bf16.mxu0 0
  %70 = vmatpush1.bf16.msra.mxu0 %v55
  %71 = vmatprep.subr.bf16.mxu0 0
  %72 = vmatpush1.bf16.msra.mxu0 %v56
  %73 = vmatprep.subr.bf16.mxu0 0
  %74 = vmatpush1.bf16.msra.mxu0 0
  %75 = vmatprep.subr.bf16.mxu0 0
  %76 = vmatpush1.bf16.msra.mxu0 0
  %77 = vmatprep.subr.bf16.mxu0 0
  %78 = vmatpush1.bf16.msra.mxu0 0
  %79 = vmatprep.subr.bf16.mxu0 0
  %80 = vmatpush1.bf16.msra.mxu0 0
  %81 = vmatprep.subr.bf16.mxu0 0
  %82 = vmatpush1.bf16.msra.mxu0 0
  %83 = vmatprep.subr.bf16.mxu0 0
  %84 = vmatpush1.bf16.msra.mxu0 0
  %85 = vmatprep.subr.bf16.mxu0 0
  %86 = vmatpush1.bf16.msra.mxu0 0
  %87 = vmatprep.subr.bf16.mxu0 0
  %88 = vmatpush1.bf16.msra.mxu0 0
  %89 = vmatprep.subr.bf16.mxu0 0
  %90 = vmatpush1.bf16.msra.mxu0 0
  %91 = vmatprep.subr.bf16.mxu0 0
  %92 = vmatpush1.bf16.msra.mxu0 0
  %93 = vmatprep.subr.bf16.mxu0 0
  %94 = vmatpush1.bf16.msra.mxu0 0
  %95 = vmatprep.subr.bf16.mxu0 0
  %96 = vmatpush1.bf16.msra.mxu0 0
  %97 = vmatprep.subr.bf16.mxu0 0
  %98 = vmatpush1.bf16.msra.mxu0 0
  %99 = vmatprep.subr.bf16.mxu0 0
  %100 = vmatpush1.bf16.msra.mxu0 0
  %101 = vmatprep.mubr.bf16.mxu0 0
  %102 = vmatmul.mubr.bf16.gmra.mrb[0].mxu0 %v61
  %v103 = vpop.f32.mrb[0].mxu0
  %v104 = vadd.f32 %v30, %v103
  %v105 = vpop.f32.mrb[0].mxu0
  %v106 = vpop.f32.mrb[0].mxu0
  %v107 = vadd.f32 %v30, %v106
  %v108 = vpop.f32.mrb[0].mxu0
  %109 = vmatprep.mubr.bf16.mxu0 0
  %110 = vmatmul.mubr.bf16.gmra.mrb[0].mxu0 %v64
  %v111 = vpop.f32.mrb[0].mxu0
  %v112 = vadd.f32 %v30, %v111
  %v113 = vpop.f32.mrb[0].mxu0
  %v114 = vpop.f32.mrb[0].mxu0
  %v115 = vadd.f32 %v30, %v114
  %v116 = vpop.f32.mrb[0].mxu0
  %117 = vmatprep.mubr.bf16.mxu0 0
  %118 = vmatmul.mubr.bf16.gmra.mrb[0].mxu0 %v67
  %v119 = vpop.f32.mrb[0].mxu0
  %v120 = vadd.f32 %v30, %v119
  %v121 = vpop.f32.mrb[0].mxu0
  %v122 = vpop.f32.mrb[0].mxu0
  %v123 = vadd.f32 %v30, %v122
  %v124 = vpop.f32.mrb[0].mxu0
  %125 = vdwg.mxu0
  %v126 = vpack.c.bf16 %v107, %v104
  %v127 = vpack.c.bf16 %v115, %v112
  %v128 = vpack.c.bf16 %v123, %v120
  %v132 = vunpack.c.l.b16 %v126
  %v133 = vunpack.c.h.b16 %v126
  %v134 = vunpack.c.l.b16 %v127
  %v135 = vunpack.c.h.b16 %v127
  %v136 = vunpack.c.l.b16 %v128
  %v137 = vunpack.c.h.b16 %v128
  %v138 = vpack.c.b16 %v132, %v132
  %v139 = vpack.c.b16 %v133, %v133
  %v140 = vpack.c.b16 %v134, %v134
  %v141 = vpack.c.b16 %v135, %v135
  %v142 = vpack.c.b16 %v136, %v136
  %v143 = vpack.c.b16 %v137, %v137
  %vm150 = vcmask 781312
  %151 = vst.msk [vmem:[%s3] sm:$0xf] %vm150, %v138
  %152 = vst.msk [vmem:[%s3 + $0x4] sm:$0xf] %vm150, %v139
  %153 = vst.msk [vmem:[%s3 + $0x8] sm:$0xf] %vm150, %v140
  %154 = vst.msk [vmem:[%s3 + $0xc] sm:$0xf] %vm150, %v141
  %155 = vst.msk [vmem:[%s3 + $0x10] sm:$0xf] %vm150, %v142
  %156 = vst.msk [vmem:[%s3 + $0x14] sm:$0xf] %vm150, %v143
  // Predicated region
  $region14: #{image_transformer_forward.16} parent=0 // pred_check
    _
  $region15: #{image_transformer_forward.16} parent=0 // pred_check_branch
    %158 = sbr.rel (0) target = $region17
  $region16: #{image_transformer_forward.16} parent=0 // pred_region
    _
  $region17: #{image_transformer_forward.16} parent=0 // pred_fallthru
    _
  // Predicated region
  $region18: #{image_transformer_forward.16} parent=0 // pred_check
    _
  $region19: #{image_transformer_forward.16} parent=0 // pred_check_branch
    %160 = sbr.rel (0) target = $region21
  $region20: #{image_transformer_forward.16} parent=0 // pred_region
    _
  $region21: #{image_transformer_forward.16} parent=0 // pred_fallthru
    _

// kernel: image_transformer_forward.15
$region0: #{image_transformer_forward.15}
  #allocation0 [shape = 'u32[]', space=smem, size = 0x4, offset = 0x4, fixed_abs, tag = 'smem constant byte address 0x4 - core index']
  #allocation1 [shape = 'u32[144,128]{1,0:T(1,128)}', space=vmem, size = 0x12000, scoped, tag = 'internal scratch']
  %s0 = inlined_call_operand.vmem [shape: f32[48,32], index: 0, kind: input, shape index: {}]
  %s1 = inlined_call_operand.vmem [shape: f32[1,32], index: 1, kind: input, shape index: {}]
  %s2 = inlined_call_operand.vmem [shape: f32[1,32], index: 2, kind: input, shape index: {}]
  %s3 = inlined_call_operand.vmem [shape: bf16[48,32], index: 3, kind: output, shape index: {}]
  %s4 = sld [smem:[#allocation0]]
  $region22: #{image_transformer_forward.15} parent=0
    _
  %s6 = ssub.s32 1, %s4
  %s7 = scalar_select 0, %s6, %s4
  // Predicated region
  $region2: #{image_transformer_forward.15} parent=0 // pred_check
    _
  $region3: #{image_transformer_forward.15} parent=0 // pred_check_branch
    %9 = sbr.rel (0) target = $region5
  $region4: #{image_transformer_forward.15} parent=0 // pred_region
    _
  $region5: #{image_transformer_forward.15} parent=0 // pred_fallthru
    _
  // Predicated region
  $region6: #{image_transformer_forward.15} parent=0 // pred_check
    _
  $region7: #{image_transformer_forward.15} parent=0 // pred_check_branch
    %11 = sbr.rel (0) target = $region9
  $region8: #{image_transformer_forward.15} parent=0 // pred_region
    _
  $region9: #{image_transformer_forward.15} parent=0 // pred_fallthru
    _
  // Predicated region
  $region10: #{image_transformer_forward.15} parent=0 // pred_check
    _
  $region11: #{image_transformer_forward.15} parent=0 // pred_check_branch
    %13 = sbr.rel (0) target = $region13
  $region12: #{image_transformer_forward.15} parent=0 // pred_region
    _
  $region13: #{image_transformer_forward.15} parent=0 // pred_fallthru
    _
  %v14 = vld [vmem:[%s0] sm:$0xff]
  %v15 = vld [vmem:[%s0 + $0x8] sm:$0xff]
  %v16 = vld [vmem:[%s0 + $0x10] sm:$0xff]
  %v17 = vld [vmem:[%s0 + $0x18] sm:$0xff]
  %v18 = vld [vmem:[%s0 + $0x20] sm:$0xff]
  %v19 = vld [vmem:[%s0 + $0x28] sm:$0xff]
  %vm20 = vcmask 261120
  %v21 = vsel %vm20, %v14, 0.0
  %22 = vadd.xlane.f32.xlu0 %v21
  %v23 = vpop.xlane.xlu0 %22
  %v24 = vsel %vm20, %v15, 0.0
  %25 = vadd.xlane.f32.xlu0 %v24
  %v26 = vpop.xlane.xlu0 %25
  %v27 = vsel %vm20, %v16, 0.0
  %28 = vadd.xlane.f32.xlu0 %v27
  %v29 = vpop.xlane.xlu0 %28
  %v30 = vsel %vm20, %v17, 0.0
  %31 = vadd.xlane.f32.xlu0 %v30
  %v32 = vpop.xlane.xlu0 %31
  %v33 = vsel %vm20, %v18, 0.0
  %34 = vadd.xlane.f32.xlu0 %v33
  %v35 = vpop.xlane.xlu0 %34
  %v36 = vsel %vm20, %v19, 0.0
  %37 = vadd.xlane.f32.xlu0 %v36
  %v38 = vpop.xlane.xlu0 %37
  %v39 = vrcp.pop 32.0
  %v40 = vmul.f32 %v23, %v39
  %v41 = vmul.f32 %v26, %v39
  %v42 = vmul.f32 %v29, %v39
  %v43 = vmul.f32 %v32, %v39
  %v44 = vmul.f32 %v35, %v39
  %v45 = vmul.f32 %v38, %v39
  %v46 = vsub.f32 %v14, %v40
  %v47 = vsub.f32 %v15, %v41
  %v48 = vsub.f32 %v16, %v42
  %v49 = vsub.f32 %v17, %v43
  %v50 = vsub.f32 %v18, %v44
  %v51 = vsub.f32 %v19, %v45
  %v52 = vmul.f32 %v46, %v46
  %v53 = vmul.f32 %v47, %v47
  %v54 = vmul.f32 %v48, %v48
  %v55 = vmul.f32 %v49, %v49
  %v56 = vmul.f32 %v50, %v50
  %v57 = vmul.f32 %v51, %v51
  %v58 = vsel %vm20, %v52, 0.0
  %59 = vadd.xlane.f32.xlu0 %v58
  %v60 = vpop.xlane.xlu0 %59
  %v61 = vsel %vm20, %v53, 0.0
  %62 = vadd.xlane.f32.xlu0 %v61
  %v63 = vpop.xlane.xlu0 %62
  %v64 = vsel %vm20, %v54, 0.0
  %65 = vadd.xlane.f32.xlu0 %v64
  %v66 = vpop.xlane.xlu0 %65
  %v67 = vsel %vm20, %v55, 0.0
  %68 = vadd.xlane.f32.xlu0 %v67
  %v69 = vpop.xlane.xlu0 %68
  %v70 = vsel %vm20, %v56, 0.0
  %71 = vadd.xlane.f32.xlu0 %v70
  %v72 = vpop.xlane.xlu0 %71
  %v73 = vsel %vm20, %v57, 0.0
  %74 = vadd.xlane.f32.xlu0 %v73
  %v75 = vpop.xlane.xlu0 %74
  %v76 = vmul.f32 %v60, %v39
  %v77 = vmul.f32 %v63, %v39
  %v78 = vmul.f32 %v66, %v39
  %v79 = vmul.f32 %v69, %v39
  %v80 = vmul.f32 %v72, %v39
  %v81 = vmul.f32 %v75, %v39
  %v82 = vadd.f32 %v76, 1e-05
  %v83 = vadd.f32 %v77, 1e-05
  %v84 = vadd.f32 %v78, 1e-05
  %v85 = vadd.f32 %v79, 1e-05
  %v86 = vadd.f32 %v80, 1e-05
  %v87 = vadd.f32 %v81, 1e-05
  %v88 = vrsqrt.pop %v82
  %v89 = vrsqrt.pop %v83
  %v90 = vrsqrt.pop %v84
  %v91 = vrsqrt.pop %v85
  %v92 = vrsqrt.pop %v86
  %v93 = vrsqrt.pop %v87
  %v94 = vmul.f32 %v46, %v88
  %v95 = vmul.f32 %v47, %v89
  %v96 = vmul.f32 %v48, %v90
  %v97 = vmul.f32 %v49, %v91
  %v98 = vmul.f32 %v50, %v92
  %v99 = vmul.f32 %v51, %v93
  %v100 = vld [vmem:[%s1] sm:$0x1]
  %v102 = vlaneseq
  %v103 = vshrl.u32 %v102, 7
  %v104 = vsub.s32 0, %v103
  %v105 = vrot.slane %v100, %v104
  %v107 = vmul.f32 %v94, %v105
  %v108 = vmul.f32 %v95, %v105
  %v109 = vmul.f32 %v96, %v105
  %v110 = vmul.f32 %v97, %v105
  %v111 = vmul.f32 %v98, %v105
  %v112 = vmul.f32 %v99, %v105
  %v113 = vld [vmem:[%s2] sm:$0x1]
  %v115 = vlaneseq
  %v116 = vshrl.u32 %v115, 7
  %v117 = vsub.s32 0, %v116
  %v118 = vrot.slane %v113, %v117
  %v120 = vadd.f32 %v107, %v118
  %v121 = vadd.f32 %v108, %v118
  %v122 = vadd.f32 %v109, %v118
  %v123 = vadd.f32 %v110, %v118
  %v124 = vadd.f32 %v111, %v118
  %v125 = vadd.f32 %v112, %v118
  %v126 = vpack.c.bf16 %v121, %v120
  %v127 = vpack.c.bf16 %v123, %v122
  %v128 = vpack.c.bf16 %v125, %v124
  %v132 = vunpack.c.l.b16 %v126
  %v133 = vunpack.c.h.b16 %v126
  %v134 = vunpack.c.l.b16 %v127
  %v135 = vunpack.c.h.b16 %v127
  %v136 = vunpack.c.l.b16 %v128
  %v137 = vunpack.c.h.b16 %v128
  %v138 = vpack.c.b16 %v132, %v132
  %v139 = vpack.c.b16 %v133, %v133
  %v140 = vpack.c.b16 %v134, %v134
  %v141 = vpack.c.b16 %v135, %v135
  %v142 = vpack.c.b16 %v136, %v136
  %v143 = vpack.c.b16 %v137, %v137
  %vm150 = vcmask 257024
  %151 = vst.msk [vmem:[%s3] sm:$0xf] %vm150, %v138
  %152 = vst.msk [vmem:[%s3 + $0x4] sm:$0xf] %vm150, %v139
  %153 = vst.msk [vmem:[%s3 + $0x8] sm:$0xf] %vm150, %v140
  %154 = vst.msk [vmem:[%s3 + $0xc] sm:$0xf] %vm150, %v141
  %155 = vst.msk [vmem:[%s3 + $0x10] sm:$0xf] %vm150, %v142
  %156 = vst.msk [vmem:[%s3 + $0x14] sm:$0xf] %vm150, %v143
  // Predicated region
  $region14: #{image_transformer_forward.15} parent=0 // pred_check
    _
  $region15: #{image_transformer_forward.15} parent=0 // pred_check_branch
    %158 = sbr.rel (0) target = $region17
  $region16: #{image_transformer_forward.15} parent=0 // pred_region
    _
  $region17: #{image_transformer_forward.15} parent=0 // pred_fallthru
    _
  // Predicated region
  $region18: #{image_transformer_forward.15} parent=0 // pred_check
    _
  $region19: #{image_transformer_forward.15} parent=0 // pred_check_branch
    %160 = sbr.rel (0) target = $region21
  $region20: #{image_transformer_forward.15} parent=0 // pred_region
    _
  $region21: #{image_transformer_forward.15} parent=0 // pred_fallthru
    _

// kernel: image_transformer_forward.18
$region0: #{image_transformer_forward.18}
  #allocation0 [shape = 'u32[]', space=smem, size = 0x4, offset = 0x4, fixed_abs, tag = 'smem constant byte address 0x4 - core index']
  #allocation1 [shape = 'u32[144,128]{1,0:T(1,128)}', space=vmem, size = 0x12000, scoped, tag = 'internal scratch']
  %s0 = inlined_call_operand.vmem [shape: bf16[48,32], index: 0, kind: input, shape index: {}]
  %s1 = inlined_call_operand.vmem [shape: bf16[32,32], index: 1, kind: input, shape index: {}]
  %s2 = inlined_call_operand.vmem [shape: f32[1,32], index: 2, kind: input, shape index: {}]
  %s3 = inlined_call_operand.vmem [shape: f32[48,32], index: 3, kind: input, shape index: {}]
  %s4 = inlined_call_operand.vmem [shape: f32[1,32], index: 4, kind: input, shape index: {}]
  %s5 = inlined_call_operand.vmem [shape: f32[1,32], index: 5, kind: input, shape index: {}]
  %s6 = inlined_call_operand.vmem [shape: f32[48,32], index: 6, kind: output, shape index: {0}]
  %s7 = inlined_call_operand.vmem [shape: bf16[48,32], index: 7, kind: output, shape index: {1}]
  %8 = xla_tuple %s6, %s7
  %s9 = sld [smem:[#allocation0]]
  $region42: #{image_transformer_forward.18} parent=0
    _
  %s11 = ssub.s32 1, %s9
  %s12 = scalar_select 0, %s11, %s9
  // Predicated region
  $region2: #{image_transformer_forward.18} parent=0 // pred_check
    _
  $region3: #{image_transformer_forward.18} parent=0 // pred_check_branch
    %14 = sbr.rel (0) target = $region5
  $region4: #{image_transformer_forward.18} parent=0 // pred_region
    _
  $region5: #{image_transformer_forward.18} parent=0 // pred_fallthru
    _
  // Predicated region
  $region6: #{image_transformer_forward.18} parent=0 // pred_check
    _
  $region7: #{image_transformer_forward.18} parent=0 // pred_check_branch
    %16 = sbr.rel (0) target = $region9
  $region8: #{image_transformer_forward.18} parent=0 // pred_region
    _
  $region9: #{image_transformer_forward.18} parent=0 // pred_fallthru
    _
  // Predicated region
  $region10: #{image_transformer_forward.18} parent=0 // pred_check
    _
  $region11: #{image_transformer_forward.18} parent=0 // pred_check_branch
    %18 = sbr.rel (0) target = $region13
  $region12: #{image_transformer_forward.18} parent=0 // pred_region
    _
  $region13: #{image_transformer_forward.18} parent=0 // pred_fallthru
    _
  // Predicated region
  $region14: #{image_transformer_forward.18} parent=0 // pred_check
    _
  $region15: #{image_transformer_forward.18} parent=0 // pred_check_branch
    %20 = sbr.rel (0) target = $region17
  $region16: #{image_transformer_forward.18} parent=0 // pred_region
    _
  $region17: #{image_transformer_forward.18} parent=0 // pred_fallthru
    _
  // Predicated region
  $region18: #{image_transformer_forward.18} parent=0 // pred_check
    _
  $region19: #{image_transformer_forward.18} parent=0 // pred_check_branch
    %22 = sbr.rel (0) target = $region21
  $region20: #{image_transformer_forward.18} parent=0 // pred_region
    _
  $region21: #{image_transformer_forward.18} parent=0 // pred_fallthru
    _
  // Predicated region
  $region22: #{image_transformer_forward.18} parent=0 // pred_check
    _
  $region23: #{image_transformer_forward.18} parent=0 // pred_check_branch
    %24 = sbr.rel (0) target = $region25
  $region24: #{image_transformer_forward.18} parent=0 // pred_region
    _
  $region25: #{image_transformer_forward.18} parent=0 // pred_fallthru
    _
  %v26 = vld [vmem:[%s0] sm:$0xf]
  %v27 = vld [vmem:[%s0 + $0x4] sm:$0xf]
  %v28 = vld [vmem:[%s0 + $0x8] sm:$0xf]
  %v29 = vld [vmem:[%s0 + $0xc] sm:$0xf]
  %v30 = vld [vmem:[%s0 + $0x10] sm:$0xf]
  %v31 = vld [vmem:[%s0 + $0x14] sm:$0xf]
  %v32 = vld [vmem:[%s1] sm:$0xf]
  %v33 = vld [vmem:[%s1 + $0x4] sm:$0xf]
  %v34 = vld [vmem:[%s1 + $0x8] sm:$0xf]
  %v35 = vld [vmem:[%s1 + $0xc] sm:$0xf]
  %v36 = vld [vmem:[%s2] sm:$0x1]
  %v38 = vlaneseq
  %v39 = vshrl.u32 %v38, 7
  %v40 = vsub.s32 0, %v39
  %v41 = vrot.slane %v36, %v40
  %v49 = vunpack.c.l.b16 %v26
  %v50 = vunpack.c.l.b16 %v27
  %v51 = vunpack.c.l.b16 %v28
  %v52 = vunpack.c.l.b16 %v29
  %v53 = vunpack.c.l.b16 %v30
  %v54 = vunpack.c.l.b16 %v31
  %v55 = vpack.c.b16 %v50, %v49
  %v56 = vpack.c.b16 %v52, %v51
  %v57 = vpack.c.b16 %v54, %v53
  %v62 = vunpack.c.l.b16 %v32
  %v63 = vunpack.c.l.b16 %v33
  %v64 = vunpack.c.l.b16 %v34
  %v65 = vunpack.c.l.b16 %v35
  %v66 = vpack.c.b16 %v63, %v62
  %v67 = vpack.c.b16 %v65, %v64
  %vm70 = vcmask 261120
  %v72 = vsel %vm70, %v55, 0
  %v75 = vsel %vm70, %v56, 0
  %v78 = vsel %vm70, %v57, 0
  %80 = vmatprep.subr.bf16.mxu0 0
  %81 = vmatpush1.bf16.msra.mxu0 %v66
  %82 = vmatprep.subr.bf16.mxu0 0
  %83 = vmatpush1.bf16.msra.mxu0 %v67
  %84 = vmatprep.subr.bf16.mxu0 0
  %85 = vmatpush1.bf16.msra.mxu0 0
  %86 = vmatprep.subr.bf16.mxu0 0
  %87 = vmatpush1.bf16.msra.mxu0 0
  %88 = vmatprep.subr.bf16.mxu0 0
  %89 = vmatpush1.bf16.msra.mxu0 0
  %90 = vmatprep.subr.bf16.mxu0 0
  %91 = vmatpush1.bf16.msra.mxu0 0
  %92 = vmatprep.subr.bf16.mxu0 0
  %93 = vmatpush1.bf16.msra.mxu0 0
  %94 = vmatprep.subr.bf16.mxu0 0
  %95 = vmatpush1.bf16.msra.mxu0 0
  %96 = vmatprep.subr.bf16.mxu0 0
  %97 = vmatpush1.bf16.msra.mxu0 0
  %98 = vmatprep.subr.bf16.mxu0 0
  %99 = vmatpush1.bf16.msra.mxu0 0
  %100 = vmatprep.subr.bf16.mxu0 0
  %101 = vmatpush1.bf16.msra.mxu0 0
  %102 = vmatprep.subr.bf16.mxu0 0
  %103 = vmatpush1.bf16.msra.mxu0 0
  %104 = vmatprep.subr.bf16.mxu0 0
  %105 = vmatpush1.bf16.msra.mxu0 0
  %106 = vmatprep.subr.bf16.mxu0 0
  %107 = vmatpush1.bf16.msra.mxu0 0
  %108 = vmatprep.subr.bf16.mxu0 0
  %109 = vmatpush1.bf16.msra.mxu0 0
  %110 = vmatprep.subr.bf16.mxu0 0
  %111 = vmatpush1.bf16.msra.mxu0 0
  %112 = vmatprep.mubr.bf16.mxu0 0
  %113 = vmatmul.mubr.bf16.gmra.mrb[0].mxu0 %v72
  %v114 = vpop.f32.mrb[0].mxu0
  %v115 = vadd.f32 %v41, %v114
  %v116 = vpop.f32.mrb[0].mxu0
  %v117 = vpop.f32.mrb[0].mxu0
  %v118 = vadd.f32 %v41, %v117
  %v119 = vpop.f32.mrb[0].mxu0
  %120 = vmatprep.mubr.bf16.mxu0 0
  %121 = vmatmul.mubr.bf16.gmra.mrb[0].mxu0 %v75
  %v122 = vpop.f32.mrb[0].mxu0
  %v123 = vadd.f32 %v41, %v122
  %v124 = vpop.f32.mrb[0].mxu0
  %v125 = vpop.f32.mrb[0].mxu0
  %v126 = vadd.f32 %v41, %v125
  %v127 = vpop.f32.mrb[0].mxu0
  %128 = vmatprep.mubr.bf16.mxu0 0
  %129 = vmatmul.mubr.bf16.gmra.mrb[0].mxu0 %v78
  %v130 = vpop.f32.mrb[0].mxu0
  %v131 = vadd.f32 %v41, %v130
  %v132 = vpop.f32.mrb[0].mxu0
  %v133 = vpop.f32.mrb[0].mxu0
  %v134 = vadd.f32 %v41, %v133
  %v135 = vpop.f32.mrb[0].mxu0
  %136 = vdwg.mxu0
  %v137 = vld [vmem:[%s3] sm:$0xff]
  %v138 = vld [vmem:[%s3 + $0x8] sm:$0xff]
  %v139 = vld [vmem:[%s3 + $0x10] sm:$0xff]
  %v140 = vld [vmem:[%s3 + $0x18] sm:$0xff]
  %v141 = vld [vmem:[%s3 + $0x20] sm:$0xff]
  %v142 = vld [vmem:[%s3 + $0x28] sm:$0xff]
  %v143 = vadd.f32 %v115, %v137
  %v144 = vadd.f32 %v118, %v138
  %v145 = vadd.f32 %v123, %v139
  %v146 = vadd.f32 %v126, %v140
  %v147 = vadd.f32 %v131, %v141
  %v148 = vadd.f32 %v134, %v142
  %149 = vst.msk [vmem:[%s6] sm:$0xff] %vm70, %v143
  %150 = vst.msk [vmem:[%s6 + $0x8] sm:$0xff] %vm70, %v144
  %151 = vst.msk [vmem:[%s6 + $0x10] sm:$0xff] %vm70, %v145
  %152 = vst.msk [vmem:[%s6 + $0x18] sm:$0xff] %vm70, %v146
  %153 = vst.msk [vmem:[%s6 + $0x20] sm:$0xff] %vm70, %v147
  %154 = vst.msk [vmem:[%s6 + $0x28] sm:$0xff] %vm70, %v148
  %v155 = vsel %vm70, %v143, 0.0
  %156 = vadd.xlane.f32.xlu0 %v155
  %v157 = vpop.xlane.xlu0 %156
  %v158 = vsel %vm70, %v144, 0.0
  %159 = vadd.xlane.f32.xlu0 %v158
  %v160 = vpop.xlane.xlu0 %159
  %v161 = vsel %vm70, %v145, 0.0
  %162 = vadd.xlane.f32.xlu0 %v161
  %v163 = vpop.xlane.xlu0 %162
  %v164 = vsel %vm70, %v146, 0.0
  %165 = vadd.xlane.f32.xlu0 %v164
  %v166 = vpop.xlane.xlu0 %165
  %v167 = vsel %vm70, %v147, 0.0
  %168 = vadd.xlane.f32.xlu0 %v167
  %v169 = vpop.xlane.xlu0 %168
  %v170 = vsel %vm70, %v148, 0.0
  %171 = vadd.xlane.f32.xlu0 %v170
  %v172 = vpop.xlane.xlu0 %171
  %v173 = vrcp.pop 32.0
  %v174 = vmul.f32 %v157, %v173
  %v175 = vmul.f32 %v160, %v173
  %v176 = vmul.f32 %v163, %v173
  %v177 = vmul.f32 %v166, %v173
  %v178 = vmul.f32 %v169, %v173
  %v179 = vmul.f32 %v172, %v173
  %v180 = vsub.f32 %v143, %v174
  %v181 = vsub.f32 %v144, %v175
  %v182 = vsub.f32 %v145, %v176
  %v183 = vsub.f32 %v146, %v177
  %v184 = vsub.f32 %v147, %v178
  %v185 = vsub.f32 %v148, %v179
  %v186 = vmul.f32 %v180, %v180
  %v187 = vmul.f32 %v181, %v181
  %v188 = vmul.f32 %v182, %v182
  %v189 = vmul.f32 %v183, %v183
  %v190 = vmul.f32 %v184, %v184
  %v191 = vmul.f32 %v185, %v185
  %v192 = vsel %vm70, %v186, 0.0
  %193 = vadd.xlane.f32.xlu0 %v192
  %v194 = vpop.xlane.xlu0 %193
  %v195 = vsel %vm70, %v187, 0.0
  %196 = vadd.xlane.f32.xlu0 %v195
  %v197 = vpop.xlane.xlu0 %196
  %v198 = vsel %vm70, %v188, 0.0
  %199 = vadd.xlane.f32.xlu0 %v198
  %v200 = vpop.xlane.xlu0 %199
  %v201 = vsel %vm70, %v189, 0.0
  %202 = vadd.xlane.f32.xlu0 %v201
  %v203 = vpop.xlane.xlu0 %202
  %v204 = vsel %vm70, %v190, 0.0
  %205 = vadd.xlane.f32.xlu0 %v204
  %v206 = vpop.xlane.xlu0 %205
  %v207 = vsel %vm70, %v191, 0.0
  %208 = vadd.xlane.f32.xlu0 %v207
  %v209 = vpop.xlane.xlu0 %208
  %v210 = vmul.f32 %v194, %v173
  %v211 = vmul.f32 %v197, %v173
  %v212 = vmul.f32 %v200, %v173
  %v213 = vmul.f32 %v203, %v173
  %v214 = vmul.f32 %v206, %v173
  %v215 = vmul.f32 %v209, %v173
  %v216 = vadd.f32 %v210, 1e-05
  %v217 = vadd.f32 %v211, 1e-05
  %v218 = vadd.f32 %v212, 1e-05
  %v219 = vadd.f32 %v213, 1e-05
  %v220 = vadd.f32 %v214, 1e-05
  %v221 = vadd.f32 %v215, 1e-05
  %v222 = vrsqrt.pop %v216
  %v223 = vrsqrt.pop %v217
  %v224 = vrsqrt.pop %v218
  %v225 = vrsqrt.pop %v219
  %v226 = vrsqrt.pop %v220
  %v227 = vrsqrt.pop %v221
  %v228 = vmul.f32 %v180, %v222
  %v229 = vmul.f32 %v181, %v223
  %v230 = vmul.f32 %v182, %v224
  %v231 = vmul.f32 %v183, %v225
  %v232 = vmul.f32 %v184, %v226
  %v233 = vmul.f32 %v185, %v227
  %v234 = vld [vmem:[%s4] sm:$0x1]
  %v236 = vlaneseq
  %v237 = vshrl.u32 %v236, 7
  %v238 = vsub.s32 0, %v237
  %v239 = vrot.slane %v234, %v238
  %v241 = vmul.f32 %v228, %v239
  %v242 = vmul.f32 %v229, %v239
  %v243 = vmul.f32 %v230, %v239
  %v244 = vmul.f32 %v231, %v239
  %v245 = vmul.f32 %v232, %v239
  %v246 = vmul.f32 %v233, %v239
  %v247 = vld [vmem:[%s5] sm:$0x1]
  %v249 = vlaneseq
  %v250 = vshrl.u32 %v249, 7
  %v251 = vsub.s32 0, %v250
  %v252 = vrot.slane %v247, %v251
  %v254 = vadd.f32 %v241, %v252
  %v255 = vadd.f32 %v242, %v252
  %v256 = vadd.f32 %v243, %v252
  %v257 = vadd.f32 %v244, %v252
  %v258 = vadd.f32 %v245, %v252
  %v259 = vadd.f32 %v246, %v252
  %v260 = vpack.c.bf16 %v255, %v254
  %v261 = vpack.c.bf16 %v257, %v256
  %v262 = vpack.c.bf16 %v259, %v258
  %v266 = vunpack.c.l.b16 %v260
  %v267 = vunpack.c.h.b16 %v260
  %v268 = vunpack.c.l.b16 %v261
  %v269 = vunpack.c.h.b16 %v261
  %v270 = vunpack.c.l.b16 %v262
  %v271 = vunpack.c.h.b16 %v262
  %v272 = vpack.c.b16 %v266, %v266
  %v273 = vpack.c.b16 %v267, %v267
  %v274 = vpack.c.b16 %v268, %v268
  %v275 = vpack.c.b16 %v269, %v269
  %v276 = vpack.c.b16 %v270, %v270
  %v277 = vpack.c.b16 %v271, %v271
  %vm284 = vcmask 257024
  %285 = vst.msk [vmem:[%s7] sm:$0xf] %vm284, %v272
  %286 = vst.msk [vmem:[%s7 + $0x4] sm:$0xf] %vm284, %v273
  %287 = vst.msk [vmem:[%s7 + $0x8] sm:$0xf] %vm284, %v274
  %288 = vst.msk [vmem:[%s7 + $0xc] sm:$0xf] %vm284, %v275
  %289 = vst.msk [vmem:[%s7 + $0x10] sm:$0xf] %vm284, %v276
  %290 = vst.msk [vmem:[%s7 + $0x14] sm:$0xf] %vm284, %v277
  // Predicated region
  $region26: #{image_transformer_forward.18} parent=0 // pred_check
    _
  $region27: #{image_transformer_forward.18} parent=0 // pred_check_branch
    %292 = sbr.rel (0) target = $region29
  $region28: #{image_transformer_forward.18} parent=0 // pred_region
    _
  $region29: #{image_transformer_forward.18} parent=0 // pred_fallthru
    _
  // Predicated region
  $region30: #{image_transformer_forward.18} parent=0 // pred_check
    _
  $region31: #{image_transformer_forward.18} parent=0 // pred_check_branch
    %294 = sbr.rel (0) target = $region33
  $region32: #{image_transformer_forward.18} parent=0 // pred_region
    _
  $region33: #{image_transformer_forward.18} parent=0 // pred_fallthru
    _
  // Predicated region
  $region34: #{image_transformer_forward.18} parent=0 // pred_check
    _
  $region35: #{image_transformer_forward.18} parent=0 // pred_check_branch
    %296 = sbr.rel (0) target = $region37
  $region36: #{image_transformer_forward.18} parent=0 // pred_region
    _
  $region37: #{image_transformer_forward.18} parent=0 // pred_fallthru
    _
  // Predicated region
  $region38: #{image_transformer_forward.18} parent=0 // pred_check
    _
  $region39: #{image_transformer_forward.18} parent=0 // pred_check_branch
    %298 = sbr.rel (0) target = $region41
  $region40: #{image_transformer_forward.18} parent=0 // pred_region
    _
  $region41: #{image_transformer_forward.18} parent=0 // pred_fallthru
    _

// kernel: image_transformer_forward.20
$region0: #{image_transformer_forward.20}
  #allocation0 [shape = 'u32[]', space=smem, size = 0x4, offset = 0x4, fixed_abs, tag = 'smem constant byte address 0x4 - core index']
  #allocation1 [shape = 'u32[144,128]{1,0:T(1,128)}', space=vmem, size = 0x12000, scoped, tag = 'internal scratch']
  %s0 = inlined_call_operand.vmem [shape: bf16[48,64], index: 0, kind: input, shape index: {}]
  %s1 = inlined_call_operand.vmem [shape: bf16[64,32], index: 1, kind: input, shape index: {}]
  %s2 = inlined_call_operand.vmem [shape: f32[1,32], index: 2, kind: input, shape index: {}]
  %s3 = inlined_call_operand.vmem [shape: f32[48,32], index: 3, kind: input, shape index: {}]
  %s4 = inlined_call_operand.vmem [shape: f32[1,32], index: 4, kind: input, shape index: {}]
  %s5 = inlined_call_operand.vmem [shape: f32[1,32], index: 5, kind: input, shape index: {}]
  %s6 = inlined_call_operand.vmem [shape: f32[48,32], index: 6, kind: output, shape index: {0}]
  %s7 = inlined_call_operand.vmem [shape: bf16[48,32], index: 7, kind: output, shape index: {1}]
  %8 = xla_tuple %s6, %s7
  %s9 = sld [smem:[#allocation0]]
  $region42: #{image_transformer_forward.20} parent=0
    _
  %s11 = ssub.s32 1, %s9
  %s12 = scalar_select 0, %s11, %s9
  // Predicated region
  $region2: #{image_transformer_forward.20} parent=0 // pred_check
    _
  $region3: #{image_transformer_forward.20} parent=0 // pred_check_branch
    %14 = sbr.rel (0) target = $region5
  $region4: #{image_transformer_forward.20} parent=0 // pred_region
    _
  $region5: #{image_transformer_forward.20} parent=0 // pred_fallthru
    _
  // Predicated region
  $region6: #{image_transformer_forward.20} parent=0 // pred_check
    _
  $region7: #{image_transformer_forward.20} parent=0 // pred_check_branch
    %16 = sbr.rel (0) target = $region9
  $region8: #{image_transformer_forward.20} parent=0 // pred_region
    _
  $region9: #{image_transformer_forward.20} parent=0 // pred_fallthru
    _
  // Predicated region
  $region10: #{image_transformer_forward.20} parent=0 // pred_check
    _
  $region11: #{image_transformer_forward.20} parent=0 // pred_check_branch
    %18 = sbr.rel (0) target = $region13
  $region12: #{image_transformer_forward.20} parent=0 // pred_region
    _
  $region13: #{image_transformer_forward.20} parent=0 // pred_fallthru
    _
  // Predicated region
  $region14: #{image_transformer_forward.20} parent=0 // pred_check
    _
  $region15: #{image_transformer_forward.20} parent=0 // pred_check_branch
    %20 = sbr.rel (0) target = $region17
  $region16: #{image_transformer_forward.20} parent=0 // pred_region
    _
  $region17: #{image_transformer_forward.20} parent=0 // pred_fallthru
    _
  // Predicated region
  $region18: #{image_transformer_forward.20} parent=0 // pred_check
    _
  $region19: #{image_transformer_forward.20} parent=0 // pred_check_branch
    %22 = sbr.rel (0) target = $region21
  $region20: #{image_transformer_forward.20} parent=0 // pred_region
    _
  $region21: #{image_transformer_forward.20} parent=0 // pred_fallthru
    _
  // Predicated region
  $region22: #{image_transformer_forward.20} parent=0 // pred_check
    _
  $region23: #{image_transformer_forward.20} parent=0 // pred_check_branch
    %24 = sbr.rel (0) target = $region25
  $region24: #{image_transformer_forward.20} parent=0 // pred_region
    _
  $region25: #{image_transformer_forward.20} parent=0 // pred_fallthru
    _
  %v26 = vld [vmem:[%s0] sm:$0xf]
  %v27 = vld [vmem:[%s0 + $0x4] sm:$0xf]
  %v28 = vld [vmem:[%s0 + $0x8] sm:$0xf]
  %v29 = vld [vmem:[%s0 + $0xc] sm:$0xf]
  %v30 = vld [vmem:[%s0 + $0x10] sm:$0xf]
  %v31 = vld [vmem:[%s0 + $0x14] sm:$0xf]
  %v32 = vld [vmem:[%s1] sm:$0xf]
  %v33 = vld [vmem:[%s1 + $0x4] sm:$0xf]
  %v34 = vld [vmem:[%s1 + $0x8] sm:$0xf]
  %v35 = vld [vmem:[%s1 + $0xc] sm:$0xf]
  %v36 = vld [vmem:[%s1 + $0x10] sm:$0xf]
  %v37 = vld [vmem:[%s1 + $0x14] sm:$0xf]
  %v38 = vld [vmem:[%s1 + $0x18] sm:$0xf]
  %v39 = vld [vmem:[%s1 + $0x1c] sm:$0xf]
  %v40 = vld [vmem:[%s2] sm:$0x1]
  %v42 = vlaneseq
  %v43 = vshrl.u32 %v42, 7
  %v44 = vsub.s32 0, %v43
  %v45 = vrot.slane %v40, %v44
  %v53 = vunpack.c.l.b16 %v26
  %v54 = vunpack.c.l.b16 %v27
  %v55 = vunpack.c.l.b16 %v28
  %v56 = vunpack.c.l.b16 %v29
  %v57 = vunpack.c.l.b16 %v30
  %v58 = vunpack.c.l.b16 %v31
  %v59 = vpack.c.b16 %v54, %v53
  %v60 = vpack.c.b16 %v56, %v55
  %v61 = vpack.c.b16 %v58, %v57
  %v70 = vunpack.c.l.b16 %v32
  %v71 = vunpack.c.l.b16 %v33
  %v72 = vunpack.c.l.b16 %v34
  %v73 = vunpack.c.l.b16 %v35
  %v74 = vunpack.c.l.b16 %v36
  %v75 = vunpack.c.l.b16 %v37
  %v76 = vunpack.c.l.b16 %v38
  %v77 = vunpack.c.l.b16 %v39
  %v78 = vpack.c.b16 %v71, %v70
  %v79 = vpack.c.b16 %v73, %v72
  %v80 = vpack.c.b16 %v75, %v74
  %v81 = vpack.c.b16 %v77, %v76
  %vm86 = vcmask 523264
  %v88 = vsel %vm86, %v59, 0
  %v91 = vsel %vm86, %v60, 0
  %v94 = vsel %vm86, %v61, 0
  %96 = vmatprep.subr.bf16.mxu0 0
  %97 = vmatpush1.bf16.msra.mxu0 %v78
  %98 = vmatprep.subr.bf16.mxu0 0
  %99 = vmatpush1.bf16.msra.mxu0 %v79
  %100 = vmatprep.subr.bf16.mxu0 0
  %101 = vmatpush1.bf16.msra.mxu0 %v80
  %102 = vmatprep.subr.bf16.mxu0 0
  %103 = vmatpush1.bf16.msra.mxu0 %v81
  %104 = vmatprep.subr.bf16.mxu0 0
  %105 = vmatpush1.bf16.msra.mxu0 0
  %106 = vmatprep.subr.bf16.mxu0 0
  %107 = vmatpush1.bf16.msra.mxu0 0
  %108 = vmatprep.subr.bf16.mxu0 0
  %109 = vmatpush1.bf16.msra.mxu0 0
  %110 = vmatprep.subr.bf16.mxu0 0
  %111 = vmatpush1.bf16.msra.mxu0 0
  %112 = vmatprep.subr.bf16.mxu0 0
  %113 = vmatpush1.bf16.msra.mxu0 0
  %114 = vmatprep.subr.bf16.mxu0 0
  %115 = vmatpush1.bf16.msra.mxu0 0
  %116 = vmatprep.subr.bf16.mxu0 0
  %117 = vmatpush1.bf16.msra.mxu0 0
  %118 = vmatprep.subr.bf16.mxu0 0
  %119 = vmatpush1.bf16.msra.mxu0 0
  %120 = vmatprep.subr.bf16.mxu0 0
  %121 = vmatpush1.bf16.msra.mxu0 0
  %122 = vmatprep.subr.bf16.mxu0 0
  %123 = vmatpush1.bf16.msra.mxu0 0
  %124 = vmatprep.subr.bf16.mxu0 0
  %125 = vmatpush1.bf16.msra.mxu0 0
  %126 = vmatprep.subr.bf16.mxu0 0
  %127 = vmatpush1.bf16.msra.mxu0 0
  %128 = vmatprep.mubr.bf16.mxu0 0
  %129 = vmatmul.mubr.bf16.gmra.mrb[0].mxu0 %v88
  %v130 = vpop.f32.mrb[0].mxu0
  %v131 = vadd.f32 %v45, %v130
  %v132 = vpop.f32.mrb[0].mxu0
  %v133 = vpop.f32.mrb[0].mxu0
  %v134 = vadd.f32 %v45, %v133
  %v135 = vpop.f32.mrb[0].mxu0
  %136 = vmatprep.mubr.bf16.mxu0 0
  %137 = vmatmul.mubr.bf16.gmra.mrb[0].mxu0 %v91
  %v138 = vpop.f32.mrb[0].mxu0
  %v139 = vadd.f32 %v45, %v138
  %v140 = vpop.f32.mrb[0].mxu0
  %v141 = vpop.f32.mrb[0].mxu0
  %v142 = vadd.f32 %v45, %v141
  %v143 = vpop.f32.mrb[0].mxu0
  %144 = vmatprep.mubr.bf16.mxu0 0
  %145 = vmatmul.mubr.bf16.gmra.mrb[0].mxu0 %v94
  %v146 = vpop.f32.mrb[0].mxu0
  %v147 = vadd.f32 %v45, %v146
  %v148 = vpop.f32.mrb[0].mxu0
  %v149 = vpop.f32.mrb[0].mxu0
  %v150 = vadd.f32 %v45, %v149
  %v151 = vpop.f32.mrb[0].mxu0
  %152 = vdwg.mxu0
  %v153 = vld [vmem:[%s3] sm:$0xff]
  %v154 = vld [vmem:[%s3 + $0x8] sm:$0xff]
  %v155 = vld [vmem:[%s3 + $0x10] sm:$0xff]
  %v156 = vld [vmem:[%s3 + $0x18] sm:$0xff]
  %v157 = vld [vmem:[%s3 + $0x20] sm:$0xff]
  %v158 = vld [vmem:[%s3 + $0x28] sm:$0xff]
  %v159 = vadd.f32 %v131, %v153
  %v160 = vadd.f32 %v134, %v154
  %v161 = vadd.f32 %v139, %v155
  %v162 = vadd.f32 %v142, %v156
  %v163 = vadd.f32 %v147, %v157
  %v164 = vadd.f32 %v150, %v158
  %vm165 = vcmask 261120
  %166 = vst.msk [vmem:[%s6] sm:$0xff] %vm165, %v159
  %167 = vst.msk [vmem:[%s6 + $0x8] sm:$0xff] %vm165, %v160
  %168 = vst.msk [vmem:[%s6 + $0x10] sm:$0xff] %vm165, %v161
  %169 = vst.msk [vmem:[%s6 + $0x18] sm:$0xff] %vm165, %v162
  %170 = vst.msk [vmem:[%s6 + $0x20] sm:$0xff] %vm165, %v163
  %171 = vst.msk [vmem:[%s6 + $0x28] sm:$0xff] %vm165, %v164
  %v172 = vsel %vm165, %v159, 0.0
  %173 = vadd.xlane.f32.xlu0 %v172
  %v174 = vpop.xlane.xlu0 %173
  %v175 = vsel %vm165, %v160, 0.0
  %176 = vadd.xlane.f32.xlu0 %v175
  %v177 = vpop.xlane.xlu0 %176
  %v178 = vsel %vm165, %v161, 0.0
  %179 = vadd.xlane.f32.xlu0 %v178
  %v180 = vpop.xlane.xlu0 %179
  %v181 = vsel %vm165, %v162, 0.0
  %182 = vadd.xlane.f32.xlu0 %v181
  %v183 = vpop.xlane.xlu0 %182
  %v184 = vsel %vm165, %v163, 0.0
  %185 = vadd.xlane.f32.xlu0 %v184
  %v186 = vpop.xlane.xlu0 %185
  %v187 = vsel %vm165, %v164, 0.0
  %188 = vadd.xlane.f32.xlu0 %v187
  %v189 = vpop.xlane.xlu0 %188
  %v190 = vrcp.pop 32.0
  %v191 = vmul.f32 %v174, %v190
  %v192 = vmul.f32 %v177, %v190
  %v193 = vmul.f32 %v180, %v190
  %v194 = vmul.f32 %v183, %v190
  %v195 = vmul.f32 %v186, %v190
  %v196 = vmul.f32 %v189, %v190
  %v197 = vsub.f32 %v159, %v191
  %v198 = vsub.f32 %v160, %v192
  %v199 = vsub.f32 %v161, %v193
  %v200 = vsub.f32 %v162, %v194
  %v201 = vsub.f32 %v163, %v195
  %v202 = vsub.f32 %v164, %v196
  %v203 = vmul.f32 %v197, %v197
  %v204 = vmul.f32 %v198, %v198
  %v205 = vmul.f32 %v199, %v199
  %v206 = vmul.f32 %v200, %v200
  %v207 = vmul.f32 %v201, %v201
  %v208 = vmul.f32 %v202, %v202
  %v209 = vsel %vm165, %v203, 0.0
  %210 = vadd.xlane.f32.xlu0 %v209
  %v211 = vpop.xlane.xlu0 %210
  %v212 = vsel %vm165, %v204, 0.0
  %213 = vadd.xlane.f32.xlu0 %v212
  %v214 = vpop.xlane.xlu0 %213
  %v215 = vsel %vm165, %v205, 0.0
  %216 = vadd.xlane.f32.xlu0 %v215
  %v217 = vpop.xlane.xlu0 %216
  %v218 = vsel %vm165, %v206, 0.0
  %219 = vadd.xlane.f32.xlu0 %v218
  %v220 = vpop.xlane.xlu0 %219
  %v221 = vsel %vm165, %v207, 0.0
  %222 = vadd.xlane.f32.xlu0 %v221
  %v223 = vpop.xlane.xlu0 %222
  %v224 = vsel %vm165, %v208, 0.0
  %225 = vadd.xlane.f32.xlu0 %v224
  %v226 = vpop.xlane.xlu0 %225
  %v227 = vmul.f32 %v211, %v190
  %v228 = vmul.f32 %v214, %v190
  %v229 = vmul.f32 %v217, %v190
  %v230 = vmul.f32 %v220, %v190
  %v231 = vmul.f32 %v223, %v190
  %v232 = vmul.f32 %v226, %v190
  %v233 = vadd.f32 %v227, 1e-05
  %v234 = vadd.f32 %v228, 1e-05
  %v235 = vadd.f32 %v229, 1e-05
  %v236 = vadd.f32 %v230, 1e-05
  %v237 = vadd.f32 %v231, 1e-05
  %v238 = vadd.f32 %v232, 1e-05
  %v239 = vrsqrt.pop %v233
  %v240 = vrsqrt.pop %v234
  %v241 = vrsqrt.pop %v235
  %v242 = vrsqrt.pop %v236
  %v243 = vrsqrt.pop %v237
  %v244 = vrsqrt.pop %v238
  %v245 = vmul.f32 %v197, %v239
  %v246 = vmul.f32 %v198, %v240
  %v247 = vmul.f32 %v199, %v241
  %v248 = vmul.f32 %v200, %v242
  %v249 = vmul.f32 %v201, %v243
  %v250 = vmul.f32 %v202, %v244
  %v251 = vld [vmem:[%s4] sm:$0x1]
  %v253 = vlaneseq
  %v254 = vshrl.u32 %v253, 7
  %v255 = vsub.s32 0, %v254
  %v256 = vrot.slane %v251, %v255
  %v258 = vmul.f32 %v245, %v256
  %v259 = vmul.f32 %v246, %v256
  %v260 = vmul.f32 %v247, %v256
  %v261 = vmul.f32 %v248, %v256
  %v262 = vmul.f32 %v249, %v256
  %v263 = vmul.f32 %v250, %v256
  %v264 = vld [vmem:[%s5] sm:$0x1]
  %v266 = vlaneseq
  %v267 = vshrl.u32 %v266, 7
  %v268 = vsub.s32 0, %v267
  %v269 = vrot.slane %v264, %v268
  %v271 = vadd.f32 %v258, %v269
  %v272 = vadd.f32 %v259, %v269
  %v273 = vadd.f32 %v260, %v269
  %v274 = vadd.f32 %v261, %v269
  %v275 = vadd.f32 %v262, %v269
  %v276 = vadd.f32 %v263, %v269
  %v277 = vpack.c.bf16 %v272, %v271
  %v278 = vpack.c.bf16 %v274, %v273
  %v279 = vpack.c.bf16 %v276, %v275
  %v283 = vunpack.c.l.b16 %v277
  %v284 = vunpack.c.h.b16 %v277
  %v285 = vunpack.c.l.b16 %v278
  %v286 = vunpack.c.h.b16 %v278
  %v287 = vunpack.c.l.b16 %v279
  %v288 = vunpack.c.h.b16 %v279
  %v289 = vpack.c.b16 %v283, %v283
  %v290 = vpack.c.b16 %v284, %v284
  %v291 = vpack.c.b16 %v285, %v285
  %v292 = vpack.c.b16 %v286, %v286
  %v293 = vpack.c.b16 %v287, %v287
  %v294 = vpack.c.b16 %v288, %v288
  %vm301 = vcmask 257024
  %302 = vst.msk [vmem:[%s7] sm:$0xf] %vm301, %v289
  %303 = vst.msk [vmem:[%s7 + $0x4] sm:$0xf] %vm301, %v290
  %304 = vst.msk [vmem:[%s7 + $0x8] sm:$0xf] %vm301, %v291
  %305 = vst.msk [vmem:[%s7 + $0xc] sm:$0xf] %vm301, %v292
  %306 = vst.msk [vmem:[%s7 + $0x10] sm:$0xf] %vm301, %v293
  %307 = vst.msk [vmem:[%s7 + $0x14] sm:$0xf] %vm301, %v294
  // Predicated region
  $region26: #{image_transformer_forward.20} parent=0 // pred_check
    _
  $region27: #{image_transformer_forward.20} parent=0 // pred_check_branch
    %309 = sbr.rel (0) target = $region29
  $region28: #{image_transformer_forward.20} parent=0 // pred_region
    _
  $region29: #{image_transformer_forward.20} parent=0 // pred_fallthru
    _
  // Predicated region
  $region30: #{image_transformer_forward.20} parent=0 // pred_check
    _
  $region31: #{image_transformer_forward.20} parent=0 // pred_check_branch
    %311 = sbr.rel (0) target = $region33
  $region32: #{image_transformer_forward.20} parent=0 // pred_region
    _
  $region33: #{image_transformer_forward.20} parent=0 // pred_fallthru
    _
  // Predicated region
  $region34: #{image_transformer_forward.20} parent=0 // pred_check
    _
  $region35: #{image_transformer_forward.20} parent=0 // pred_check_branch
    %313 = sbr.rel (0) target = $region37
  $region36: #{image_transformer_forward.20} parent=0 // pred_region
    _
  $region37: #{image_transformer_forward.20} parent=0 // pred_fallthru
    _
  // Predicated region
  $region38: #{image_transformer_forward.20} parent=0 // pred_check
    _
  $region39: #{image_transformer_forward.20} parent=0 // pred_check_branch
    %315 = sbr.rel (0) target = $region41
  $region40: #{image_transformer_forward.20} parent=0 // pred_region
    _
  $region41: #{image_transformer_forward.20} parent=0 // pred_fallthru
    _

// kernel: image_transformer_forward.19
$region0: #{image_transformer_forward.19}
  #allocation0 [shape = 'u32[]', space=smem, size = 0x4, offset = 0x4, fixed_abs, tag = 'smem constant byte address 0x4 - core index']
  #allocation1 [shape = 'u32[144,128]{1,0:T(1,128)}', space=vmem, size = 0x12000, scoped, tag = 'internal scratch']
  %s0 = inlined_call_operand.vmem [shape: bf16[48,32], index: 0, kind: input, shape index: {}]
  %s1 = inlined_call_operand.vmem [shape: bf16[32,64], index: 1, kind: input, shape index: {}]
  %s2 = inlined_call_operand.vmem [shape: f32[1,64], index: 2, kind: input, shape index: {}]
  %s3 = inlined_call_operand.vmem [shape: bf16[48,64], index: 3, kind: output, shape index: {}]
  %s4 = sld [smem:[#allocation0]]
  $region22: #{image_transformer_forward.19} parent=0
    _
  %s6 = ssub.s32 1, %s4
  %s7 = scalar_select 0, %s6, %s4
  // Predicated region
  $region2: #{image_transformer_forward.19} parent=0 // pred_check
    _
  $region3: #{image_transformer_forward.19} parent=0 // pred_check_branch
    %9 = sbr.rel (0) target = $region5
  $region4: #{image_transformer_forward.19} parent=0 // pred_region
    _
  $region5: #{image_transformer_forward.19} parent=0 // pred_fallthru
    _
  // Predicated region
  $region6: #{image_transformer_forward.19} parent=0 // pred_check
    _
  $region7: #{image_transformer_forward.19} parent=0 // pred_check_branch
    %11 = sbr.rel (0) target = $region9
  $region8: #{image_transformer_forward.19} parent=0 // pred_region
    _
  $region9: #{image_transformer_forward.19} parent=0 // pred_fallthru
    _
  // Predicated region
  $region10: #{image_transformer_forward.19} parent=0 // pred_check
    _
  $region11: #{image_transformer_forward.19} parent=0 // pred_check_branch
    %13 = sbr.rel (0) target = $region13
  $region12: #{image_transformer_forward.19} parent=0 // pred_region
    _
  $region13: #{image_transformer_forward.19} parent=0 // pred_fallthru
    _
  %v15 = vld [vmem:[%s0] sm:$0xf]
  %v16 = vld [vmem:[%s0 + $0x4] sm:$0xf]
  %v17 = vld [vmem:[%s0 + $0x8] sm:$0xf]
  %v18 = vld [vmem:[%s0 + $0xc] sm:$0xf]
  %v19 = vld [vmem:[%s0 + $0x10] sm:$0xf]
  %v20 = vld [vmem:[%s0 + $0x14] sm:$0xf]
  %v21 = vld [vmem:[%s1] sm:$0xf]
  %v22 = vld [vmem:[%s1 + $0x4] sm:$0xf]
  %v23 = vld [vmem:[%s1 + $0x8] sm:$0xf]
  %v24 = vld [vmem:[%s1 + $0xc] sm:$0xf]
  %v25 = vld [vmem:[%s2] sm:$0x1]
  %v27 = vlaneseq
  %v28 = vshrl.u32 %v27, 7
  %v29 = vsub.s32 0, %v28
  %v30 = vrot.slane %v25, %v29
  %v38 = vunpack.c.l.b16 %v15
  %v39 = vunpack.c.l.b16 %v16
  %v40 = vunpack.c.l.b16 %v17
  %v41 = vunpack.c.l.b16 %v18
  %v42 = vunpack.c.l.b16 %v19
  %v43 = vunpack.c.l.b16 %v20
  %v44 = vpack.c.b16 %v39, %v38
  %v45 = vpack.c.b16 %v41, %v40
  %v46 = vpack.c.b16 %v43, %v42
  %v51 = vunpack.c.l.b16 %v21
  %v52 = vunpack.c.l.b16 %v22
  %v53 = vunpack.c.l.b16 %v23
  %v54 = vunpack.c.l.b16 %v24
  %v55 = vpack.c.b16 %v52, %v51
  %v56 = vpack.c.b16 %v54, %v53
  %vm59 = vcmask 261120
  %v61 = vsel %vm59, %v44, 0
  %v64 = vsel %vm59, %v45, 0
  %v67 = vsel %vm59, %v46, 0
  %69 = vmatprep.subr.bf16.mxu0 0
  %70 = vmatpush1.bf16.msra.mxu0 %v55
  %71 = vmatprep.subr.bf16.mxu0 0
  %72 = vmatpush1.bf16.msra.mxu0 %v56
  %73 = vmatprep.subr.bf16.mxu0 0
  %74 = vmatpush1.bf16.msra.mxu0 0
  %75 = vmatprep.subr.bf16.mxu0 0
  %76 = vmatpush1.bf16.msra.mxu0 0
  %77 = vmatprep.subr.bf16.mxu0 0
  %78 = vmatpush1.bf16.msra.mxu0 0
  %79 = vmatprep.subr.bf16.mxu0 0
  %80 = vmatpush1.bf16.msra.mxu0 0
  %81 = vmatprep.subr.bf16.mxu0 0
  %82 = vmatpush1.bf16.msra.mxu0 0
  %83 = vmatprep.subr.bf16.mxu0 0
  %84 = vmatpush1.bf16.msra.mxu0 0
  %85 = vmatprep.subr.bf16.mxu0 0
  %86 = vmatpush1.bf16.msra.mxu0 0
  %87 = vmatprep.subr.bf16.mxu0 0
  %88 = vmatpush1.bf16.msra.mxu0 0
  %89 = vmatprep.subr.bf16.mxu0 0
  %90 = vmatpush1.bf16.msra.mxu0 0
  %91 = vmatprep.subr.bf16.mxu0 0
  %92 = vmatpush1.bf16.msra.mxu0 0
  %93 = vmatprep.subr.bf16.mxu0 0
  %94 = vmatpush1.bf16.msra.mxu0 0
  %95 = vmatprep.subr.bf16.mxu0 0
  %96 = vmatpush1.bf16.msra.mxu0 0
  %97 = vmatprep.subr.bf16.mxu0 0
  %98 = vmatpush1.bf16.msra.mxu0 0
  %99 = vmatprep.subr.bf16.mxu0 0
  %100 = vmatpush1.bf16.msra.mxu0 0
  %101 = vmatprep.mubr.bf16.mxu0 0
  %102 = vmatmul.mubr.bf16.gmra.mrb[0].mxu0 %v61
  %v103 = vpop.f32.mrb[0].mxu0
  %v104 = vadd.f32 %v30, %v103
  %v105 = vpop.f32.mrb[0].mxu0
  %v106 = vpop.f32.mrb[0].mxu0
  %v107 = vadd.f32 %v30, %v106
  %v108 = vpop.f32.mrb[0].mxu0
  %109 = vmatprep.mubr.bf16.mxu0 0
  %110 = vmatmul.mubr.bf16.gmra.mrb[0].mxu0 %v64
  %v111 = vpop.f32.mrb[0].mxu0
  %v112 = vadd.f32 %v30, %v111
  %v113 = vpop.f32.mrb[0].mxu0
  %v114 = vpop.f32.mrb[0].mxu0
  %v115 = vadd.f32 %v30, %v114
  %v116 = vpop.f32.mrb[0].mxu0
  %117 = vmatprep.mubr.bf16.mxu0 0
  %118 = vmatmul.mubr.bf16.gmra.mrb[0].mxu0 %v67
  %v119 = vpop.f32.mrb[0].mxu0
  %v120 = vadd.f32 %v30, %v119
  %v121 = vpop.f32.mrb[0].mxu0
  %v122 = vpop.f32.mrb[0].mxu0
  %v123 = vadd.f32 %v30, %v122
  %v124 = vpop.f32.mrb[0].mxu0
  %125 = vdwg.mxu0
  %v126 = vmul.f32 %v104, 0.5
  %v127 = vmul.f32 %v107, 0.5
  %v128 = vmul.f32 %v112, 0.5
  %v129 = vmul.f32 %v115, 0.5
  %v130 = vmul.f32 %v120, 0.5
  %v131 = vmul.f32 %v123, 0.5
  %v132 = vmul.f32 %v104, 0.70710677
  %v133 = vmul.f32 %v107, 0.70710677
  %v134 = vmul.f32 %v112, 0.70710677
  %v135 = vmul.f32 %v115, 0.70710677
  %v136 = vmul.f32 %v120, 0.70710677
  %v137 = vmul.f32 %v123, 0.70710677
  %v138 = verf.f32.pop %v132
  %v139 = verf.f32.pop %v133
  %v140 = verf.f32.pop %v134
  %v141 = verf.f32.pop %v135
  %v142 = verf.f32.pop %v136
  %v143 = verf.f32.pop %v137
  %v144 = vadd.f32 %v138, 1.0
  %v145 = vadd.f32 %v139, 1.0
  %v146 = vadd.f32 %v140, 1.0
  %v147 = vadd.f32 %v141, 1.0
  %v148 = vadd.f32 %v142, 1.0
  %v149 = vadd.f32 %v143, 1.0
  %v150 = vmul.f32 %v126, %v144
  %v151 = vmul.f32 %v127, %v145
  %v152 = vmul.f32 %v128, %v146
  %v153 = vmul.f32 %v129, %v147
  %v154 = vmul.f32 %v130, %v148
  %v155 = vmul.f32 %v131, %v149
  %v156 = vpack.c.bf16 %v151, %v150
  %v157 = vpack.c.bf16 %v153, %v152
  %v158 = vpack.c.bf16 %v155, %v154
  %v162 = vunpack.c.l.b16 %v156
  %v163 = vunpack.c.h.b16 %v156
  %v164 = vunpack.c.l.b16 %v157
  %v165 = vunpack.c.h.b16 %v157
  %v166 = vunpack.c.l.b16 %v158
  %v167 = vunpack.c.h.b16 %v158
  %v168 = vpack.c.b16 %v162, %v162
  %v169 = vpack.c.b16 %v163, %v163
  %v170 = vpack.c.b16 %v164, %v164
  %v171 = vpack.c.b16 %v165, %v165
  %v172 = vpack.c.b16 %v166, %v166
  %v173 = vpack.c.b16 %v167, %v167
  %vm180 = vcmask 519168
  %181 = vst.msk [vmem:[%s3] sm:$0xf] %vm180, %v168
  %182 = vst.msk [vmem:[%s3 + $0x4] sm:$0xf] %vm180, %v169
  %183 = vst.msk [vmem:[%s3 + $0x8] sm:$0xf] %vm180, %v170
  %184 = vst.msk [vmem:[%s3 + $0xc] sm:$0xf] %vm180, %v171
  %185 = vst.msk [vmem:[%s3 + $0x10] sm:$0xf] %vm180, %v172
  %186 = vst.msk [vmem:[%s3 + $0x14] sm:$0xf] %vm180, %v173
  // Predicated region
  $region14: #{image_transformer_forward.19} parent=0 // pred_check
    _
  $region15: #{image_transformer_forward.19} parent=0 // pred_check_branch
    %188 = sbr.rel (0) target = $region17
  $region16: #{image_transformer_forward.19} parent=0 // pred_region
    _
  $region17: #{image_transformer_forward.19} parent=0 // pred_fallthru
    _
  // Predicated region
  $region18: #{image_transformer_forward.19} parent=0 // pred_check
    _
  $region19: #{image_transformer_forward.19} parent=0 // pred_check_branch
    %190 = sbr.rel (0) target = $region21
  $region20: #{image_transformer_forward.19} parent=0 // pred_region
    _
  $region21: #{image_transformer_forward.19} parent=0 // pred_fallthru
    _

// kernel: image_transformer_forward.17
$region0: #{image_transformer_forward.17}
  #allocation0 [shape = 'u32[]', space=smem, size = 0x4, offset = 0x4, fixed_abs, tag = 'smem constant byte address 0x4 - core index']
  #allocation1 [shape = 'u32[144,128]{1,0:T(1,128)}', space=vmem, size = 0x12000, scoped, tag = 'internal scratch']
  %s0 = inlined_call_operand.vmem [shape: bf16[2,24,96], index: 0, kind: input, shape index: {}]
  %s1 = inlined_call_operand.vmem [shape: bf16[2,24,32], index: 1, kind: output, shape index: {0}]
  %s2 = inlined_call_operand.vmem [shape: bf16[2,4,24,24], index: 2, kind: output, shape index: {1}]
  %3 = xla_tuple %s1, %s2
  %s4 = sld [smem:[#allocation0]]
  $region45: #{image_transformer_forward.17} parent=0
    _
  %s6 = ssub.s32 1, %s4
  %s7 = scalar_select 0, %s6, %s4
  loop: start=0, step=1, limit=4
  $region2: #{image_transformer_forward.17} parent=0 // loop_pre_header
    _
  $region3: #{image_transformer_forward.17} parent=0 // loop_header
    %s9 = sphi 0, %s13
    %p10 = scmp.ge.s32.totalorder %s9, 4
    %s19 = sphi 0, %s21
    %s22 = sphi 0, %s19
    %s23 = sphi 0, %s22
    %s39 = sphi 0, %s23
    %s45 = sphi 0, %s47
    %s48 = sphi 0, %s45
    %s49 = sphi 0, %s48
    %s65 = sphi 0, %s49
    %s71 = sphi 0, %s73
    %s74 = sphi 0, %s71
    %s75 = sphi 0, %s74
    %s91 = sphi 0, %s75
  $region4: #{image_transformer_forward.17} parent=0 // loop_header_branch
    %12 = sbr.rel (%p10) target = $region8
  $region5: #{image_transformer_forward.17} parent=0 // loop_body
    %s14 = ssub.s32 %s9, 1
    %s15 = ssub.s32 %s9, 2
    %s16 = sadd.s32 %s9, 1
    %s17 = ssub.s32 %s9, %s16
    %p18 = scmp.eq.s32.totalorder %s17, 0
    %s20 = sadd.s32 %s19, 1
    %s21 = scalar_select %p18, %s19, %s20
    %p24 = pneg %p18
    %p25 = scmp.eq.s32.totalorder %s9, 1
    %p26 = por %p24, %p25
    %p27 = scmp.ne.s32.totalorder %s19, %s22
    %p28 = scmp.eq.s32.totalorder %s9, 0
    %p29 = por %p27, %p28
    %p30 = scmp.ne.s32.totalorder %s19, %s22
    %p31 = scmp.eq.s32.totalorder %s14, 1
    %p32 = por %p30, %p31
    %p33 = scmp.ne.s32.totalorder %s22, %s23
    %p34 = scmp.eq.s32.totalorder %s14, 0
    %p35 = por %p33, %p34
    %p36 = scmp.ne.s32.totalorder %s22, %s23
    %p37 = scmp.eq.s32.totalorder %s15, 1
    %p38 = por %p36, %p37
    %p40 = scmp.ne.s32.totalorder %s23, %s39
    %p41 = scmp.eq.s32.totalorder %s15, 0
    %p42 = por %p40, %p41
    %s43 = ssub.s32 %s9, %s16
    %p44 = scmp.eq.s32.totalorder %s43, 0
    %s46 = sadd.s32 %s45, 1
    %s47 = scalar_select %p44, %s45, %s46
    %p50 = pneg %p44
    %p51 = scmp.eq.s32.totalorder %s9, 1
    %p52 = por %p50, %p51
    %p53 = scmp.ne.s32.totalorder %s45, %s48
    %p54 = scmp.eq.s32.totalorder %s9, 0
    %p55 = por %p53, %p54
    %p56 = scmp.ne.s32.totalorder %s45, %s48
    %p57 = scmp.eq.s32.totalorder %s14, 1
    %p58 = por %p56, %p57
    %p59 = scmp.ne.s32.totalorder %s48, %s49
    %p60 = scmp.eq.s32.totalorder %s14, 0
    %p61 = por %p59, %p60
    %p62 = scmp.ne.s32.totalorder %s48, %s49
    %p63 = scmp.eq.s32.totalorder %s15, 1
    %p64 = por %p62, %p63
    %p66 = scmp.ne.s32.totalorder %s49, %s65
    %p67 = scmp.eq.s32.totalorder %s15, 0
    %p68 = por %p66, %p67
    %s69 = ssub.s32 %s9, %s16
    %p70 = scmp.eq.s32.totalorder %s69, 0
    %s72 = sadd.s32 %s71, 1
    %s73 = scalar_select %p70, %s71, %s72
    %p76 = pneg %p70
    %p77 = scmp.eq.s32.totalorder %s9, 1
    %p78 = por %p76, %p77
    %p79 = scmp.ne.s32.totalorder %s71, %s74
    %p80 = scmp.eq.s32.totalorder %s9, 0
    %p81 = por %p79, %p80
    %p82 = scmp.ne.s32.totalorder %s71, %s74
    %p83 = scmp.eq.s32.totalorder %s14, 1
    %p84 = por %p82, %p83
    %p85 = scmp.ne.s32.totalorder %s74, %s75
    %p86 = scmp.eq.s32.totalorder %s14, 0
    %p87 = por %p85, %p86
    %p88 = scmp.ne.s32.totalorder %s74, %s75
    %p89 = scmp.eq.s32.totalorder %s15, 1
    %p90 = por %p88, %p89
    %p92 = scmp.ne.s32.totalorder %s75, %s91
    %p93 = scmp.eq.s32.totalorder %s15, 0
    %p94 = por %p92, %p93
    %p95 = scmp.le.s32.totalorder 1, %s9
    %p96 = scmp.lt.s32.totalorder %s9, 3
    %p97 = pnand %p95, %p96
    %p98 = pneg %p97
    // Predicated region
    $region9: #{image_transformer_forward.17} parent=5 // pred_check
      _
    $region10: #{image_transformer_forward.17} parent=5 // pred_check_branch
      %100 = sbr.rel (%p97) target = $region12
    $region11: #{image_transformer_forward.17} parent=5 // pred_region
      %s101 = ssub.s32 %s9, 1
    $region12: #{image_transformer_forward.17} parent=5 // pred_fallthru
      _
    %p102 = scmp.lt.s32.totalorder %s9, 2
    // Predicated region
    $region13: #{image_transformer_forward.17} parent=5 // pred_check
      %p103 = pneg %p102
    $region14: #{image_transformer_forward.17} parent=5 // pred_check_branch
      %105 = sbr.rel (%p103) target = $region16
    $region15: #{image_transformer_forward.17} parent=5 // pred_region
      // Predicated region
      $region17: #{image_transformer_forward.17} parent=15 // pred_check
        %p106 = pneg %p29
      $region18: #{image_transformer_forward.17} parent=15 // pred_check_branch
        %108 = sbr.rel (%p106) target = $region20
      $region19: #{image_transformer_forward.17} parent=15 // pred_region
        %p109 = scmp.lt.s32.totalorder %s9, 1
        %s110 = scalar_select %p109, %s9, 1
        %s111 = smul.addr %s110, 3
        %s112 = smul.addr %s111, 4
        %s113 = scalar_lea.vmem %s0, %s112
      $region20: #{image_transformer_forward.17} parent=15 // pred_fallthru
        _
    $region16: #{image_transformer_forward.17} parent=5 // pred_fallthru
      _
    %p114 = scmp.le.s32.totalorder 1, %s9
    %p115 = scmp.lt.s32.totalorder %s9, 3
    %p116 = pnand %p114, %p115
    %p117 = pneg %p116
    // Predicated region
    $region21: #{image_transformer_forward.17} parent=5 // pred_check
      _
    $region22: #{image_transformer_forward.17} parent=5 // pred_check_branch
      %119 = sbr.rel (%p116) target = $region24
    $region23: #{image_transformer_forward.17} parent=5 // pred_region
      %s120 = ssub.s32 %s9, 1
      %p121 = scmp.lt.s32.totalorder %s14, 1
      %s122 = scalar_select %p121, %s14, 1
      %s123 = smul.addr %s122, 3
      %s124 = smul.addr %s123, 4
      %s125 = scalar_lea.vmem %s0, %s124
      %p126 = pneg %p35
      %p127 = pneg %p32
      %p128 = pneg %p61
      %p129 = pneg %p58
      %p130 = scmp.lt.s32.totalorder %s14, 1
      %s131 = scalar_select %p130, %s14, 1
      %s132 = smul.addr %s131, 3
      %s133 = smul.addr %s132, 4
      %s134 = scalar_lea.vmem %s1, %s133
      %p135 = pneg %p87
      %p136 = pneg %p84
      %p137 = scmp.lt.s32.totalorder %s14, 1
      %s138 = scalar_select %p137, %s14, 1
      %s139 = smul.addr %s138, 12
      %s140 = smul.addr %s139, 4
      %s141 = scalar_lea.vmem %s2, %s140
      %p142 = scmp.lt.s32.totalorder %s14, 1
      %s143 = scalar_select %p142, %s14, 1
      %s144 = smul.addr %s143, 3
      %s145 = smul.addr %s144, 4
      %s146 = scalar_lea.vmem %s0, %s145
      %p147 = scmp.lt.s32.totalorder %s14, 1
      %s148 = scalar_select %p147, %s14, 1
      %s149 = smul.addr %s148, 3
      %s150 = smul.addr %s149, 4
      %s151 = scalar_lea.vmem %s1, %s150
      %p152 = scmp.lt.s32.totalorder %s14, 1
      %s153 = scalar_select %p152, %s14, 1
      %s154 = smul.addr %s153, 12
      %s155 = smul.addr %s154, 4
      %s156 = scalar_lea.vmem %s2, %s155
      %v158 = vlaneseq
      %v159 = vand.u32 %v158, 127
      %vm160 = vcmp.lt.s32.totalorder %v159, 17
      %v161 = vld [vmem:[%s146] sm:$0xf]
      %v162 = vld [vmem:[%s146 + $0x4] sm:$0xf]
      %v163 = vld [vmem:[%s146 + $0x8] sm:$0xf]
      %v167 = vunpack.c.l.b16 %v161
      %v168 = vunpack.c.l.b16 %v162
      %v169 = vunpack.c.l.b16 %v163
      %v170 = vpack.c.b16 %v168, %v167
      %v171 = vpack.c.b16 %v169, %v169
      %172 = vrot.lane.b32.xlu0 %v170, 96
      %v173 = vpop.permute.xlu0 %172
      %174 = vrot.lane.b32.xlu0 %v171, 96
      %v175 = vpop.permute.xlu0 %174
      %vm176 = vcmask 64512
      %v178 = vsel %vm176, %v170, 0
      %v181 = vsel %vm176, %v171, 0
      %v184 = vsel %vm176, %v173, 0
      %v187 = vsel %vm176, %v175, 0
      %189 = vmatprep.subr.bf16.mxu0 0
      %190 = vmatpush1.bf16.xpose.msra.mxu0 %v184
      %191 = vmatprep.subr.bf16.mxu0 0
      %192 = vmatpush1.bf16.xpose.msra.mxu0 %v187
      %193 = vmatprep.subr.bf16.mxu0 0
      %194 = vmatpush1.bf16.xpose.msra.mxu0 0
      %195 = vmatprep.subr.bf16.mxu0 0
      %196 = vmatpush1.bf16.xpose.msra.mxu0 0
      %197 = vmatprep.subr.bf16.mxu0 0
      %198 = vmatpush1.bf16.xpose.msra.mxu0 0
      %199 = vmatprep.subr.bf16.mxu0 0
      %200 = vmatpush1.bf16.xpose.msra.mxu0 0
      %201 = vmatprep.subr.bf16.mxu0 0
      %202 = vmatpush1.bf16.xpose.msra.mxu0 0
      %203 = vmatprep.subr.bf16.mxu0 0
      %204 = vmatpush1.bf16.xpose.msra.mxu0 0
      %205 = vmatprep.subr.bf16.mxu0 0
      %206 = vmatpush1.bf16.xpose.msra.mxu0 0
      %207 = vmatprep.subr.bf16.mxu0 0
      %208 = vmatpush1.bf16.xpose.msra.mxu0 0
      %209 = vmatprep.subr.bf16.mxu0 0
      %210 = vmatpush1.bf16.xpose.msra.mxu0 0
      %211 = vmatprep.subr.bf16.mxu0 0
      %212 = vmatpush1.bf16.xpose.msra.mxu0 0
      %213 = vmatprep.subr.bf16.mxu0 0
      %214 = vmatpush1.bf16.xpose.msra.mxu0 0
      %215 = vmatprep.subr.bf16.mxu0 0
      %216 = vmatpush1.bf16.xpose.msra.mxu0 0
      %217 = vmatprep.subr.bf16.mxu0 0
      %218 = vmatpush1.bf16.xpose.msra.mxu0 0
      %219 = vmatprep.subr.bf16.mxu0 0
      %220 = vmatpush1.bf16.xpose.msra.mxu0 0
      %221 = vmatprep.mubr.bf16.mxu0 0
      %222 = vmatmul.mubr.bf16.gmra.mrb[0].mxu0 %v178
      %v223 = vpop.f32.mrb[0].mxu0
      %v224 = vadd.f32 0.0, %v223
      %v225 = vpop.f32.mrb[0].mxu0
      %v226 = vpop.f32.mrb[0].mxu0
      %v227 = vadd.f32 0.0, %v226
      %v228 = vpop.f32.mrb[0].mxu0
      %229 = vmatprep.mubr.bf16.mxu0 0
      %230 = vmatmul.mubr.bf16.gmra.mrb[0].mxu0 %v181
      %v231 = vpop.f32.mrb[0].mxu0
      %v232 = vadd.f32 0.0, %v231
      %v233 = vpop.f32.mrb[0].mxu0
      %v234 = vpop.f32.mrb[0].mxu0
      %v235 = vpop.f32.mrb[0].mxu0
      %236 = vdwg.mxu0
      %v237 = vmul.f32 %v224, 0.35355338
      %v238 = vmul.f32 %v227, 0.35355338
      %v239 = vmul.f32 %v232, 0.35355338
      %v240 = vsel %vm160, 1, 0
      %vm241 = vcmp.eq.s32.totalorder %v240, 1
      %v242 = vsel %vm241, %v237, -1e+30
      %v243 = vsel %vm241, %v238, -1e+30
      %v244 = vsel %vm241, %v239, -1e+30
      %vm245 = vcmask 195584
      %v246 = vsel %vm245, %v242, -inf
      %247 = vmax.xlane.f32.xlu0 %v246
      %v248 = vpop.xlane.xlu0 %247
      %v249 = vsel %vm245, %v243, -inf
      %250 = vmax.xlane.f32.xlu0 %v249
      %v251 = vpop.xlane.xlu0 %250
      %v252 = vsel %vm245, %v244, -inf
      %253 = vmax.xlane.f32.xlu0 %v252
      %v254 = vpop.xlane.xlu0 %253
      %v255 = vsub.f32 %v242, %v248
      %v256 = vsub.f32 %v243, %v251
      %v257 = vsub.f32 %v244, %v254
      %v258 = vmul.f32 %v255, 1.442695
      %v259 = vpow.pop %v258
      %v260 = vmul.f32 %v256, 1.442695
      %v261 = vpow.pop %v260
      %v262 = vmul.f32 %v257, 1.442695
      %v263 = vpow.pop %v262
      %v264 = vsel %vm245, %v259, 0.0
      %265 = vadd.xlane.f32.xlu0 %v264
      %v266 = vpop.xlane.xlu0 %265
      %v267 = vsel %vm245, %v261, 0.0
      %268 = vadd.xlane.f32.xlu0 %v267
      %v269 = vpop.xlane.xlu0 %268
      %v270 = vsel %vm245, %v263, 0.0
      %271 = vadd.xlane.f32.xlu0 %v270
      %v272 = vpop.xlane.xlu0 %271
      %v273 = vrcp.pop %v266
      %v274 = vrcp.pop %v269
      %v275 = vrcp.pop %v272
      %v276 = vmul.f32 %v259, %v273
      %v277 = vmul.f32 %v261, %v274
      %v278 = vmul.f32 %v263, %v275
      %v279 = vpack.c.bf16 %v277, %v276
      %v280 = vpack.c.bf16 %v278, %v278
      %v283 = vunpack.c.l.b16 %v279
      %v284 = vunpack.c.h.b16 %v279
      %v285 = vunpack.c.l.b16 %v280
      %v286 = vpack.c.b16 %v283, %v283
      %v287 = vpack.c.b16 %v284, %v284
      %v288 = vpack.c.b16 %v285, %v285
      %vm292 = vcmask 191488
      %293 = vst.msk [vmem:[%s156] sm:$0xf] %vm292, %v286
      %294 = vst.msk [vmem:[%s156 + $0x4] sm:$0xf] %vm292, %v287
      %295 = vst.msk [vmem:[%s156 + $0x8] sm:$0xf] %vm292, %v288
      %296 = vrot.lane.b32.xlu0 %v170, 64
      %v297 = vpop.permute.xlu0 %296
      %298 = vrot.lane.b32.xlu0 %v171, 64
      %v299 = vpop.permute.xlu0 %298
      %v302 = vsel %vm245, %v279, 0
      %v305 = vsel %vm245, %v280, 0
      %vm307 = vcmask 1043456
      %v309 = vsel %vm307, %v299, 0
      %311 = vmatprep.subr.bf16.mxu0 0
      %312 = vmatpush1.bf16.msra.mxu0 %v297
      %313 = vmatprep.subr.bf16.mxu0 0
      %314 = vmatpush1.bf16.msra.mxu0 %v309
      %315 = vmatprep.subr.bf16.mxu0 0
      %316 = vmatpush1.bf16.msra.mxu0 0
      %317 = vmatprep.subr.bf16.mxu0 0
      %318 = vmatpush1.bf16.msra.mxu0 0
      %319 = vmatprep.subr.bf16.mxu0 0
      %320 = vmatpush1.bf16.msra.mxu0 0
      %321 = vmatprep.subr.bf16.mxu0 0
      %322 = vmatpush1.bf16.msra.mxu0 0
      %323 = vmatprep.subr.bf16.mxu0 0
      %324 = vmatpush1.bf16.msra.mxu0 0
      %325 = vmatprep.subr.bf16.mxu0 0
      %326 = vmatpush1.bf16.msra.mxu0 0
      %327 = vmatprep.subr.bf16.mxu0 0
      %328 = vmatpush1.bf16.msra.mxu0 0
      %329 = vmatprep.subr.bf16.mxu0 0
      %330 = vmatpush1.bf16.msra.mxu0 0
      %331 = vmatprep.subr.bf16.mxu0 0
      %332 = vmatpush1.bf16.msra.mxu0 0
      %333 = vmatprep.subr.bf16.mxu0 0
      %334 = vmatpush1.bf16.msra.mxu0 0
      %335 = vmatprep.subr.bf16.mxu0 0
      %336 = vmatpush1.bf16.msra.mxu0 0
      %337 = vmatprep.subr.bf16.mxu0 0
      %338 = vmatpush1.bf16.msra.mxu0 0
      %339 = vmatprep.subr.bf16.mxu0 0
      %340 = vmatpush1.bf16.msra.mxu0 0
      %341 = vmatprep.subr.bf16.mxu0 0
      %342 = vmatpush1.bf16.msra.mxu0 0
      %343 = vmatprep.mubr.bf16.mxu0 0
      %344 = vmatmul.mubr.bf16.gmra.mrb[0].mxu0 %v302
      %v345 = vpop.f32.mrb[0].mxu0
      %v346 = vadd.f32 0.0, %v345
      %v347 = vpop.f32.mrb[0].mxu0
      %v348 = vpop.f32.mrb[0].mxu0
      %v349 = vadd.f32 0.0, %v348
      %v350 = vpop.f32.mrb[0].mxu0
      %351 = vmatprep.mubr.bf16.mxu0 0
      %352 = vmatmul.mubr.bf16.gmra.mrb[0].mxu0 %v305
      %v353 = vpop.f32.mrb[0].mxu0
      %v354 = vadd.f32 0.0, %v353
      %v355 = vpop.f32.mrb[0].mxu0
      %v356 = vpop.f32.mrb[0].mxu0
      %v357 = vpop.f32.mrb[0].mxu0
      %358 = vdwg.mxu0
      %v359 = vld [vmem:[%s146] sm:$0xf]
      %v360 = vld [vmem:[%s146 + $0x4] sm:$0xf]
      %v361 = vld [vmem:[%s146 + $0x8] sm:$0xf]
      %v365 = vunpack.c.l.b16 %v359
      %v366 = vunpack.c.l.b16 %v360
      %v367 = vunpack.c.l.b16 %v361
      %v368 = vpack.c.b16 %v366, %v365
      %v369 = vpack.c.b16 %v367, %v367
      %370 = vrot.lane.b32.xlu0 %v368, 120
      %v371 = vpop.permute.xlu0 %370
      %372 = vrot.lane.b32.xlu0 %v369, 120
      %v373 = vpop.permute.xlu0 %372
      %374 = vrot.lane.b32.xlu0 %v368, 88
      %v375 = vpop.permute.xlu0 %374
      %376 = vrot.lane.b32.xlu0 %v369, 88
      %v377 = vpop.permute.xlu0 %376
      %v379 = vsel %vm176, %v371, 0
      %v382 = vsel %vm176, %v373, 0
      %v385 = vsel %vm176, %v375, 0
      %v388 = vsel %vm176, %v377, 0
      %390 = vmatprep.subr.bf16.mxu0 0
      %391 = vmatpush1.bf16.xpose.msra.mxu0 %v385
      %392 = vmatprep.subr.bf16.mxu0 0
      %393 = vmatpush1.bf16.xpose.msra.mxu0 %v388
      %394 = vmatprep.subr.bf16.mxu0 0
      %395 = vmatpush1.bf16.xpose.msra.mxu0 0
      %396 = vmatprep.subr.bf16.mxu0 0
      %397 = vmatpush1.bf16.xpose.msra.mxu0 0
      %398 = vmatprep.subr.bf16.mxu0 0
      %399 = vmatpush1.bf16.xpose.msra.mxu0 0
      %400 = vmatprep.subr.bf16.mxu0 0
      %401 = vmatpush1.bf16.xpose.msra.mxu0 0
      %402 = vmatprep.subr.bf16.mxu0 0
      %403 = vmatpush1.bf16.xpose.msra.mxu0 0
      %404 = vmatprep.subr.bf16.mxu0 0
      %405 = vmatpush1.bf16.xpose.msra.mxu0 0
      %406 = vmatprep.subr.bf16.mxu0 0
      %407 = vmatpush1.bf16.xpose.msra.mxu0 0
      %408 = vmatprep.subr.bf16.mxu0 0
      %409 = vmatpush1.bf16.xpose.msra.mxu0 0
      %410 = vmatprep.subr.bf16.mxu0 0
      %411 = vmatpush1.bf16.xpose.msra.mxu0 0
      %412 = vmatprep.subr.bf16.mxu0 0
      %413 = vmatpush1.bf16.xpose.msra.mxu0 0
      %414 = vmatprep.subr.bf16.mxu0 0
      %415 = vmatpush1.bf16.xpose.msra.mxu0 0
      %416 = vmatprep.subr.bf16.mxu0 0
      %417 = vmatpush1.bf16.xpose.msra.mxu0 0
      %418 = vmatprep.subr.bf16.mxu0 0
      %419 = vmatpush1.bf16.xpose.msra.mxu0 0
      %420 = vmatprep.subr.bf16.mxu0 0
      %421 = vmatpush1.bf16.xpose.msra.mxu0 0
      %422 = vmatprep.mubr.bf16.mxu0 0
      %423 = vmatmul.mubr.bf16.gmra.mrb[0].mxu0 %v379
      %v424 = vpop.f32.mrb[0].mxu0
      %v425 = vadd.f32 0.0, %v424
      %v426 = vpop.f32.mrb[0].mxu0
      %v427 = vpop.f32.mrb[0].mxu0
      %v428 = vadd.f32 0.0, %v427
      %v429 = vpop.f32.mrb[0].mxu0
      %430 = vmatprep.mubr.bf16.mxu0 0
      %431 = vmatmul.mubr.bf16.gmra.mrb[0].mxu0 %v382
      %v432 = vpop.f32.mrb[0].mxu0
      %v433 = vadd.f32 0.0, %v432
      %v434 = vpop.f32.mrb[0].mxu0
      %v435 = vpop.f32.mrb[0].mxu0
      %v436 = vpop.f32.mrb[0].mxu0
      %437 = vdwg.mxu0
      %v438 = vmul.f32 %v425, 0.35355338
      %v439 = vmul.f32 %v428, 0.35355338
      %v440 = vmul.f32 %v433, 0.35355338
      %v441 = vsel %vm241, %v438, -1e+30
      %v442 = vsel %vm241, %v439, -1e+30
      %v443 = vsel %vm241, %v440, -1e+30
      %v444 = vsel %vm245, %v441, -inf
      %445 = vmax.xlane.f32.xlu0 %v444
      %v446 = vpop.xlane.xlu0 %445
      %v447 = vsel %vm245, %v442, -inf
      %448 = vmax.xlane.f32.xlu0 %v447
      %v449 = vpop.xlane.xlu0 %448
      %v450 = vsel %vm245, %v443, -inf
      %451 = vmax.xlane.f32.xlu0 %v450
      %v452 = vpop.xlane.xlu0 %451
      %v453 = vsub.f32 %v441, %v446
      %v454 = vsub.f32 %v442, %v449
      %v455 = vsub.f32 %v443, %v452
      %v456 = vmul.f32 %v453, 1.442695
      %v457 = vpow.pop %v456
      %v458 = vmul.f32 %v454, 1.442695
      %v459 = vpow.pop %v458
      %v460 = vmul.f32 %v455, 1.442695
      %v461 = vpow.pop %v460
      %v462 = vsel %vm245, %v457, 0.0
      %463 = vadd.xlane.f32.xlu0 %v462
      %v464 = vpop.xlane.xlu0 %463
      %v465 = vsel %vm245, %v459, 0.0
      %466 = vadd.xlane.f32.xlu0 %v465
      %v467 = vpop.xlane.xlu0 %466
      %v468 = vsel %vm245, %v461, 0.0
      %469 = vadd.xlane.f32.xlu0 %v468
      %v470 = vpop.xlane.xlu0 %469
      %v471 = vrcp.pop %v464
      %v472 = vrcp.pop %v467
      %v473 = vrcp.pop %v470
      %v474 = vmul.f32 %v457, %v471
      %v475 = vmul.f32 %v459, %v472
      %v476 = vmul.f32 %v461, %v473
      %v477 = vpack.c.bf16 %v475, %v474
      %v478 = vpack.c.bf16 %v476, %v476
      %v481 = vunpack.c.l.b16 %v477
      %v482 = vunpack.c.h.b16 %v477
      %v483 = vunpack.c.l.b16 %v478
      %v484 = vpack.c.b16 %v481, %v481
      %v485 = vpack.c.b16 %v482, %v482
      %v486 = vpack.c.b16 %v483, %v483
      %s490 = scalar_lea.vmem %s156, 12
      %491 = vst.msk [vmem:[%s490] sm:$0xf] %vm292, %v484
      %492 = vst.msk [vmem:[%s490 + $0x4] sm:$0xf] %vm292, %v485
      %493 = vst.msk [vmem:[%s490 + $0x8] sm:$0xf] %vm292, %v486
      %494 = vrot.lane.b32.xlu0 %v368, 56
      %v495 = vpop.permute.xlu0 %494
      %496 = vrot.lane.b32.xlu0 %v369, 56
      %v497 = vpop.permute.xlu0 %496
      %v500 = vsel %vm245, %v477, 0
      %v503 = vsel %vm245, %v478, 0
      %v506 = vsel %vm307, %v497, 0
      %508 = vmatprep.subr.bf16.mxu0 0
      %509 = vmatpush1.bf16.msra.mxu0 %v495
      %510 = vmatprep.subr.bf16.mxu0 0
      %511 = vmatpush1.bf16.msra.mxu0 %v506
      %512 = vmatprep.subr.bf16.mxu0 0
      %513 = vmatpush1.bf16.msra.mxu0 0
      %514 = vmatprep.subr.bf16.mxu0 0
      %515 = vmatpush1.bf16.msra.mxu0 0
      %516 = vmatprep.subr.bf16.mxu0 0
      %517 = vmatpush1.bf16.msra.mxu0 0
      %518 = vmatprep.subr.bf16.mxu0 0
      %519 = vmatpush1.bf16.msra.mxu0 0
      %520 = vmatprep.subr.bf16.mxu0 0
      %521 = vmatpush1.bf16.msra.mxu0 0
      %522 = vmatprep.subr.bf16.mxu0 0
      %523 = vmatpush1.bf16.msra.mxu0 0
      %524 = vmatprep.subr.bf16.mxu0 0
      %525 = vmatpush1.bf16.msra.mxu0 0
      %526 = vmatprep.subr.bf16.mxu0 0
      %527 = vmatpush1.bf16.msra.mxu0 0
      %528 = vmatprep.subr.bf16.mxu0 0
      %529 = vmatpush1.bf16.msra.mxu0 0
      %530 = vmatprep.subr.bf16.mxu0 0
      %531 = vmatpush1.bf16.msra.mxu0 0
      %532 = vmatprep.subr.bf16.mxu0 0
      %533 = vmatpush1.bf16.msra.mxu0 0
      %534 = vmatprep.subr.bf16.mxu0 0
      %535 = vmatpush1.bf16.msra.mxu0 0
      %536 = vmatprep.subr.bf16.mxu0 0
      %537 = vmatpush1.bf16.msra.mxu0 0
      %538 = vmatprep.subr.bf16.mxu0 0
      %539 = vmatpush1.bf16.msra.mxu0 0
      %540 = vmatprep.mubr.bf16.mxu0 0
      %541 = vmatmul.mubr.bf16.gmra.mrb[0].mxu0 %v500
      %v542 = vpop.f32.mrb[0].mxu0
      %v543 = vadd.f32 0.0, %v542
      %v544 = vpop.f32.mrb[0].mxu0
      %v545 = vpop.f32.mrb[0].mxu0
      %v546 = vadd.f32 0.0, %v545
      %v547 = vpop.f32.mrb[0].mxu0
      %548 = vmatprep.mubr.bf16.mxu0 0
      %549 = vmatmul.mubr.bf16.gmra.mrb[0].mxu0 %v503
      %v550 = vpop.f32.mrb[0].mxu0
      %v551 = vadd.f32 0.0, %v550
      %v552 = vpop.f32.mrb[0].mxu0
      %v553 = vpop.f32.mrb[0].mxu0
      %v554 = vpop.f32.mrb[0].mxu0
      %555 = vdwg.mxu0
      %v556 = vld [vmem:[%s146] sm:$0xf]
      %v557 = vld [vmem:[%s146 + $0x4] sm:$0xf]
      %v558 = vld [vmem:[%s146 + $0x8] sm:$0xf]
      %v562 = vunpack.c.l.b16 %v556
      %v563 = vunpack.c.l.b16 %v557
      %v564 = vunpack.c.l.b16 %v558
      %v565 = vpack.c.b16 %v563, %v562
      %v566 = vpack.c.b16 %v564, %v564
      %567 = vrot.lane.b32.xlu0 %v565, 112
      %v568 = vpop.permute.xlu0 %567
      %569 = vrot.lane.b32.xlu0 %v566, 112
      %v570 = vpop.permute.xlu0 %569
      %571 = vrot.lane.b32.xlu0 %v565, 80
      %v572 = vpop.permute.xlu0 %571
      %573 = vrot.lane.b32.xlu0 %v566, 80
      %v574 = vpop.permute.xlu0 %573
      %v576 = vsel %vm176, %v568, 0
      %v579 = vsel %vm176, %v570, 0
      %v582 = vsel %vm176, %v572, 0
      %v585 = vsel %vm176, %v574, 0
      %587 = vmatprep.subr.bf16.mxu0 0
      %588 = vmatpush1.bf16.xpose.msra.mxu0 %v582
      %589 = vmatprep.subr.bf16.mxu0 0
      %590 = vmatpush1.bf16.xpose.msra.mxu0 %v585
      %591 = vmatprep.subr.bf16.mxu0 0
      %592 = vmatpush1.bf16.xpose.msra.mxu0 0
      %593 = vmatprep.subr.bf16.mxu0 0
      %594 = vmatpush1.bf16.xpose.msra.mxu0 0
      %595 = vmatprep.subr.bf16.mxu0 0
      %596 = vmatpush1.bf16.xpose.msra.mxu0 0
      %597 = vmatprep.subr.bf16.mxu0 0
      %598 = vmatpush1.bf16.xpose.msra.mxu0 0
      %599 = vmatprep.subr.bf16.mxu0 0
      %600 = vmatpush1.bf16.xpose.msra.mxu0 0
      %601 = vmatprep.subr.bf16.mxu0 0
      %602 = vmatpush1.bf16.xpose.msra.mxu0 0
      %603 = vmatprep.subr.bf16.mxu0 0
      %604 = vmatpush1.bf16.xpose.msra.mxu0 0
      %605 = vmatprep.subr.bf16.mxu0 0
      %606 = vmatpush1.bf16.xpose.msra.mxu0 0
      %607 = vmatprep.subr.bf16.mxu0 0
      %608 = vmatpush1.bf16.xpose.msra.mxu0 0
      %609 = vmatprep.subr.bf16.mxu0 0
      %610 = vmatpush1.bf16.xpose.msra.mxu0 0
      %611 = vmatprep.subr.bf16.mxu0 0
      %612 = vmatpush1.bf16.xpose.msra.mxu0 0
      %613 = vmatprep.subr.bf16.mxu0 0
      %614 = vmatpush1.bf16.xpose.msra.mxu0 0
      %615 = vmatprep.subr.bf16.mxu0 0
      %616 = vmatpush1.bf16.xpose.msra.mxu0 0
      %617 = vmatprep.subr.bf16.mxu0 0
      %618 = vmatpush1.bf16.xpose.msra.mxu0 0
      %619 = vmatprep.mubr.bf16.mxu0 0
      %620 = vmatmul.mubr.bf16.gmra.mrb[0].mxu0 %v576
      %v621 = vpop.f32.mrb[0].mxu0
      %v622 = vadd.f32 0.0, %v621
      %v623 = vpop.f32.mrb[0].mxu0
      %v624 = vpop.f32.mrb[0].mxu0
      %v625 = vadd.f32 0.0, %v624
      %v626 = vpop.f32.mrb[0].mxu0
      %627 = vmatprep.mubr.bf16.mxu0 0
      %628 = vmatmul.mubr.bf16.gmra.mrb[0].mxu0 %v579
      %v629 = vpop.f32.mrb[0].mxu0
      %v630 = vadd.f32 0.0, %v629
      %v631 = vpop.f32.mrb[0].mxu0
      %v632 = vpop.f32.mrb[0].mxu0
      %v633 = vpop.f32.mrb[0].mxu0
      %634 = vdwg.mxu0
      %v635 = vmul.f32 %v622, 0.35355338
      %v636 = vmul.f32 %v625, 0.35355338
      %v637 = vmul.f32 %v630, 0.35355338
      %v638 = vsel %vm241, %v635, -1e+30
      %v639 = vsel %vm241, %v636, -1e+30
      %v640 = vsel %vm241, %v637, -1e+30
      %v641 = vsel %vm245, %v638, -inf
      %642 = vmax.xlane.f32.xlu0 %v641
      %v643 = vpop.xlane.xlu0 %642
      %v644 = vsel %vm245, %v639, -inf
      %645 = vmax.xlane.f32.xlu0 %v644
      %v646 = vpop.xlane.xlu0 %645
      %v647 = vsel %vm245, %v640, -inf
      %648 = vmax.xlane.f32.xlu0 %v647
      %v649 = vpop.xlane.xlu0 %648
      %v650 = vsub.f32 %v638, %v643
      %v651 = vsub.f32 %v639, %v646
      %v652 = vsub.f32 %v640, %v649
      %v653 = vmul.f32 %v650, 1.442695
      %v654 = vpow.pop %v653
      %v655 = vmul.f32 %v651, 1.442695
      %v656 = vpow.pop %v655
      %v657 = vmul.f32 %v652, 1.442695
      %v658 = vpow.pop %v657
      %v659 = vsel %vm245, %v654, 0.0
      %660 = vadd.xlane.f32.xlu0 %v659
      %v661 = vpop.xlane.xlu0 %660
      %v662 = vsel %vm245, %v656, 0.0
      %663 = vadd.xlane.f32.xlu0 %v662
      %v664 = vpop.xlane.xlu0 %663
      %v665 = vsel %vm245, %v658, 0.0
      %666 = vadd.xlane.f32.xlu0 %v665
      %v667 = vpop.xlane.xlu0 %666
      %v668 = vrcp.pop %v661
      %v669 = vrcp.pop %v664
      %v670 = vrcp.pop %v667
      %v671 = vmul.f32 %v654, %v668
      %v672 = vmul.f32 %v656, %v669
      %v673 = vmul.f32 %v658, %v670
      %v674 = vpack.c.bf16 %v672, %v671
      %v675 = vpack.c.bf16 %v673, %v673
      %v678 = vunpack.c.l.b16 %v674
      %v679 = vunpack.c.h.b16 %v674
      %v680 = vunpack.c.l.b16 %v675
      %v681 = vpack.c.b16 %v678, %v678
      %v682 = vpack.c.b16 %v679, %v679
      %v683 = vpack.c.b16 %v680, %v680
      %s687 = scalar_lea.vmem %s156, 24
      %688 = vst.msk [vmem:[%s687] sm:$0xf] %vm292, %v681
      %689 = vst.msk [vmem:[%s687 + $0x4] sm:$0xf] %vm292, %v682
      %690 = vst.msk [vmem:[%s687 + $0x8] sm:$0xf] %vm292, %v683
      %691 = vrot.lane.b32.xlu0 %v565, 48
      %v692 = vpop.permute.xlu0 %691
      %693 = vrot.lane.b32.xlu0 %v566, 48
      %v694 = vpop.permute.xlu0 %693
      %v697 = vsel %vm245, %v674, 0
      %v700 = vsel %vm245, %v675, 0
      %v703 = vsel %vm307, %v694, 0
      %705 = vmatprep.subr.bf16.mxu0 0
      %706 = vmatpush1.bf16.msra.mxu0 %v692
      %707 = vmatprep.subr.bf16.mxu0 0
      %708 = vmatpush1.bf16.msra.mxu0 %v703
      %709 = vmatprep.subr.bf16.mxu0 0
      %710 = vmatpush1.bf16.msra.mxu0 0
      %711 = vmatprep.subr.bf16.mxu0 0
      %712 = vmatpush1.bf16.msra.mxu0 0
      %713 = vmatprep.subr.bf16.mxu0 0
      %714 = vmatpush1.bf16.msra.mxu0 0
      %715 = vmatprep.subr.bf16.mxu0 0
      %716 = vmatpush1.bf16.msra.mxu0 0
      %717 = vmatprep.subr.bf16.mxu0 0
      %718 = vmatpush1.bf16.msra.mxu0 0
      %719 = vmatprep.subr.bf16.mxu0 0
      %720 = vmatpush1.bf16.msra.mxu0 0
      %721 = vmatprep.subr.bf16.mxu0 0
      %722 = vmatpush1.bf16.msra.mxu0 0
      %723 = vmatprep.subr.bf16.mxu0 0
      %724 = vmatpush1.bf16.msra.mxu0 0
      %725 = vmatprep.subr.bf16.mxu0 0
      %726 = vmatpush1.bf16.msra.mxu0 0
      %727 = vmatprep.subr.bf16.mxu0 0
      %728 = vmatpush1.bf16.msra.mxu0 0
      %729 = vmatprep.subr.bf16.mxu0 0
      %730 = vmatpush1.bf16.msra.mxu0 0
      %731 = vmatprep.subr.bf16.mxu0 0
      %732 = vmatpush1.bf16.msra.mxu0 0
      %733 = vmatprep.subr.bf16.mxu0 0
      %734 = vmatpush1.bf16.msra.mxu0 0
      %735 = vmatprep.subr.bf16.mxu0 0
      %736 = vmatpush1.bf16.msra.mxu0 0
      %737 = vmatprep.mubr.bf16.mxu0 0
      %738 = vmatmul.mubr.bf16.gmra.mrb[0].mxu0 %v697
      %v739 = vpop.f32.mrb[0].mxu0
      %v740 = vadd.f32 0.0, %v739
      %v741 = vpop.f32.mrb[0].mxu0
      %v742 = vpop.f32.mrb[0].mxu0
      %v743 = vadd.f32 0.0, %v742
      %v744 = vpop.f32.mrb[0].mxu0
      %745 = vmatprep.mubr.bf16.mxu0 0
      %746 = vmatmul.mubr.bf16.gmra.mrb[0].mxu0 %v700
      %v747 = vpop.f32.mrb[0].mxu0
      %v748 = vadd.f32 0.0, %v747
      %v749 = vpop.f32.mrb[0].mxu0
      %v750 = vpop.f32.mrb[0].mxu0
      %v751 = vpop.f32.mrb[0].mxu0
      %752 = vdwg.mxu0
      %v753 = vld [vmem:[%s146] sm:$0xf]
      %v754 = vld [vmem:[%s146 + $0x4] sm:$0xf]
      %v755 = vld [vmem:[%s146 + $0x8] sm:$0xf]
      %v759 = vunpack.c.l.b16 %v753
      %v760 = vunpack.c.l.b16 %v754
      %v761 = vunpack.c.l.b16 %v755
      %v762 = vpack.c.b16 %v760, %v759
      %v763 = vpack.c.b16 %v761, %v761
      %764 = vrot.lane.b32.xlu0 %v762, 104
      %v765 = vpop.permute.xlu0 %764
      %766 = vrot.lane.b32.xlu0 %v763, 104
      %v767 = vpop.permute.xlu0 %766
      %768 = vrot.lane.b32.xlu0 %v762, 72
      %v769 = vpop.permute.xlu0 %768
      %770 = vrot.lane.b32.xlu0 %v763, 72
      %v771 = vpop.permute.xlu0 %770
      %v773 = vsel %vm176, %v765, 0
      %v776 = vsel %vm176, %v767, 0
      %v779 = vsel %vm176, %v769, 0
      %v782 = vsel %vm176, %v771, 0
      %784 = vmatprep.subr.bf16.mxu0 0
      %785 = vmatpush1.bf16.xpose.msra.mxu0 %v779
      %786 = vmatprep.subr.bf16.mxu0 0
      %787 = vmatpush1.bf16.xpose.msra.mxu0 %v782
      %788 = vmatprep.subr.bf16.mxu0 0
      %789 = vmatpush1.bf16.xpose.msra.mxu0 0
      %790 = vmatprep.subr.bf16.mxu0 0
      %791 = vmatpush1.bf16.xpose.msra.mxu0 0
      %792 = vmatprep.subr.bf16.mxu0 0
      %793 = vmatpush1.bf16.xpose.msra.mxu0 0
      %794 = vmatprep.subr.bf16.mxu0 0
      %795 = vmatpush1.bf16.xpose.msra.mxu0 0
      %796 = vmatprep.subr.bf16.mxu0 0
      %797 = vmatpush1.bf16.xpose.msra.mxu0 0
      %798 = vmatprep.subr.bf16.mxu0 0
      %799 = vmatpush1.bf16.xpose.msra.mxu0 0
      %800 = vmatprep.subr.bf16.mxu0 0
      %801 = vmatpush1.bf16.xpose.msra.mxu0 0
      %802 = vmatprep.subr.bf16.mxu0 0
      %803 = vmatpush1.bf16.xpose.msra.mxu0 0
      %804 = vmatprep.subr.bf16.mxu0 0
      %805 = vmatpush1.bf16.xpose.msra.mxu0 0
      %806 = vmatprep.subr.bf16.mxu0 0
      %807 = vmatpush1.bf16.xpose.msra.mxu0 0
      %808 = vmatprep.subr.bf16.mxu0 0
      %809 = vmatpush1.bf16.xpose.msra.mxu0 0
      %810 = vmatprep.subr.bf16.mxu0 0
      %811 = vmatpush1.bf16.xpose.msra.mxu0 0
      %812 = vmatprep.subr.bf16.mxu0 0
      %813 = vmatpush1.bf16.xpose.msra.mxu0 0
      %814 = vmatprep.subr.bf16.mxu0 0
      %815 = vmatpush1.bf16.xpose.msra.mxu0 0
      %816 = vmatprep.mubr.bf16.mxu0 0
      %817 = vmatmul.mubr.bf16.gmra.mrb[0].mxu0 %v773
      %v818 = vpop.f32.mrb[0].mxu0
      %v819 = vadd.f32 0.0, %v818
      %v820 = vpop.f32.mrb[0].mxu0
      %v821 = vpop.f32.mrb[0].mxu0
      %v822 = vadd.f32 0.0, %v821
      %v823 = vpop.f32.mrb[0].mxu0
      %824 = vmatprep.mubr.bf16.mxu0 0
      %825 = vmatmul.mubr.bf16.gmra.mrb[0].mxu0 %v776
      %v826 = vpop.f32.mrb[0].mxu0
      %v827 = vadd.f32 0.0, %v826
      %v828 = vpop.f32.mrb[0].mxu0
      %v829 = vpop.f32.mrb[0].mxu0
      %v830 = vpop.f32.mrb[0].mxu0
      %831 = vdwg.mxu0
      %v832 = vmul.f32 %v819, 0.35355338
      %v833 = vmul.f32 %v822, 0.35355338
      %v834 = vmul.f32 %v827, 0.35355338
      %v835 = vsel %vm241, %v832, -1e+30
      %v836 = vsel %vm241, %v833, -1e+30
      %v837 = vsel %vm241, %v834, -1e+30
      %v838 = vsel %vm245, %v835, -inf
      %839 = vmax.xlane.f32.xlu0 %v838
      %v840 = vpop.xlane.xlu0 %839
      %v841 = vsel %vm245, %v836, -inf
      %842 = vmax.xlane.f32.xlu0 %v841
      %v843 = vpop.xlane.xlu0 %842
      %v844 = vsel %vm245, %v837, -inf
      %845 = vmax.xlane.f32.xlu0 %v844
      %v846 = vpop.xlane.xlu0 %845
      %v847 = vsub.f32 %v835, %v840
      %v848 = vsub.f32 %v836, %v843
      %v849 = vsub.f32 %v837, %v846
      %v850 = vmul.f32 %v847, 1.442695
      %v851 = vpow.pop %v850
      %v852 = vmul.f32 %v848, 1.442695
      %v853 = vpow.pop %v852
      %v854 = vmul.f32 %v849, 1.442695
      %v855 = vpow.pop %v854
      %v856 = vsel %vm245, %v851, 0.0
      %857 = vadd.xlane.f32.xlu0 %v856
      %v858 = vpop.xlane.xlu0 %857
      %v859 = vsel %vm245, %v853, 0.0
      %860 = vadd.xlane.f32.xlu0 %v859
      %v861 = vpop.xlane.xlu0 %860
      %v862 = vsel %vm245, %v855, 0.0
      %863 = vadd.xlane.f32.xlu0 %v862
      %v864 = vpop.xlane.xlu0 %863
      %v865 = vrcp.pop %v858
      %v866 = vrcp.pop %v861
      %v867 = vrcp.pop %v864
      %v868 = vmul.f32 %v851, %v865
      %v869 = vmul.f32 %v853, %v866
      %v870 = vmul.f32 %v855, %v867
      %v871 = vpack.c.bf16 %v869, %v868
      %v872 = vpack.c.bf16 %v870, %v870
      %v875 = vunpack.c.l.b16 %v871
      %v876 = vunpack.c.h.b16 %v871
      %v877 = vunpack.c.l.b16 %v872
      %v878 = vpack.c.b16 %v875, %v875
      %v879 = vpack.c.b16 %v876, %v876
      %v880 = vpack.c.b16 %v877, %v877
      %s884 = scalar_lea.vmem %s156, 36
      %885 = vst.msk [vmem:[%s884] sm:$0xf] %vm292, %v878
      %886 = vst.msk [vmem:[%s884 + $0x4] sm:$0xf] %vm292, %v879
      %887 = vst.msk [vmem:[%s884 + $0x8] sm:$0xf] %vm292, %v880
      %888 = vrot.lane.b32.xlu0 %v762, 40
      %v889 = vpop.permute.xlu0 %888
      %890 = vrot.lane.b32.xlu0 %v763, 40
      %v891 = vpop.permute.xlu0 %890
      %v894 = vsel %vm245, %v871, 0
      %v897 = vsel %vm245, %v872, 0
      %v900 = vsel %vm307, %v891, 0
      %902 = vmatprep.subr.bf16.mxu0 0
      %903 = vmatpush1.bf16.msra.mxu0 %v889
      %904 = vmatprep.subr.bf16.mxu0 0
      %905 = vmatpush1.bf16.msra.mxu0 %v900
      %906 = vmatprep.subr.bf16.mxu0 0
      %907 = vmatpush1.bf16.msra.mxu0 0
      %908 = vmatprep.subr.bf16.mxu0 0
      %909 = vmatpush1.bf16.msra.mxu0 0
      %910 = vmatprep.subr.bf16.mxu0 0
      %911 = vmatpush1.bf16.msra.mxu0 0
      %912 = vmatprep.subr.bf16.mxu0 0
      %913 = vmatpush1.bf16.msra.mxu0 0
      %914 = vmatprep.subr.bf16.mxu0 0
      %915 = vmatpush1.bf16.msra.mxu0 0
      %916 = vmatprep.subr.bf16.mxu0 0
      %917 = vmatpush1.bf16.msra.mxu0 0
      %918 = vmatprep.subr.bf16.mxu0 0
      %919 = vmatpush1.bf16.msra.mxu0 0
      %920 = vmatprep.subr.bf16.mxu0 0
      %921 = vmatpush1.bf16.msra.mxu0 0
      %922 = vmatprep.subr.bf16.mxu0 0
      %923 = vmatpush1.bf16.msra.mxu0 0
      %924 = vmatprep.subr.bf16.mxu0 0
      %925 = vmatpush1.bf16.msra.mxu0 0
      %926 = vmatprep.subr.bf16.mxu0 0
      %927 = vmatpush1.bf16.msra.mxu0 0
      %928 = vmatprep.subr.bf16.mxu0 0
      %929 = vmatpush1.bf16.msra.mxu0 0
      %930 = vmatprep.subr.bf16.mxu0 0
      %931 = vmatpush1.bf16.msra.mxu0 0
      %932 = vmatprep.subr.bf16.mxu0 0
      %933 = vmatpush1.bf16.msra.mxu0 0
      %934 = vmatprep.mubr.bf16.mxu0 0
      %935 = vmatmul.mubr.bf16.gmra.mrb[0].mxu0 %v894
      %v936 = vpop.f32.mrb[0].mxu0
      %v937 = vadd.f32 0.0, %v936
      %v938 = vpop.f32.mrb[0].mxu0
      %v939 = vpop.f32.mrb[0].mxu0
      %v940 = vadd.f32 0.0, %v939
      %v941 = vpop.f32.mrb[0].mxu0
      %942 = vmatprep.mubr.bf16.mxu0 0
      %943 = vmatmul.mubr.bf16.gmra.mrb[0].mxu0 %v897
      %v944 = vpop.f32.mrb[0].mxu0
      %v945 = vadd.f32 0.0, %v944
      %v946 = vpop.f32.mrb[0].mxu0
      %v947 = vpop.f32.mrb[0].mxu0
      %v948 = vpop.f32.mrb[0].mxu0
      %949 = vdwg.mxu0
      %953 = vrot.lane.b32.xlu0 %v543, 8
      %v954 = vpop.permute.xlu0 %953
      %955 = vrot.lane.b32.xlu0 %v546, 8
      %v956 = vpop.permute.xlu0 %955
      %957 = vrot.lane.b32.xlu0 %v551, 8
      %v958 = vpop.permute.xlu0 %957
      %965 = vrot.lane.b32.xlu0 %v740, 16
      %v966 = vpop.permute.xlu0 %965
      %967 = vrot.lane.b32.xlu0 %v743, 16
      %v968 = vpop.permute.xlu0 %967
      %969 = vrot.lane.b32.xlu0 %v748, 16
      %v970 = vpop.permute.xlu0 %969
      %977 = vrot.lane.b32.xlu0 %v937, 24
      %v978 = vpop.permute.xlu0 %977
      %979 = vrot.lane.b32.xlu0 %v940, 24
      %v980 = vpop.permute.xlu0 %979
      %981 = vrot.lane.b32.xlu0 %v945, 24
      %v982 = vpop.permute.xlu0 %981
      %v986 = vsel %vm176, %v346, %v954
      %v987 = vsel %vm176, %v349, %v956
      %v988 = vsel %vm176, %v354, %v958
      %vm989 = vcmask 130048
      %v990 = vsel %vm989, %v986, %v966
      %v991 = vsel %vm989, %v987, %v968
      %v992 = vsel %vm989, %v988, %v970
      %v993 = vsel %vm245, %v990, %v978
      %v994 = vsel %vm245, %v991, %v980
      %v995 = vsel %vm245, %v992, %v982
      %v996 = vpack.c.bf16 %v994, %v993
      %v997 = vpack.c.bf16 %v995, %v995
      %v1000 = vunpack.c.l.b16 %v996
      %v1001 = vunpack.c.h.b16 %v996
      %v1002 = vunpack.c.l.b16 %v997
      %v1003 = vpack.c.b16 %v1000, %v1000
      %v1004 = vpack.c.b16 %v1001, %v1001
      %v1005 = vpack.c.b16 %v1002, %v1002
      %vm1009 = vcmask 257024
      %1010 = vst.msk [vmem:[%s151] sm:$0xf] %vm1009, %v1003
      %1011 = vst.msk [vmem:[%s151 + $0x4] sm:$0xf] %vm1009, %v1004
      %1012 = vst.msk [vmem:[%s151 + $0x8] sm:$0xf] %vm1009, %v1005
      %p1013 = scmp.lt.s32.totalorder %s14, 1
      %s1014 = scalar_select %p1013, %s14, 1
      %s1015 = smul.addr %s1014, 3
      %s1016 = smul.addr %s1015, 4
      %s1017 = scalar_lea.vmem %s1, %s1016
      %p1018 = scmp.lt.s32.totalorder %s14, 1
      %s1019 = scalar_select %p1018, %s14, 1
      %s1020 = smul.addr %s1019, 12
      %s1021 = smul.addr %s1020, 4
      %s1022 = scalar_lea.vmem %s2, %s1021
      // Predicated region
      $region25: #{image_transformer_forward.17} parent=23 // pred_check
        %p1023 = pneg %p58
      $region26: #{image_transformer_forward.17} parent=23 // pred_check_branch
        %1025 = sbr.rel (%p1023) target = $region28
      $region27: #{image_transformer_forward.17} parent=23 // pred_region
        _
      $region28: #{image_transformer_forward.17} parent=23 // pred_fallthru
        _
      // Predicated region
      $region29: #{image_transformer_forward.17} parent=23 // pred_check
        %p1026 = pneg %p84
      $region30: #{image_transformer_forward.17} parent=23 // pred_check_branch
        %1028 = sbr.rel (%p1026) target = $region32
      $region31: #{image_transformer_forward.17} parent=23 // pred_region
        _
      $region32: #{image_transformer_forward.17} parent=23 // pred_fallthru
        _
    $region24: #{image_transformer_forward.17} parent=5 // pred_fallthru
      _
    %p1029 = scmp.le.s32.totalorder 2, %s9
    // Predicated region
    $region33: #{image_transformer_forward.17} parent=5 // pred_check
      %p1030 = pneg %p1029
    $region34: #{image_transformer_forward.17} parent=5 // pred_check_branch
      %1032 = sbr.rel (%p1030) target = $region36
    $region35: #{image_transformer_forward.17} parent=5 // pred_region
      %s1033 = ssub.s32 %s9, 2
      // Predicated region
      $region37: #{image_transformer_forward.17} parent=35 // pred_check
        %p1034 = pneg %p64
      $region38: #{image_transformer_forward.17} parent=35 // pred_check_branch
        %1036 = sbr.rel (%p1034) target = $region40
      $region39: #{image_transformer_forward.17} parent=35 // pred_region
        %p1037 = scmp.lt.s32.totalorder %s15, 1
        %s1038 = scalar_select %p1037, %s15, 1
        %s1039 = smul.addr %s1038, 3
        %s1040 = smul.addr %s1039, 4
        %s1041 = scalar_lea.vmem %s1, %s1040
      $region40: #{image_transformer_forward.17} parent=35 // pred_fallthru
        _
      // Predicated region
      $region41: #{image_transformer_forward.17} parent=35 // pred_check
        %p1042 = pneg %p90
      $region42: #{image_transformer_forward.17} parent=35 // pred_check_branch
        %1044 = sbr.rel (%p1042) target = $region44
      $region43: #{image_transformer_forward.17} parent=35 // pred_region
        %p1045 = scmp.lt.s32.totalorder %s15, 1
        %s1046 = scalar_select %p1045, %s15, 1
        %s1047 = smul.addr %s1046, 12
        %s1048 = smul.addr %s1047, 4
        %s1049 = scalar_lea.vmem %s2, %s1048
      $region44: #{image_transformer_forward.17} parent=35 // pred_fallthru
        _
    $region36: #{image_transformer_forward.17} parent=5 // pred_fallthru
      _
  $region6: #{image_transformer_forward.17} parent=0 // loop_footer
    %s13 = sadd.s32 1, %s9
  $region7: #{image_transformer_forward.17} parent=0 // loop_footer_branch
    %8 = sbr.rel target = $region3
  $region8: #{image_transformer_forward.17} parent=0 // loop_exit
    _

// kernel: image_transformer_forward.25
$region0: #{image_transformer_forward.25}
  #allocation0 [shape = 'u32[]', space=smem, size = 0x4, offset = 0x4, fixed_abs, tag = 'smem constant byte address 0x4 - core index']
  #allocation1 [shape = 'u32[144,128]{1,0:T(1,128)}', space=vmem, size = 0x12000, scoped, tag = 'internal scratch']
  %s0 = inlined_call_operand.vmem [shape: bf16[48,64], index: 0, kind: input, shape index: {}]
  %s1 = inlined_call_operand.vmem [shape: bf16[64,32], index: 1, kind: input, shape index: {}]
  %s2 = inlined_call_operand.vmem [shape: f32[1,32], index: 2, kind: input, shape index: {}]
  %s3 = inlined_call_operand.vmem [shape: f32[48,32], index: 3, kind: input, shape index: {}]
  %s4 = inlined_call_operand.vmem [shape: f32[48,32], index: 4, kind: output, shape index: {}]
  %s5 = sld [smem:[#allocation0]]
  $region26: #{image_transformer_forward.25} parent=0
    _
  %s7 = ssub.s32 1, %s5
  %s8 = scalar_select 0, %s7, %s5
  // Predicated region
  $region2: #{image_transformer_forward.25} parent=0 // pred_check
    _
  $region3: #{image_transformer_forward.25} parent=0 // pred_check_branch
    %10 = sbr.rel (0) target = $region5
  $region4: #{image_transformer_forward.25} parent=0 // pred_region
    _
  $region5: #{image_transformer_forward.25} parent=0 // pred_fallthru
    _
  // Predicated region
  $region6: #{image_transformer_forward.25} parent=0 // pred_check
    _
  $region7: #{image_transformer_forward.25} parent=0 // pred_check_branch
    %12 = sbr.rel (0) target = $region9
  $region8: #{image_transformer_forward.25} parent=0 // pred_region
    _
  $region9: #{image_transformer_forward.25} parent=0 // pred_fallthru
    _
  // Predicated region
  $region10: #{image_transformer_forward.25} parent=0 // pred_check
    _
  $region11: #{image_transformer_forward.25} parent=0 // pred_check_branch
    %14 = sbr.rel (0) target = $region13
  $region12: #{image_transformer_forward.25} parent=0 // pred_region
    _
  $region13: #{image_transformer_forward.25} parent=0 // pred_fallthru
    _
  // Predicated region
  $region14: #{image_transformer_forward.25} parent=0 // pred_check
    _
  $region15: #{image_transformer_forward.25} parent=0 // pred_check_branch
    %16 = sbr.rel (0) target = $region17
  $region16: #{image_transformer_forward.25} parent=0 // pred_region
    _
  $region17: #{image_transformer_forward.25} parent=0 // pred_fallthru
    _
  %v18 = vld [vmem:[%s0] sm:$0xf]
  %v19 = vld [vmem:[%s0 + $0x4] sm:$0xf]
  %v20 = vld [vmem:[%s0 + $0x8] sm:$0xf]
  %v21 = vld [vmem:[%s0 + $0xc] sm:$0xf]
  %v22 = vld [vmem:[%s0 + $0x10] sm:$0xf]
  %v23 = vld [vmem:[%s0 + $0x14] sm:$0xf]
  %v24 = vld [vmem:[%s1] sm:$0xf]
  %v25 = vld [vmem:[%s1 + $0x4] sm:$0xf]
  %v26 = vld [vmem:[%s1 + $0x8] sm:$0xf]
  %v27 = vld [vmem:[%s1 + $0xc] sm:$0xf]
  %v28 = vld [vmem:[%s1 + $0x10] sm:$0xf]
  %v29 = vld [vmem:[%s1 + $0x14] sm:$0xf]
  %v30 = vld [vmem:[%s1 + $0x18] sm:$0xf]
  %v31 = vld [vmem:[%s1 + $0x1c] sm:$0xf]
  %v32 = vld [vmem:[%s2] sm:$0x1]
  %v34 = vlaneseq
  %v35 = vshrl.u32 %v34, 7
  %v36 = vsub.s32 0, %v35
  %v37 = vrot.slane %v32, %v36
  %v45 = vunpack.c.l.b16 %v18
  %v46 = vunpack.c.l.b16 %v19
  %v47 = vunpack.c.l.b16 %v20
  %v48 = vunpack.c.l.b16 %v21
  %v49 = vunpack.c.l.b16 %v22
  %v50 = vunpack.c.l.b16 %v23
  %v51 = vpack.c.b16 %v46, %v45
  %v52 = vpack.c.b16 %v48, %v47
  %v53 = vpack.c.b16 %v50, %v49
  %v62 = vunpack.c.l.b16 %v24
  %v63 = vunpack.c.l.b16 %v25
  %v64 = vunpack.c.l.b16 %v26
  %v65 = vunpack.c.l.b16 %v27
  %v66 = vunpack.c.l.b16 %v28
  %v67 = vunpack.c.l.b16 %v29
  %v68 = vunpack.c.l.b16 %v30
  %v69 = vunpack.c.l.b16 %v31
  %v70 = vpack.c.b16 %v63, %v62
  %v71 = vpack.c.b16 %v65, %v64
  %v72 = vpack.c.b16 %v67, %v66
  %v73 = vpack.c.b16 %v69, %v68
  %vm78 = vcmask 523264
  %v80 = vsel %vm78, %v51, 0
  %v83 = vsel %vm78, %v52, 0
  %v86 = vsel %vm78, %v53, 0
  %88 = vmatprep.subr.bf16.mxu0 0
  %89 = vmatpush1.bf16.msra.mxu0 %v70
  %90 = vmatprep.subr.bf16.mxu0 0
  %91 = vmatpush1.bf16.msra.mxu0 %v71
  %92 = vmatprep.subr.bf16.mxu0 0
  %93 = vmatpush1.bf16.msra.mxu0 %v72
  %94 = vmatprep.subr.bf16.mxu0 0
  %95 = vmatpush1.bf16.msra.mxu0 %v73
  %96 = vmatprep.subr.bf16.mxu0 0
  %97 = vmatpush1.bf16.msra.mxu0 0
  %98 = vmatprep.subr.bf16.mxu0 0
  %99 = vmatpush1.bf16.msra.mxu0 0
  %100 = vmatprep.subr.bf16.mxu0 0
  %101 = vmatpush1.bf16.msra.mxu0 0
  %102 = vmatprep.subr.bf16.mxu0 0
  %103 = vmatpush1.bf16.msra.mxu0 0
  %104 = vmatprep.subr.bf16.mxu0 0
  %105 = vmatpush1.bf16.msra.mxu0 0
  %106 = vmatprep.subr.bf16.mxu0 0
  %107 = vmatpush1.bf16.msra.mxu0 0
  %108 = vmatprep.subr.bf16.mxu0 0
  %109 = vmatpush1.bf16.msra.mxu0 0
  %110 = vmatprep.subr.bf16.mxu0 0
  %111 = vmatpush1.bf16.msra.mxu0 0
  %112 = vmatprep.subr.bf16.mxu0 0
  %113 = vmatpush1.bf16.msra.mxu0 0
  %114 = vmatprep.subr.bf16.mxu0 0
  %115 = vmatpush1.bf16.msra.mxu0 0
  %116 = vmatprep.subr.bf16.mxu0 0
  %117 = vmatpush1.bf16.msra.mxu0 0
  %118 = vmatprep.subr.bf16.mxu0 0
  %119 = vmatpush1.bf16.msra.mxu0 0
  %120 = vmatprep.mubr.bf16.mxu0 0
  %121 = vmatmul.mubr.bf16.gmra.mrb[0].mxu0 %v80
  %v122 = vpop.f32.mrb[0].mxu0
  %v123 = vadd.f32 %v37, %v122
  %v124 = vpop.f32.mrb[0].mxu0
  %v125 = vpop.f32.mrb[0].mxu0
  %v126 = vadd.f32 %v37, %v125
  %v127 = vpop.f32.mrb[0].mxu0
  %128 = vmatprep.mubr.bf16.mxu0 0
  %129 = vmatmul.mubr.bf16.gmra.mrb[0].mxu0 %v83
  %v130 = vpop.f32.mrb[0].mxu0
  %v131 = vadd.f32 %v37, %v130
  %v132 = vpop.f32.mrb[0].mxu0
  %v133 = vpop.f32.mrb[0].mxu0
  %v134 = vadd.f32 %v37, %v133
  %v135 = vpop.f32.mrb[0].mxu0
  %136 = vmatprep.mubr.bf16.mxu0 0
  %137 = vmatmul.mubr.bf16.gmra.mrb[0].mxu0 %v86
  %v138 = vpop.f32.mrb[0].mxu0
  %v139 = vadd.f32 %v37, %v138
  %v140 = vpop.f32.mrb[0].mxu0
  %v141 = vpop.f32.mrb[0].mxu0
  %v142 = vadd.f32 %v37, %v141
  %v143 = vpop.f32.mrb[0].mxu0
  %144 = vdwg.mxu0
  %v145 = vld [vmem:[%s3] sm:$0xff]
  %v146 = vld [vmem:[%s3 + $0x8] sm:$0xff]
  %v147 = vld [vmem:[%s3 + $0x10] sm:$0xff]
  %v148 = vld [vmem:[%s3 + $0x18] sm:$0xff]
  %v149 = vld [vmem:[%s3 + $0x20] sm:$0xff]
  %v150 = vld [vmem:[%s3 + $0x28] sm:$0xff]
  %v151 = vadd.f32 %v123, %v145
  %v152 = vadd.f32 %v126, %v146
  %v153 = vadd.f32 %v131, %v147
  %v154 = vadd.f32 %v134, %v148
  %v155 = vadd.f32 %v139, %v149
  %v156 = vadd.f32 %v142, %v150
  %vm157 = vcmask 261120
  %158 = vst.msk [vmem:[%s4] sm:$0xff] %vm157, %v151
  %159 = vst.msk [vmem:[%s4 + $0x8] sm:$0xff] %vm157, %v152
  %160 = vst.msk [vmem:[%s4 + $0x10] sm:$0xff] %vm157, %v153
  %161 = vst.msk [vmem:[%s4 + $0x18] sm:$0xff] %vm157, %v154
  %162 = vst.msk [vmem:[%s4 + $0x20] sm:$0xff] %vm157, %v155
  %163 = vst.msk [vmem:[%s4 + $0x28] sm:$0xff] %vm157, %v156
  // Predicated region
  $region18: #{image_transformer_forward.25} parent=0 // pred_check
    _
  $region19: #{image_transformer_forward.25} parent=0 // pred_check_branch
    %165 = sbr.rel (0) target = $region21
  $region20: #{image_transformer_forward.25} parent=0 // pred_region
    _
  $region21: #{image_transformer_forward.25} parent=0 // pred_fallthru
    _
  // Predicated region
  $region22: #{image_transformer_forward.25} parent=0 // pred_check
    _
  $region23: #{image_transformer_forward.25} parent=0 // pred_check_branch
    %167 = sbr.rel (0) target = $region25
  $region24: #{image_transformer_forward.25} parent=0 // pred_region
    _
  $region25: #{image_transformer_forward.25} parent=0 // pred_fallthru
    _

// kernel: image_transformer_forward.26
$region0: #{image_transformer_forward.26}
  #allocation0 [shape = 'u32[]', space=smem, size = 0x4, offset = 0x4, fixed_abs, tag = 'smem constant byte address 0x4 - core index']
  #allocation1 [shape = 'u32[144,128]{1,0:T(1,128)}', space=vmem, size = 0x12000, scoped, tag = 'internal scratch']
  %s0 = inlined_call_operand.vmem [shape: f32[2,32], index: 0, kind: input, shape index: {}]
  %s1 = inlined_call_operand.vmem [shape: f32[1,32], index: 1, kind: input, shape index: {}]
  %s2 = inlined_call_operand.vmem [shape: f32[1,32], index: 2, kind: input, shape index: {}]
  %s3 = inlined_call_operand.vmem [shape: f32[2,32], index: 3, kind: output, shape index: {}]
  %s4 = sld [smem:[#allocation0]]
  $region22: #{image_transformer_forward.26} parent=0
    _
  %s6 = ssub.s32 1, %s4
  %s7 = scalar_select 0, %s6, %s4
  // Predicated region
  $region2: #{image_transformer_forward.26} parent=0 // pred_check
    _
  $region3: #{image_transformer_forward.26} parent=0 // pred_check_branch
    %9 = sbr.rel (0) target = $region5
  $region4: #{image_transformer_forward.26} parent=0 // pred_region
    _
  $region5: #{image_transformer_forward.26} parent=0 // pred_fallthru
    _
  // Predicated region
  $region6: #{image_transformer_forward.26} parent=0 // pred_check
    _
  $region7: #{image_transformer_forward.26} parent=0 // pred_check_branch
    %11 = sbr.rel (0) target = $region9
  $region8: #{image_transformer_forward.26} parent=0 // pred_region
    _
  $region9: #{image_transformer_forward.26} parent=0 // pred_fallthru
    _
  // Predicated region
  $region10: #{image_transformer_forward.26} parent=0 // pred_check
    _
  $region11: #{image_transformer_forward.26} parent=0 // pred_check_branch
    %13 = sbr.rel (0) target = $region13
  $region12: #{image_transformer_forward.26} parent=0 // pred_region
    _
  $region13: #{image_transformer_forward.26} parent=0 // pred_fallthru
    _
  %v14 = vld [vmem:[%s0] sm:$0x3]
  %vm15 = vcmask 254976
  %v16 = vsel %vm15, %v14, 0.0
  %17 = vadd.xlane.f32.xlu0 %v16
  %v18 = vpop.xlane.xlu0 %17
  %v19 = vrcp.pop 32.0
  %v20 = vmul.f32 %v18, %v19
  %v21 = vsub.f32 %v14, %v20
  %v22 = vmul.f32 %v21, %v21
  %v23 = vsel %vm15, %v22, 0.0
  %24 = vadd.xlane.f32.xlu0 %v23
  %v25 = vpop.xlane.xlu0 %24
  %v26 = vmul.f32 %v25, %v19
  %v27 = vadd.f32 %v26, 1e-05
  %v28 = vrsqrt.pop %v27
  %v29 = vmul.f32 %v21, %v28
  %v30 = vld [vmem:[%s1] sm:$0x1]
  %v32 = vlaneseq
  %v33 = vshrl.u32 %v32, 7
  %v34 = vsub.s32 0, %v33
  %v35 = vrot.slane %v30, %v34
  %v37 = vmul.f32 %v29, %v35
  %v38 = vld [vmem:[%s2] sm:$0x1]
  %v40 = vlaneseq
  %v41 = vshrl.u32 %v40, 7
  %v42 = vsub.s32 0, %v41
  %v43 = vrot.slane %v38, %v42
  %v45 = vadd.f32 %v37, %v43
  %46 = vst.msk [vmem:[%s3] sm:$0x3] %vm15, %v45
  // Predicated region
  $region14: #{image_transformer_forward.26} parent=0 // pred_check
    _
  $region15: #{image_transformer_forward.26} parent=0 // pred_check_branch
    %48 = sbr.rel (0) target = $region17
  $region16: #{image_transformer_forward.26} parent=0 // pred_region
    _
  $region17: #{image_transformer_forward.26} parent=0 // pred_fallthru
    _
  // Predicated region
  $region18: #{image_transformer_forward.26} parent=0 // pred_check
    _
  $region19: #{image_transformer_forward.26} parent=0 // pred_check_branch
    %50 = sbr.rel (0) target = $region21
  $region20: #{image_transformer_forward.26} parent=0 // pred_region
    _
  $region21: #{image_transformer_forward.26} parent=0 // pred_fallthru
    _

// kernel: image_transformer_forward.27
$region0: #{image_transformer_forward.27}
  #allocation0 [shape = 'u32[]', space=smem, size = 0x4, offset = 0x4, fixed_abs, tag = 'smem constant byte address 0x4 - core index']
  #allocation1 [shape = 'u32[144,128]{1,0:T(1,128)}', space=vmem, size = 0x12000, scoped, tag = 'internal scratch']
  %s0 = inlined_call_operand.vmem [shape: f32[2,32], index: 0, kind: input, shape index: {}]
  %s1 = inlined_call_operand.vmem [shape: bf16[32,2], index: 1, kind: input, shape index: {}]
  %s2 = inlined_call_operand.vmem [shape: f32[1,2], index: 2, kind: input, shape index: {}]
  %s3 = inlined_call_operand.hbm [shape: f32[2,2], index: 3, kind: output, shape index: {}]
  %s4 = sld [smem:[#allocation0]]
  $region22: #{image_transformer_forward.27} parent=0
    _
  %s6 = ssub.s32 1, %s4
  %s7 = scalar_select 0, %s6, %s4
  $region1: #{image_transformer_forward.27} parent=0
    #allocation2 [shape = 'u8[1024]{0}', space=vmem, size = 0x400, scoped, tag = 'output window, operand 0, single buffered']
    #allocation3 [shape = 's32[1]{0}', space=sflag, size = 0x4, scoped, tag = 'scoped memory for image_transformer_forward.27']
    %8 = vsyncpa [#allocation3], 0
    // Predicated region
    $region2: #{image_transformer_forward.27} parent=1 // pred_check
      _
    $region3: #{image_transformer_forward.27} parent=1 // pred_check_branch
      %10 = sbr.rel (0) target = $region5
    $region4: #{image_transformer_forward.27} parent=1 // pred_region
      _
    $region5: #{image_transformer_forward.27} parent=1 // pred_fallthru
      _
    // Predicated region
    $region6: #{image_transformer_forward.27} parent=1 // pred_check
      _
    $region7: #{image_transformer_forward.27} parent=1 // pred_check_branch
      %12 = sbr.rel (0) target = $region9
    $region8: #{image_transformer_forward.27} parent=1 // pred_region
      _
    $region9: #{image_transformer_forward.27} parent=1 // pred_fallthru
      _
    // Predicated region
    $region10: #{image_transformer_forward.27} parent=1 // pred_check
      _
    $region11: #{image_transformer_forward.27} parent=1 // pred_check_branch
      %14 = sbr.rel (0) target = $region13
    $region12: #{image_transformer_forward.27} parent=1 // pred_region
      _
    $region13: #{image_transformer_forward.27} parent=1 // pred_fallthru
      _
    %v16 = vld [vmem:[%s0] sm:$0x3]
    %v17 = vpack.c.bf16 %v16, %v16
    %v18 = vld [vmem:[%s1] sm:$0xf]
    %v19 = vld [vmem:[%s1 + $0x4] sm:$0xf]
    %v20 = vld [vmem:[%s1 + $0x8] sm:$0xf]
    %v21 = vld [vmem:[%s1 + $0xc] sm:$0xf]
    %v22 = vld [vmem:[%s2] sm:$0x1]
    %v24 = vlaneseq
    %v25 = vshrl.u32 %v24, 7
    %v26 = vsub.s32 0, %v25
    %v27 = vrot.slane %v22, %v26
    %v33 = vunpack.c.l.b16 %v18
    %v34 = vunpack.c.l.b16 %v19
    %v35 = vunpack.c.l.b16 %v20
    %v36 = vunpack.c.l.b16 %v21
    %v37 = vpack.c.b16 %v34, %v33
    %v38 = vpack.c.b16 %v36, %v35
    %vm41 = vcmask 261120
    %v43 = vsel %vm41, %v17, 0
    %45 = vmatprep.subr.bf16.mxu0 0
    %46 = vmatpush1.bf16.msra.mxu0 %v37
    %47 = vmatprep.subr.bf16.mxu0 0
    %48 = vmatpush1.bf16.msra.mxu0 %v38
    %49 = vmatprep.subr.bf16.mxu0 0
    %50 = vmatpush1.bf16.msra.mxu0 0
    %51 = vmatprep.subr.bf16.mxu0 0
    %52 = vmatpush1.bf16.msra.mxu0 0
    %53 = vmatprep.subr.bf16.mxu0 0
    %54 = vmatpush1.bf16.msra.mxu0 0
    %55 = vmatprep.subr.bf16.mxu0 0
    %56 = vmatpush1.bf16.msra.mxu0 0
    %57 = vmatprep.subr.bf16.mxu0 0
    %58 = vmatpush1.bf16.msra.mxu0 0
    %59 = vmatprep.subr.bf16.mxu0 0
    %60 = vmatpush1.bf16.msra.mxu0 0
    %61 = vmatprep.subr.bf16.mxu0 0
    %62 = vmatpush1.bf16.msra.mxu0 0
    %63 = vmatprep.subr.bf16.mxu0 0
    %64 = vmatpush1.bf16.msra.mxu0 0
    %65 = vmatprep.subr.bf16.mxu0 0
    %66 = vmatpush1.bf16.msra.mxu0 0
    %67 = vmatprep.subr.bf16.mxu0 0
    %68 = vmatpush1.bf16.msra.mxu0 0
    %69 = vmatprep.subr.bf16.mxu0 0
    %70 = vmatpush1.bf16.msra.mxu0 0
    %71 = vmatprep.subr.bf16.mxu0 0
    %72 = vmatpush1.bf16.msra.mxu0 0
    %73 = vmatprep.subr.bf16.mxu0 0
    %74 = vmatpush1.bf16.msra.mxu0 0
    %75 = vmatprep.subr.bf16.mxu0 0
    %76 = vmatpush1.bf16.msra.mxu0 0
    %77 = vmatprep.mubr.bf16.mxu0 0
    %78 = vmatmul.mubr.bf16.gmra.mrb[0].mxu0 %v43
    %v79 = vpop.f32.mrb[0].mxu0
    %v80 = vadd.f32 %v27, %v79
    %v81 = vpop.f32.mrb[0].mxu0
    %v82 = vpop.f32.mrb[0].mxu0
    %v83 = vpop.f32.mrb[0].mxu0
    %84 = vdwg.mxu0
    %vm85 = vcmask 9216
    %86 = vst.msk [vmem:[#allocation2] sm:$0x3] %vm85, %v80
    // Predicated region
    $region14: #{image_transformer_forward.27} parent=1 // pred_check
      _
    $region15: #{image_transformer_forward.27} parent=1 // pred_check_branch
      %88 = sbr.rel (0) target = $region17
    $region16: #{image_transformer_forward.27} parent=1 // pred_region
      %s90 = ssub.s32 32, 32
      %91 = vsyncadd [#allocation3], %s90
      %s93 = sshll.u32 [#allocation2], 4
      %s94 = int_to_ptr.vmem [resolvable:$true] %s93
      %96 = dma.vmem_to_hbm [thread:$0]  %s94, 32, %s3, [#allocation3]
    $region17: #{image_transformer_forward.27} parent=1 // pred_fallthru
      _
    // Predicated region
    $region18: #{image_transformer_forward.27} parent=1 // pred_check
      _
    $region19: #{image_transformer_forward.27} parent=1 // pred_check_branch
      %98 = sbr.rel (0) target = $region21
    $region20: #{image_transformer_forward.27} parent=1 // pred_region
      %99 = dma.done [#allocation3], 32
    $region21: #{image_transformer_forward.27} parent=1 // pred_fallthru
      _
    %100 = vsyncpa [#allocation3], 1

</llo_original>
